<compile_context>
chip_gen: v7x
topology: tpu7x:2x2x1
jax: 0.10.0
libtpu: 0.0.40
codegen_flags: <defaults>
</compile_context>

<pallas_src>
import functools
import math

import jax
import jax.numpy as jnp
from jax.experimental import pallas as pl
from jax.experimental.pallas import tpu as pltpu


def _vmem_limit_bytes():
    """Scoped-VMEM limit: ~75% of physical, capped at 100 MiB.

    v5e/v6e (128 MiB physical) -> 96 MiB; v7x (64 MiB physical) -> 48 MiB.
    """
    try:
        cap = pltpu.get_tpu_info().vmem_capacity_bytes
    except Exception:
        cap = 64 * 1024 * 1024          # conservative (v7x-sized) fallback
    return int(min(100 * 1024 * 1024, cap * 3 // 4))


def _pick_tile(n, max_tile, multiple=8):
    """Largest divisor of n that is <= max_tile and a multiple of `multiple`."""
    for t in range(min(n, max_tile), 0, -1):
        if n % t == 0 and t % multiple == 0:
            return t
    return None


# --------------------------------------------------------------------------
# Kernel 1: fused Q/K/V projection  (TR, D) @ (D, 3D) + (1, 3D)
# --------------------------------------------------------------------------
def _qkv_proj_kernel(x_ref, w_ref, b_ref, o_ref):
    x = x_ref[...].astype(jnp.bfloat16)          # bf16 MXU inputs
    acc = jnp.dot(x, w_ref[...], preferred_element_type=jnp.float32)
    o_ref[...] = (acc + b_ref[...]).astype(o_ref.dtype)


# --------------------------------------------------------------------------
# Kernel 2: flash-style attention with online softmax (Q pre-scaled)
# --------------------------------------------------------------------------
def _flash_attn_kernel(q_ref, k_ref, v_ref, o_ref, m_sc, l_sc, acc_sc, *, kv_axis):
    kv = pl.program_id(kv_axis)

    @pl.when(kv == 0)
    def _():
        m_sc[...] = jnp.full_like(m_sc, -jnp.inf)
        l_sc[...] = jnp.zeros_like(l_sc)
        acc_sc[...] = jnp.zeros_like(acc_sc)

    q = q_ref[...]                               # (TQ, dk) bf16, pre-scaled
    k = k_ref[...]                               # (TK, dk) bf16
    # Contract last dim of both operands: MXU consumes K in place (no k.T).
    s = jax.lax.dot_general(q, k, (((1,), (1,)), ((), ())),
                            preferred_element_type=jnp.float32)

    m_prev = m_sc[...]
    m_new = jnp.maximum(m_prev, jnp.max(s, axis=-1, keepdims=True))
    alpha = jnp.exp(m_prev - m_new)              # f32 softmax math (v5e-safe)
    # TODO(synk): on v6e/v7x, if xprof shows this kernel EUP-bound, switch to
    # p = jnp.exp((s - m_new).astype(jnp.bfloat16)) (keep m/l/acc f32); not v5e.
    p = jnp.exp(s - m_new)
    l_sc[...] = alpha * l_sc[...] + jnp.sum(p, axis=-1, keepdims=True)
    acc_sc[...] = alpha * acc_sc[...] + jnp.dot(
        p.astype(v_ref.dtype), v_ref[...], preferred_element_type=jnp.float32)
    m_sc[...] = m_new

    @pl.when(kv == pl.num_programs(kv_axis) - 1)
    def _():
        # Exact divide: runs once per q tile, so it is essentially free
        # (review feedback: drop the approximate reciprocal).
        o_ref[...] = (acc_sc[...] / l_sc[...]).astype(o_ref.dtype)


# --------------------------------------------------------------------------
# Kernel 3: output projection + residual + LN1 + FFN + residual + LN2
# --------------------------------------------------------------------------
def _layer_norm(v, g, b, eps=1e-5):
    mu = jnp.mean(v, axis=-1, keepdims=True)
    c = v - mu
    var = jnp.mean(c * c, axis=-1, keepdims=True)
    return c * jax.lax.rsqrt(var + eps) * g + b


def _out_ffn_kernel(x_ref, attn_ref, wo_ref, bo_ref, g1_ref, be1_ref,
                    w1_ref, b1_ref, w2_ref, b2_ref, g2_ref, be2_ref, o_ref):
    x = x_ref[...]                               # (TR, D) f32 (residual path)
    attn = attn_ref[...]                         # (TR, D) bf16
    proj = jnp.dot(attn, wo_ref[...],
                   preferred_element_type=jnp.float32) + bo_ref[...]
    # Dropout(p=0.1) is the identity in eval/inference mode.
    # TODO(synk): training-mode dropout would use pltpu.prng_seed/prng_random_bits.
    h = _layer_norm(x + proj, g1_ref[...], be1_ref[...])

    f = jnp.dot(h.astype(jnp.bfloat16), w1_ref[...],
                preferred_element_type=jnp.float32) + b1_ref[...]
    # TODO(synk): nn.GELU() default is the exact erf form; tanh approximation
    # is used for a guaranteed Mosaic lowering (max abs diff ~1e-3).
    f = 0.5 * f * (1.0 + jnp.tanh(0.7978845608028654 * (f + 0.044715 * f * f * f)))
    f = jnp.dot(f.astype(jnp.bfloat16), w2_ref[...],
                preferred_element_type=jnp.float32) + b2_ref[...]
    y = _layer_norm(h + f, g2_ref[...], be2_ref[...])
    o_ref[...] = y.astype(o_ref.dtype)


# --------------------------------------------------------------------------
# Wrapper
# --------------------------------------------------------------------------
def transformer_block(x, params, *, n_heads):
    """x: (B, S, D) f32. params: dict of weights (in,out) / biases / LN params."""
    B, S, D = x.shape
    assert D % n_heads == 0
    dk = D // n_heads
    F = params["w1"].shape[1]
    rows = B * S
    vmem_limit = _vmem_limit_bytes()

    # Fold the 1/sqrt(dk) attention scale into the Q weights/bias at trace
    # time (f32, before the bf16 cast): removes a per-kv-step VALU multiply.
    scale = 1.0 / math.sqrt(dk)
    wqkv = jnp.concatenate([params["wq"] * scale, params["wk"], params["wv"]],
                           axis=1).astype(jnp.bfloat16)             # (D, 3D)
    bqkv = jnp.concatenate([params["bq"] * scale, params["bk"], params["bv"]],
                           axis=1)                                   # (1, 3D) f32
    wo = params["wo"].astype(jnp.bfloat16)
    w1 = params["w1"].astype(jnp.bfloat16)
    w2 = params["w2"].astype(jnp.bfloat16)

    x_flat = x.reshape(rows, D)
    TR = _pick_tile(rows, 512) or rows           # row tile up to 512

    # ---- kernel 1: fused QKV projection over row tiles -------------------
    qkv = pl.pallas_call(
        _qkv_proj_kernel,
        out_shape=jax.ShapeDtypeStruct((rows, 3 * D), jnp.bfloat16),
        grid_spec=pltpu.PrefetchScalarGridSpec(
            num_scalar_prefetch=0,
            grid=(rows // TR,),
            in_specs=[
                pl.BlockSpec((TR, D), lambda r: (r, 0)),
                # Constant-index weight / bias blocks: single-buffered.
                pl.BlockSpec((D, 3 * D), lambda r: (0, 0),
                             pipeline_mode=pl.Buffered(1)),
                pl.BlockSpec((1, 3 * D), lambda r: (0, 0),
                             pipeline_mode=pl.Buffered(1)),
            ],
            out_specs=pl.BlockSpec((TR, 3 * D), lambda r: (r, 0))),
        compiler_params=pltpu.CompilerParams(
            dimension_semantics=("parallel",),
            vmem_limit_bytes=vmem_limit),
    )(x_flat, wqkv, bqkv)

    # ---- kernel 2: flash-style attention ----------------------------------
    TQ = _pick_tile(S, 512)
    TK = S if (S % 8 == 0 and S <= 2048) else _pick_tile(S, 512)
    use_direct = (dk % 128 == 0) and (TQ is not None) and (TK is not None)

    if use_direct:
        # Direct (rows, 3D)-slab indexing: no head split/merge transposes and
        # the output is written lane-dense into a (rows, D) slab.
        qt, kt = S // TQ, S // TK
        H = n_heads
        attn_flat = pl.pallas_call(
            functools.partial(_flash_attn_kernel, kv_axis=3),
            out_shape=jax.ShapeDtypeStruct((rows, D), jnp.bfloat16),
            grid_spec=pltpu.PrefetchScalarGridSpec(
                num_scalar_prefetch=0,
                grid=(B, H, qt, kt),                     # KV (reduction) last
                in_specs=[
                    pl.BlockSpec((TQ, dk),
                                 lambda b, h, qi, ki: (b * qt + qi, h)),
                    pl.BlockSpec((TK, dk),
                                 lambda b, h, qi, ki: (b * kt + ki, H + h)),
                    pl.BlockSpec((TK, dk),
                                 lambda b, h, qi, ki: (b * kt + ki, 2 * H + h)),
                ],
                out_specs=pl.BlockSpec((TQ, dk),
                                       lambda b, h, qi, ki: (b * qt + qi, h)),
                scratch_shapes=[pltpu.VMEM((TQ, 1), jnp.float32),   # running max
                                pltpu.VMEM((TQ, 1), jnp.float32),   # running denom
                                pltpu.VMEM((TQ, dk), jnp.float32)]  # accumulator
            ),
            compiler_params=pltpu.CompilerParams(
                dimension_semantics=("parallel", "parallel", "parallel",
                                     "arbitrary"),
                vmem_limit_bytes=vmem_limit),
        )(qkv, qkv, qkv)
    else:
        # Fallback for dk % 128 != 0: wrapper-side head split/merge (layout
        # plumbing only; masked stores for dk < 128 are unavoidable here).
        TQf = _pick_tile(S, 512) or S
        TKf = S if S <= 2048 else (_pick_tile(S, 512) or S)
        qkv5 = qkv.reshape(B, S, 3, n_heads, dk)
        q = qkv5[:, :, 0].transpose(0, 2, 1, 3).reshape(B * n_heads, S, dk)
        k = qkv5[:, :, 1].transpose(0, 2, 1, 3).reshape(B * n_heads, S, dk)
        v = qkv5[:, :, 2].transpose(0, 2, 1, 3).reshape(B * n_heads, S, dk)

        attn = pl.pallas_call(
            functools.partial(_flash_attn_kernel, kv_axis=2),
            out_shape=jax.ShapeDtypeStruct((B * n_heads, S, dk), jnp.bfloat16),
            grid_spec=pltpu.PrefetchScalarGridSpec(
                num_scalar_prefetch=0,
                grid=(B * n_heads, S // TQf, S // TKf),
                in_specs=[
                    pl.BlockSpec((pl.Squeezed(), TQf, dk),
                                 lambda b, qi, ki: (b, qi, 0)),
                    pl.BlockSpec((pl.Squeezed(), TKf, dk),
                                 lambda b, qi, ki: (b, ki, 0)),
                    pl.BlockSpec((pl.Squeezed(), TKf, dk),
                                 lambda b, qi, ki: (b, ki, 0)),
                ],
                out_specs=pl.BlockSpec((pl.Squeezed(), TQf, dk),
                                       lambda b, qi, ki: (b, qi, 0)),
                scratch_shapes=[pltpu.VMEM((TQf, 1), jnp.float32),
                                pltpu.VMEM((TQf, 1), jnp.float32),
                                pltpu.VMEM((TQf, dk), jnp.float32)]),
            compiler_params=pltpu.CompilerParams(
                dimension_semantics=("parallel", "parallel", "arbitrary"),
                vmem_limit_bytes=vmem_limit),
        )(q, k, v)
        attn_flat = attn.reshape(B, n_heads, S, dk).transpose(0, 2, 1, 3)
        attn_flat = attn_flat.reshape(rows, D)

    # ---- kernel 3: out-proj + residual + LN1 + FFN + residual + LN2 --------
    # TODO(synk): for very large D/F on v7x (64 MiB VMEM), tile the FFN over an
    # F grid axis (w1 (D,TF), w2 (TF,D), f32 accumulator with pl.when
    # init/finalize) or split into out-proj+LN1 and FFN+LN2 calls; not needed
    # at the sizes exercised here.
    out = pl.pallas_call(
        _out_ffn_kernel,
        out_shape=jax.ShapeDtypeStruct((rows, D), x.dtype),
        grid_spec=pltpu.PrefetchScalarGridSpec(
            num_scalar_prefetch=0,
            grid=(rows // TR,),
            in_specs=[
                pl.BlockSpec((TR, D), lambda r: (r, 0)),      # x (residual)
                pl.BlockSpec((TR, D), lambda r: (r, 0)),      # attn
                pl.BlockSpec((D, D), lambda r: (0, 0),        # wo (bf16)
                             pipeline_mode=pl.Buffered(1)),
                pl.BlockSpec((1, D), lambda r: (0, 0),        # bo
                             pipeline_mode=pl.Buffered(1)),
                pl.BlockSpec((1, D), lambda r: (0, 0),        # ln1 gamma
                             pipeline_mode=pl.Buffered(1)),
                pl.BlockSpec((1, D), lambda r: (0, 0),        # ln1 beta
                             pipeline_mode=pl.Buffered(1)),
                pl.BlockSpec((D, F), lambda r: (0, 0),        # w1 (bf16)
                             pipeline_mode=pl.Buffered(1)),
                pl.BlockSpec((1, F), lambda r: (0, 0),        # b1
                             pipeline_mode=pl.Buffered(1)),
                pl.BlockSpec((F, D), lambda r: (0, 0),        # w2 (bf16)
                             pipeline_mode=pl.Buffered(1)),
                pl.BlockSpec((1, D), lambda r: (0, 0),        # b2
                             pipeline_mode=pl.Buffered(1)),
                pl.BlockSpec((1, D), lambda r: (0, 0),        # ln2 gamma
                             pipeline_mode=pl.Buffered(1)),
                pl.BlockSpec((1, D), lambda r: (0, 0),        # ln2 beta
                             pipeline_mode=pl.Buffered(1)),
            ],
            out_specs=pl.BlockSpec((TR, D), lambda r: (r, 0))),
        compiler_params=pltpu.CompilerParams(
            dimension_semantics=("parallel",),
            vmem_limit_bytes=vmem_limit),
    )(x_flat, attn_flat, wo, params["bo"], params["ln1_g"], params["ln1_b"],
      w1, params["b1"], w2, params["b2"], params["ln2_g"], params["ln2_b"])

    return out.reshape(B, S, D)


# --------------------------------------------------------------------------
# Pure-JAX reference (mirrors the PyTorch TransformerBlock forward, eval mode)
# --------------------------------------------------------------------------
def _reference(x, p, n_heads):
    B, S, D = x.shape
    dk = D // n_heads

    def ln(v, g, b):
        mu = v.mean(-1, keepdims=True)
        var = ((v - mu) ** 2).mean(-1, keepdims=True)
        return (v - mu) / jnp.sqrt(var + 1e-5) * g + b

    q = x @ p["wq"] + p["bq"]
    k = x @ p["wk"] + p["bk"]
    v = x @ p["wv"] + p["bv"]
    q = q.reshape(B, S, n_heads, dk).transpose(0, 2, 1, 3)
    k = k.reshape(B, S, n_heads, dk).transpose(0, 2, 1, 3)
    v = v.reshape(B, S, n_heads, dk).transpose(0, 2, 1, 3)
    s = jnp.einsum("bhqd,bhkd->bhqk", q, k) / math.sqrt(dk)
    a = jax.nn.softmax(s, axis=-1)
    o = jnp.einsum("bhqk,bhkd->bhqd", a, v).transpose(0, 2, 1, 3).reshape(B, S, D)
    attn = o @ p["wo"] + p["bo"]
    h = ln(x + attn, p["ln1_g"], p["ln1_b"])
    f = jax.nn.gelu(h @ p["w1"] + p["b1"], approximate=False) @ p["w2"] + p["b2"]
    return ln(h + f, p["ln2_g"], p["ln2_b"])


def _make_params(key, D, FF):
    ks = jax.random.split(key, 16)
    sd = 1.0 / math.sqrt(D)
    sf = 1.0 / math.sqrt(FF)
    u = jax.random.uniform
    return {
        "wq": u(ks[0], (D, D), jnp.float32, -sd, sd),
        "wk": u(ks[1], (D, D), jnp.float32, -sd, sd),
        "wv": u(ks[2], (D, D), jnp.float32, -sd, sd),
        "wo": u(ks[3], (D, D), jnp.float32, -sd, sd),
        "bq": u(ks[4], (1, D), jnp.float32, -sd, sd),
        "bk": u(ks[5], (1, D), jnp.float32, -sd, sd),
        "bv": u(ks[6], (1, D), jnp.float32, -sd, sd),
        "bo": u(ks[7], (1, D), jnp.float32, -sd, sd),
        "w1": u(ks[8], (D, FF), jnp.float32, -sd, sd),
        "b1": u(ks[9], (1, FF), jnp.float32, -sd, sd),
        "w2": u(ks[10], (FF, D), jnp.float32, -sf, sf),
        "b2": u(ks[11], (1, D), jnp.float32, -sf, sf),
        "ln1_g": 1.0 + 0.1 * jax.random.normal(ks[12], (1, D), jnp.float32),
        "ln1_b": 0.1 * jax.random.normal(ks[13], (1, D), jnp.float32),
        "ln2_g": 1.0 + 0.1 * jax.random.normal(ks[14], (1, D), jnp.float32),
        "ln2_b": 0.1 * jax.random.normal(ks[15], (1, D), jnp.float32),
    }


if __name__ == "__main__":
    root = jax.random.PRNGKey(0)

    # Config A: dk = 128 -> exercises the optimized direct (rows, 3D)-slab
    # attention path (no head split/merge transposes, lane-dense output).
    B, S, D, H, FF = 2, 16, 256, 2, 512
    kp, kx, root = jax.random.split(root, 3)
    params_a = _make_params(kp, D, FF)
    x_a = jax.random.normal(kx, (B, S, D), jnp.float32)
    fn_a = jax.jit(functools.partial(transformer_block, n_heads=H))
    out_a = jax.block_until_ready(fn_a(x_a, params_a))
    ref_a = _reference(x_a, params_a, H)
    assert out_a.shape == ref_a.shape
    # Tolerance reflects bf16 MXU inputs (f32 accumulation) + tanh-GELU approx.
    assert jnp.allclose(out_a, ref_a, atol=5e-2, rtol=5e-2), "mismatch (direct path)"

    # Config B: dk = 8 -> exercises the head-split fallback path.
    B2, S2, D2, H2, FF2 = 2, 8, 32, 4, 64
    kp2, kx2, root = jax.random.split(root, 3)
    params_b = _make_params(kp2, D2, FF2)
    x_b = jax.random.normal(kx2, (B2, S2, D2), jnp.float32)
    fn_b = jax.jit(functools.partial(transformer_block, n_heads=H2))
    out_b = jax.block_until_ready(fn_b(x_b, params_b))
    ref_b = _reference(x_b, params_b, H2)
    assert out_b.shape == ref_b.shape
    assert jnp.allclose(out_b, ref_b, atol=5e-2, rtol=5e-2), "mismatch (fallback path)"

    print("KERNEL_OK")
</pallas_src>

<mosaic_0001>
module attributes {stable_mosaic.version = 11 : i64} {
  func.func @_qkv_proj_kernel(%arg0: i32, %arg1: memref<32x256xf32, #tpu.memory_space<vmem>>, %arg2: memref<256x768xbf16, #tpu.memory_space<vmem>>, %arg3: memref<1x768xf32, #tpu.memory_space<vmem>>, %arg4: memref<32x768xbf16, #tpu.memory_space<vmem>>) attributes {dimension_semantics = [#tpu.dimension_semantics<parallel>], iteration_bounds = array<i64: 1>, scalar_prefetch = 0 : i64, scratch_operands = 0 : i64, tpu.core_type = #tpu.core_type<tc>, window_params = [{transform_indices = @transform_0, window_bounds = array<i64: 32, 256>}, {pipeline_mode = #tpu.pipeline_mode<synchronous>, transform_indices = @transform_1, window_bounds = array<i64: 256, 768>}, {pipeline_mode = #tpu.pipeline_mode<synchronous>, transform_indices = @transform_2, window_bounds = array<i64: 1, 768>}, {transform_indices = @transform_3, window_bounds = array<i64: 32, 768>}]} {
    %c0 = arith.constant 0 : index
    %c0_0 = arith.constant 0 : index
    %0 = vector.load %arg1[%c0, %c0_0] : memref<32x256xf32, #tpu.memory_space<vmem>>, vector<32x256xf32>
    %1 = arith.truncf %0 : vector<32x256xf32> to vector<32x256xbf16>
    %c0_1 = arith.constant 0 : index
    %c0_2 = arith.constant 0 : index
    %2 = vector.load %arg2[%c0_1, %c0_2] : memref<256x768xbf16, #tpu.memory_space<vmem>>, vector<256x768xbf16>
    %cst = arith.constant dense<0.000000e+00> : vector<32x768xf32>
    %3 = tpu.matmul %1, %2, %cst {dimension_numbers = #tpu.dot_dimension_numbers<[1], [0], [0], [1], [0, 0, 1, 1], [], []>} : vector<32x256xbf16>, vector<256x768xbf16>, vector<32x768xf32> -> vector<32x768xf32>
    %c0_3 = arith.constant 0 : index
    %c0_4 = arith.constant 0 : index
    %4 = vector.load %arg3[%c0_3, %c0_4] : memref<1x768xf32, #tpu.memory_space<vmem>>, vector<1x768xf32>
    %5 = vector.broadcast %4 : vector<1x768xf32> to vector<32x768xf32>
    %6 = arith.addf %3, %5 : vector<32x768xf32>
    %7 = arith.truncf %6 : vector<32x768xf32> to vector<32x768xbf16>
    %c0_5 = arith.constant 0 : index
    %c0_6 = arith.constant 0 : index
    %8 = vector.load %arg4[%c0_5, %c0_6] : memref<32x768xbf16, #tpu.memory_space<vmem>>, vector<32x768xbf16>
    tpu.vector_store %arg4[%c0_5, %c0_6], %7 {strides = array<i32>} : memref<32x768xbf16, #tpu.memory_space<vmem>>, vector<32x768xbf16>,
    return
  }
  func.func @transform_0(%arg0: i32) -> (i32, i32) {
    %c0_i32 = arith.constant 0 : i32
    %c0_i32_0 = arith.constant 0 : i32
    return %arg0, %c0_i32 : i32, i32
  }
  func.func @transform_1(%arg0: i32) -> (i32, i32) {
    %c0_i32 = arith.constant 0 : i32
    %c0_i32_0 = arith.constant 0 : i32
    %c0_i32_1 = arith.constant 0 : i32
    return %c0_i32, %c0_i32_0 : i32, i32
  }
  func.func @transform_2(%arg0: i32) -> (i32, i32) {
    %c0_i32 = arith.constant 0 : i32
    %c0_i32_0 = arith.constant 0 : i32
    %c0_i32_1 = arith.constant 0 : i32
    return %c0_i32, %c0_i32_0 : i32, i32
  }
  func.func @transform_3(%arg0: i32) -> (i32, i32) {
    %c0_i32 = arith.constant 0 : i32
    %c0_i32_0 = arith.constant 0 : i32
    return %arg0, %c0_i32 : i32, i32
  }
}

module attributes {stable_mosaic.version = 11 : i64} {
  func.func @_flash_attn_kernel(%arg0: i32, %arg1: i32, %arg2: i32, %arg3: i32, %arg4: memref<16x128xbf16, #tpu.memory_space<vmem>>, %arg5: memref<16x128xbf16, #tpu.memory_space<vmem>>, %arg6: memref<16x128xbf16, #tpu.memory_space<vmem>>, %arg7: memref<16x128xbf16, #tpu.memory_space<vmem>>, %arg8: memref<16x1xf32, #tpu.memory_space<vmem>>, %arg9: memref<16x1xf32, #tpu.memory_space<vmem>>, %arg10: memref<16x128xf32, #tpu.memory_space<vmem>>) attributes {dimension_semantics = [#tpu.dimension_semantics<parallel>, #tpu.dimension_semantics<parallel>, #tpu.dimension_semantics<parallel>, #tpu.dimension_semantics<arbitrary>], iteration_bounds = array<i64: 2, 2, 1, 1>, scalar_prefetch = 0 : i64, scratch_operands = 3 : i64, tpu.core_type = #tpu.core_type<tc>, window_params = [{transform_indices = @transform_0, window_bounds = array<i64: 16, 128>}, {transform_indices = @transform_1, window_bounds = array<i64: 16, 128>}, {transform_indices = @transform_2, window_bounds = array<i64: 16, 128>}, {transform_indices = @transform_3, window_bounds = array<i64: 16, 128>}]} {
    %c0_i32 = arith.constant 0 : i32
    %0 = arith.cmpi eq, %arg3, %c0_i32 : i32
    %1 = arith.extui %0 : i1 to i32
    %c0_i32_0 = arith.constant 0 : i32
    %2 = arith.cmpi ne, %1, %c0_i32_0 : i32
    scf.if %2 {
      %cst_23 = arith.constant 0xFF800000 : f32
      %33 = vector.broadcast %cst_23 : f32 to vector<16x1xf32>
      %c0_24 = arith.constant 0 : index
      %c0_25 = arith.constant 0 : index
      %34 = vector.load %arg8[%c0_24, %c0_25] : memref<16x1xf32, #tpu.memory_space<vmem>>, vector<16x1xf32>
      tpu.vector_store %arg8[%c0_24, %c0_25], %33 {strides = array<i32>} : memref<16x1xf32, #tpu.memory_space<vmem>>, vector<16x1xf32>,
      %cst_26 = arith.constant 0.000000e+00 : f32
      %35 = vector.broadcast %cst_26 : f32 to vector<16x1xf32>
      %c0_27 = arith.constant 0 : index
      %c0_28 = arith.constant 0 : index
      %36 = vector.load %arg9[%c0_27, %c0_28] : memref<16x1xf32, #tpu.memory_space<vmem>>, vector<16x1xf32>
      tpu.vector_store %arg9[%c0_27, %c0_28], %35 {strides = array<i32>} : memref<16x1xf32, #tpu.memory_space<vmem>>, vector<16x1xf32>,
      %cst_29 = arith.constant 0.000000e+00 : f32
      %37 = vector.broadcast %cst_29 : f32 to vector<16x128xf32>
      %c0_30 = arith.constant 0 : index
      %c0_31 = arith.constant 0 : index
      %38 = vector.load %arg10[%c0_30, %c0_31] : memref<16x128xf32, #tpu.memory_space<vmem>>, vector<16x128xf32>
      tpu.vector_store %arg10[%c0_30, %c0_31], %37 {strides = array<i32>} : memref<16x128xf32, #tpu.memory_space<vmem>>, vector<16x128xf32>,
    } else {
    }
    %c0 = arith.constant 0 : index
    %c0_1 = arith.constant 0 : index
    %3 = vector.load %arg4[%c0, %c0_1] : memref<16x128xbf16, #tpu.memory_space<vmem>>, vector<16x128xbf16>
    %c0_2 = arith.constant 0 : index
    %c0_3 = arith.constant 0 : index
    %4 = vector.load %arg5[%c0_2, %c0_3] : memref<16x128xbf16, #tpu.memory_space<vmem>>, vector<16x128xbf16>
    %cst = arith.constant dense<0.000000e+00> : vector<16x16xf32>
    %5 = tpu.matmul %3, %4, %cst {dimension_numbers = #tpu.dot_dimension_numbers<[1], [1], [0], [0], [0, 0, 1, 0], [], []>} : vector<16x128xbf16>, vector<16x128xbf16>, vector<16x16xf32> -> vector<16x16xf32>
    %c0_4 = arith.constant 0 : index
    %c0_5 = arith.constant 0 : index
    %6 = vector.load %arg8[%c0_4, %c0_5] : memref<16x1xf32, #tpu.memory_space<vmem>>, vector<16x1xf32>
    %cst_6 = arith.constant dense<0xFF800000> : vector<16xf32>
    %7 = vector.multi_reduction <maximumf>, %5, %cst_6 [1] : vector<16x16xf32> to vector<16xf32>
    %8 = vector.shape_cast %7 : vector<16xf32> to vector<16x1xf32>
    %9 = arith.maximumf %6, %8 : vector<16x1xf32>
    %10 = arith.subf %6, %9 : vector<16x1xf32>
    %11 = math.exp %10 : vector<16x1xf32>
    %12 = vector.broadcast %9 : vector<16x1xf32> to vector<16x16xf32>
    %13 = arith.subf %5, %12 : vector<16x16xf32>
    %14 = math.exp %13 : vector<16x16xf32>
    %c0_7 = arith.constant 0 : index
    %c0_8 = arith.constant 0 : index
    %15 = vector.load %arg9[%c0_7, %c0_8] : memref<16x1xf32, #tpu.memory_space<vmem>>, vector<16x1xf32>
    %16 = arith.mulf %11, %15 : vector<16x1xf32>
    %cst_9 = arith.constant dense<0.000000e+00> : vector<16xf32>
    %17 = vector.multi_reduction <add>, %14, %cst_9 [1] : vector<16x16xf32> to vector<16xf32>
    %18 = vector.shape_cast %17 : vector<16xf32> to vector<16x1xf32>
    %19 = arith.addf %16, %18 : vector<16x1xf32>
    %c0_10 = arith.constant 0 : index
    %c0_11 = arith.constant 0 : index
    %20 = vector.load %arg9[%c0_10, %c0_11] : memref<16x1xf32, #tpu.memory_space<vmem>>, vector<16x1xf32>
    tpu.vector_store %arg9[%c0_10, %c0_11], %19 {strides = array<i32>} : memref<16x1xf32, #tpu.memory_space<vmem>>, vector<16x1xf32>,
    %c0_12 = arith.constant 0 : index
    %c0_13 = arith.constant 0 : index
    %21 = vector.load %arg10[%c0_12, %c0_13] : memref<16x128xf32, #tpu.memory_space<vmem>>, vector<16x128xf32>
    %22 = vector.broadcast %11 : vector<16x1xf32> to vector<16x128xf32>
    %23 = arith.mulf %22, %21 : vector<16x128xf32>
    %24 = arith.truncf %14 : vector<16x16xf32> to vector<16x16xbf16>
    %c0_14 = arith.constant 0 : index
    %c0_15 = arith.constant 0 : index
    %25 = vector.load %arg6[%c0_14, %c0_15] : memref<16x128xbf16, #tpu.memory_space<vmem>>, vector<16x128xbf16>
    %cst_16 = arith.constant dense<0.000000e+00> : vector<16x128xf32>
    %26 = tpu.matmul %24, %25, %cst_16 {dimension_numbers = #tpu.dot_dimension_numbers<[1], [0], [0], [1], [0, 0, 1, 1], [], []>} : vector<16x16xbf16>, vector<16x128xbf16>, vector<16x128xf32> -> vector<16x128xf32>
    %27 = arith.addf %23, %26 : vector<16x128xf32>
    %c0_17 = arith.constant 0 : index
    %c0_18 = arith.constant 0 : index
    %28 = vector.load %arg10[%c0_17, %c0_18] : memref<16x128xf32, #tpu.memory_space<vmem>>, vector<16x128xf32>
    tpu.vector_store %arg10[%c0_17, %c0_18], %27 {strides = array<i32>} : memref<16x128xf32, #tpu.memory_space<vmem>>, vector<16x128xf32>,
    %c0_19 = arith.constant 0 : index
    %c0_20 = arith.constant 0 : index
    %29 = vector.load %arg8[%c0_19, %c0_20] : memref<16x1xf32, #tpu.memory_space<vmem>>, vector<16x1xf32>
    tpu.vector_store %arg8[%c0_19, %c0_20], %9 {strides = array<i32>} : memref<16x1xf32, #tpu.memory_space<vmem>>, vector<16x1xf32>,
    %c0_i32_21 = arith.constant 0 : i32
    %30 = arith.cmpi eq, %arg3, %c0_i32_21 : i32
    %31 = arith.extui %30 : i1 to i32
    %c0_i32_22 = arith.constant 0 : i32
    %32 = arith.cmpi ne, %31, %c0_i32_22 : i32
    scf.if %32 {
      %c0_23 = arith.constant 0 : index
      %c0_24 = arith.constant 0 : index
      %33 = vector.load %arg10[%c0_23, %c0_24] : memref<16x128xf32, #tpu.memory_space<vmem>>, vector<16x128xf32>
      %c0_25 = arith.constant 0 : index
      %c0_26 = arith.constant 0 : index
      %34 = vector.load %arg9[%c0_25, %c0_26] : memref<16x1xf32, #tpu.memory_space<vmem>>, vector<16x1xf32>
      %35 = vector.broadcast %34 : vector<16x1xf32> to vector<16x128xf32>
      %36 = arith.divf %33, %35 : vector<16x128xf32>
      %37 = arith.truncf %36 : vector<16x128xf32> to vector<16x128xbf16>
      %c0_27 = arith.constant 0 : index
      %c0_28 = arith.constant 0 : index
      %38 = vector.load %arg7[%c0_27, %c0_28] : memref<16x128xbf16, #tpu.memory_space<vmem>>, vector<16x128xbf16>
      tpu.vector_store %arg7[%c0_27, %c0_28], %37 {strides = array<i32>} : memref<16x128xbf16, #tpu.memory_space<vmem>>, vector<16x128xbf16>,
    } else {
    }
    return
  }
  func.func @transform_0(%arg0: i32, %arg1: i32, %arg2: i32, %arg3: i32) -> (i32, i32) {
    %c1_i32 = arith.constant 1 : i32
    %0 = arith.muli %arg0, %c1_i32 : i32
    %1 = arith.addi %0, %arg2 : i32
    %c0_i32 = arith.constant 0 : i32
    return %1, %arg1 : i32, i32
  }
  func.func @transform_1(%arg0: i32, %arg1: i32, %arg2: i32, %arg3: i32) -> (i32, i32) {
    %c1_i32 = arith.constant 1 : i32
    %0 = arith.muli %arg0, %c1_i32 : i32
    %1 = arith.addi %0, %arg3 : i32
    %c2_i32 = arith.constant 2 : i32
    %2 = arith.addi %c2_i32, %arg1 : i32
    %c0_i32 = arith.constant 0 : i32
    return %1, %2 : i32, i32
  }
  func.func @transform_2(%arg0: i32, %arg1: i32, %arg2: i32, %arg3: i32) -> (i32, i32) {
    %c1_i32 = arith.constant 1 : i32
    %0 = arith.muli %arg0, %c1_i32 : i32
    %1 = arith.addi %0, %arg3 : i32
    %c4_i32 = arith.constant 4 : i32
    %2 = arith.addi %c4_i32, %arg1 : i32
    %c0_i32 = arith.constant 0 : i32
    return %1, %2 : i32, i32
  }
  func.func @transform_3(%arg0: i32, %arg1: i32, %arg2: i32, %arg3: i32) -> (i32, i32) {
    %c1_i32 = arith.constant 1 : i32
    %0 = arith.muli %arg0, %c1_i32 : i32
    %1 = arith.addi %0, %arg2 : i32
    %c0_i32 = arith.constant 0 : i32
    return %1, %arg1 : i32, i32
  }
}

module attributes {stable_mosaic.version = 11 : i64} {
  func.func @_out_ffn_kernel(%arg0: i32, %arg1: memref<32x256xf32, #tpu.memory_space<vmem>>, %arg2: memref<32x256xbf16, #tpu.memory_space<vmem>>, %arg3: memref<256x256xbf16, #tpu.memory_space<vmem>>, %arg4: memref<1x256xf32, #tpu.memory_space<vmem>>, %arg5: memref<1x256xf32, #tpu.memory_space<vmem>>, %arg6: memref<1x256xf32, #tpu.memory_space<vmem>>, %arg7: memref<256x512xbf16, #tpu.memory_space<vmem>>, %arg8: memref<1x512xf32, #tpu.memory_space<vmem>>, %arg9: memref<512x256xbf16, #tpu.memory_space<vmem>>, %arg10: memref<1x256xf32, #tpu.memory_space<vmem>>, %arg11: memref<1x256xf32, #tpu.memory_space<vmem>>, %arg12: memref<1x256xf32, #tpu.memory_space<vmem>>, %arg13: memref<32x256xf32, #tpu.memory_space<vmem>>) attributes {dimension_semantics = [#tpu.dimension_semantics<parallel>], iteration_bounds = array<i64: 1>, scalar_prefetch = 0 : i64, scratch_operands = 0 : i64, tpu.core_type = #tpu.core_type<tc>, window_params = [{transform_indices = @transform_0, window_bounds = array<i64: 32, 256>}, {transform_indices = @transform_1, window_bounds = array<i64: 32, 256>}, {pipeline_mode = #tpu.pipeline_mode<synchronous>, transform_indices = @transform_2, window_bounds = array<i64: 256, 256>}, {pipeline_mode = #tpu.pipeline_mode<synchronous>, transform_indices = @transform_3, window_bounds = array<i64: 1, 256>}, {pipeline_mode = #tpu.pipeline_mode<synchronous>, transform_indices = @transform_4, window_bounds = array<i64: 1, 256>}, {pipeline_mode = #tpu.pipeline_mode<synchronous>, transform_indices = @transform_5, window_bounds = array<i64: 1, 256>}, {pipeline_mode = #tpu.pipeline_mode<synchronous>, transform_indices = @transform_6, window_bounds = array<i64: 256, 512>}, {pipeline_mode = #tpu.pipeline_mode<synchronous>, transform_indices = @transform_7, window_bounds = array<i64: 1, 512>}, {pipeline_mode = #tpu.pipeline_mode<synchronous>, transform_indices = @transform_8, window_bounds = array<i64: 512, 256>}, {pipeline_mode = #tpu.pipeline_mode<synchronous>, transform_indices = @transform_9, window_bounds = array<i64: 1, 256>}, {pipeline_mode = #tpu.pipeline_mode<synchronous>, transform_indices = @transform_10, window_bounds = array<i64: 1, 256>}, {pipeline_mode = #tpu.pipeline_mode<synchronous>, transform_indices = @transform_11, window_bounds = array<i64: 1, 256>}, {transform_indices = @transform_12, window_bounds = array<i64: 32, 256>}]} {
    %c0 = arith.constant 0 : index
    %c0_0 = arith.constant 0 : index
    %0 = vector.load %arg1[%c0, %c0_0] : memref<32x256xf32, #tpu.memory_space<vmem>>, vector<32x256xf32>
    %c0_1 = arith.constant 0 : index
    %c0_2 = arith.constant 0 : index
    %1 = vector.load %arg2[%c0_1, %c0_2] : memref<32x256xbf16, #tpu.memory_space<vmem>>, vector<32x256xbf16>
    %c0_3 = arith.constant 0 : index
    %c0_4 = arith.constant 0 : index
    %2 = vector.load %arg3[%c0_3, %c0_4] : memref<256x256xbf16, #tpu.memory_space<vmem>>, vector<256x256xbf16>
    %cst = arith.constant dense<0.000000e+00> : vector<32x256xf32>
    %3 = tpu.matmul %1, %2, %cst {dimension_numbers = #tpu.dot_dimension_numbers<[1], [0], [0], [1], [0, 0, 1, 1], [], []>} : vector<32x256xbf16>, vector<256x256xbf16>, vector<32x256xf32> -> vector<32x256xf32>
    %c0_5 = arith.constant 0 : index
    %c0_6 = arith.constant 0 : index
    %4 = vector.load %arg4[%c0_5, %c0_6] : memref<1x256xf32, #tpu.memory_space<vmem>>, vector<1x256xf32>
    %5 = vector.broadcast %4 : vector<1x256xf32> to vector<32x256xf32>
    %6 = arith.addf %3, %5 : vector<32x256xf32>
    %7 = arith.addf %0, %6 : vector<32x256xf32>
    %c0_7 = arith.constant 0 : index
    %c0_8 = arith.constant 0 : index
    %8 = vector.load %arg5[%c0_7, %c0_8] : memref<1x256xf32, #tpu.memory_space<vmem>>, vector<1x256xf32>
    %c0_9 = arith.constant 0 : index
    %c0_10 = arith.constant 0 : index
    %9 = vector.load %arg6[%c0_9, %c0_10] : memref<1x256xf32, #tpu.memory_space<vmem>>, vector<1x256xf32>
    %cst_11 = arith.constant dense<0.000000e+00> : vector<32xf32>
    %10 = vector.multi_reduction <add>, %7, %cst_11 [1] : vector<32x256xf32> to vector<32xf32>
    %11 = vector.shape_cast %10 : vector<32xf32> to vector<32x1xf32>
    %cst_12 = arith.constant 2.560000e+02 : f32
    %12 = vector.broadcast %cst_12 : f32 to vector<32x1xf32>
    %13 = arith.divf %11, %12 : vector<32x1xf32>
    %14 = vector.broadcast %13 : vector<32x1xf32> to vector<32x256xf32>
    %15 = arith.subf %7, %14 : vector<32x256xf32>
    %16 = arith.mulf %15, %15 : vector<32x256xf32>
    %cst_13 = arith.constant dense<0.000000e+00> : vector<32xf32>
    %17 = vector.multi_reduction <add>, %16, %cst_13 [1] : vector<32x256xf32> to vector<32xf32>
    %18 = vector.shape_cast %17 : vector<32xf32> to vector<32x1xf32>
    %cst_14 = arith.constant 2.560000e+02 : f32
    %19 = vector.broadcast %cst_14 : f32 to vector<32x1xf32>
    %20 = arith.divf %18, %19 : vector<32x1xf32>
    %cst_15 = arith.constant 9.99999974E-6 : f32
    %21 = vector.broadcast %cst_15 : f32 to vector<32x1xf32>
    %22 = arith.addf %20, %21 : vector<32x1xf32>
    %23 = math.rsqrt %22 : vector<32x1xf32>
    %24 = vector.broadcast %23 : vector<32x1xf32> to vector<32x256xf32>
    %25 = arith.mulf %15, %24 : vector<32x256xf32>
    %26 = vector.broadcast %8 : vector<1x256xf32> to vector<32x256xf32>
    %27 = arith.mulf %25, %26 : vector<32x256xf32>
    %28 = vector.broadcast %9 : vector<1x256xf32> to vector<32x256xf32>
    %29 = arith.addf %27, %28 : vector<32x256xf32>
    %30 = arith.truncf %29 : vector<32x256xf32> to vector<32x256xbf16>
    %c0_16 = arith.constant 0 : index
    %c0_17 = arith.constant 0 : index
    %31 = vector.load %arg7[%c0_16, %c0_17] : memref<256x512xbf16, #tpu.memory_space<vmem>>, vector<256x512xbf16>
    %cst_18 = arith.constant dense<0.000000e+00> : vector<32x512xf32>
    %32 = tpu.matmul %30, %31, %cst_18 {dimension_numbers = #tpu.dot_dimension_numbers<[1], [0], [0], [1], [0, 0, 1, 1], [], []>} : vector<32x256xbf16>, vector<256x512xbf16>, vector<32x512xf32> -> vector<32x512xf32>
    %c0_19 = arith.constant 0 : index
    %c0_20 = arith.constant 0 : index
    %33 = vector.load %arg8[%c0_19, %c0_20] : memref<1x512xf32, #tpu.memory_space<vmem>>, vector<1x512xf32>
    %34 = vector.broadcast %33 : vector<1x512xf32> to vector<32x512xf32>
    %35 = arith.addf %32, %34 : vector<32x512xf32>
    %cst_21 = arith.constant 5.000000e-01 : f32
    %36 = vector.broadcast %cst_21 : f32 to vector<32x512xf32>
    %37 = arith.mulf %36, %35 : vector<32x512xf32>
    %cst_22 = arith.constant 4.471500e-02 : f32
    %38 = vector.broadcast %cst_22 : f32 to vector<32x512xf32>
    %39 = arith.mulf %38, %35 : vector<32x512xf32>
    %40 = arith.mulf %39, %35 : vector<32x512xf32>
    %41 = arith.mulf %40, %35 : vector<32x512xf32>
    %42 = arith.addf %35, %41 : vector<32x512xf32>
    %cst_23 = arith.constant 0.797884583 : f32
    %43 = vector.broadcast %cst_23 : f32 to vector<32x512xf32>
    %44 = arith.mulf %43, %42 : vector<32x512xf32>
    %45 = math.tanh %44 : vector<32x512xf32>
    %cst_24 = arith.constant 1.000000e+00 : f32
    %46 = vector.broadcast %cst_24 : f32 to vector<32x512xf32>
    %47 = arith.addf %46, %45 : vector<32x512xf32>
    %48 = arith.mulf %37, %47 : vector<32x512xf32>
    %49 = arith.truncf %48 : vector<32x512xf32> to vector<32x512xbf16>
    %c0_25 = arith.constant 0 : index
    %c0_26 = arith.constant 0 : index
    %50 = vector.load %arg9[%c0_25, %c0_26] : memref<512x256xbf16, #tpu.memory_space<vmem>>, vector<512x256xbf16>
    %cst_27 = arith.constant dense<0.000000e+00> : vector<32x256xf32>
    %51 = tpu.matmul %49, %50, %cst_27 {dimension_numbers = #tpu.dot_dimension_numbers<[1], [0], [0], [1], [0, 0, 1, 1], [], []>} : vector<32x512xbf16>, vector<512x256xbf16>, vector<32x256xf32> -> vector<32x256xf32>
    %c0_28 = arith.constant 0 : index
    %c0_29 = arith.constant 0 : index
    %52 = vector.load %arg10[%c0_28, %c0_29] : memref<1x256xf32, #tpu.memory_space<vmem>>, vector<1x256xf32>
    %53 = vector.broadcast %52 : vector<1x256xf32> to vector<32x256xf32>
    %54 = arith.addf %51, %53 : vector<32x256xf32>
    %55 = arith.addf %29, %54 : vector<32x256xf32>
    %c0_30 = arith.constant 0 : index
    %c0_31 = arith.constant 0 : index
    %56 = vector.load %arg11[%c0_30, %c0_31] : memref<1x256xf32, #tpu.memory_space<vmem>>, vector<1x256xf32>
    %c0_32 = arith.constant 0 : index
    %c0_33 = arith.constant 0 : index
    %57 = vector.load %arg12[%c0_32, %c0_33] : memref<1x256xf32, #tpu.memory_space<vmem>>, vector<1x256xf32>
    %cst_34 = arith.constant dense<0.000000e+00> : vector<32xf32>
    %58 = vector.multi_reduction <add>, %55, %cst_34 [1] : vector<32x256xf32> to vector<32xf32>
    %59 = vector.shape_cast %58 : vector<32xf32> to vector<32x1xf32>
    %cst_35 = arith.constant 2.560000e+02 : f32
    %60 = vector.broadcast %cst_35 : f32 to vector<32x1xf32>
    %61 = arith.divf %59, %60 : vector<32x1xf32>
    %62 = vector.broadcast %61 : vector<32x1xf32> to vector<32x256xf32>
    %63 = arith.subf %55, %62 : vector<32x256xf32>
    %64 = arith.mulf %63, %63 : vector<32x256xf32>
    %cst_36 = arith.constant dense<0.000000e+00> : vector<32xf32>
    %65 = vector.multi_reduction <add>, %64, %cst_36 [1] : vector<32x256xf32> to vector<32xf32>
    %66 = vector.shape_cast %65 : vector<32xf32> to vector<32x1xf32>
    %cst_37 = arith.constant 2.560000e+02 : f32
    %67 = vector.broadcast %cst_37 : f32 to vector<32x1xf32>
    %68 = arith.divf %66, %67 : vector<32x1xf32>
    %cst_38 = arith.constant 9.99999974E-6 : f32
    %69 = vector.broadcast %cst_38 : f32 to vector<32x1xf32>
    %70 = arith.addf %68, %69 : vector<32x1xf32>
    %71 = math.rsqrt %70 : vector<32x1xf32>
    %72 = vector.broadcast %71 : vector<32x1xf32> to vector<32x256xf32>
    %73 = arith.mulf %63, %72 : vector<32x256xf32>
    %74 = vector.broadcast %56 : vector<1x256xf32> to vector<32x256xf32>
    %75 = arith.mulf %73, %74 : vector<32x256xf32>
    %76 = vector.broadcast %57 : vector<1x256xf32> to vector<32x256xf32>
    %77 = arith.addf %75, %76 : vector<32x256xf32>
    %c0_39 = arith.constant 0 : index
    %c0_40 = arith.constant 0 : index
    %78 = vector.load %arg13[%c0_39, %c0_40] : memref<32x256xf32, #tpu.memory_space<vmem>>, vector<32x256xf32>
    tpu.vector_store %arg13[%c0_39, %c0_40], %77 {strides = array<i32>} : memref<32x256xf32, #tpu.memory_space<vmem>>, vector<32x256xf32>,
    return
  }
  func.func @transform_0(%arg0: i32) -> (i32, i32) {
    %c0_i32 = arith.constant 0 : i32
    %c0_i32_0 = arith.constant 0 : i32
    return %arg0, %c0_i32 : i32, i32
  }
  func.func @transform_1(%arg0: i32) -> (i32, i32) {
    %c0_i32 = arith.constant 0 : i32
    %c0_i32_0 = arith.constant 0 : i32
    return %arg0, %c0_i32 : i32, i32
  }
  func.func @transform_2(%arg0: i32) -> (i32, i32) {
    %c0_i32 = arith.constant 0 : i32
    %c0_i32_0 = arith.constant 0 : i32
    %c0_i32_1 = arith.constant 0 : i32
    return %c0_i32, %c0_i32_0 : i32, i32
  }
  func.func @transform_3(%arg0: i32) -> (i32, i32) {
    %c0_i32 = arith.constant 0 : i32
    %c0_i32_0 = arith.constant 0 : i32
    %c0_i32_1 = arith.constant 0 : i32
    return %c0_i32, %c0_i32_0 : i32, i32
  }
  func.func @transform_4(%arg0: i32) -> (i32, i32) {
    %c0_i32 = arith.constant 0 : i32
    %c0_i32_0 = arith.constant 0 : i32
    %c0_i32_1 = arith.constant 0 : i32
    return %c0_i32, %c0_i32_0 : i32, i32
  }
  func.func @transform_5(%arg0: i32) -> (i32, i32) {
    %c0_i32 = arith.constant 0 : i32
    %c0_i32_0 = arith.constant 0 : i32
    %c0_i32_1 = arith.constant 0 : i32
    return %c0_i32, %c0_i32_0 : i32, i32
  }
  func.func @transform_6(%arg0: i32) -> (i32, i32) {
    %c0_i32 = arith.constant 0 : i32
    %c0_i32_0 = arith.constant 0 : i32
    %c0_i32_1 = arith.constant 0 : i32
    return %c0_i32, %c0_i32_0 : i32, i32
  }
  func.func @transform_7(%arg0: i32) -> (i32, i32) {
    %c0_i32 = arith.constant 0 : i32
    %c0_i32_0 = arith.constant 0 : i32
    %c0_i32_1 = arith.constant 0 : i32
    return %c0_i32, %c0_i32_0 : i32, i32
  }
  func.func @transform_8(%arg0: i32) -> (i32, i32) {
    %c0_i32 = arith.constant 0 : i32
    %c0_i32_0 = arith.constant 0 : i32
    %c0_i32_1 = arith.constant 0 : i32
    return %c0_i32, %c0_i32_0 : i32, i32
  }
  func.func @transform_9(%arg0: i32) -> (i32, i32) {
    %c0_i32 = arith.constant 0 : i32
    %c0_i32_0 = arith.constant 0 : i32
    %c0_i32_1 = arith.constant 0 : i32
    return %c0_i32, %c0_i32_0 : i32, i32
  }
  func.func @transform_10(%arg0: i32) -> (i32, i32) {
    %c0_i32 = arith.constant 0 : i32
    %c0_i32_0 = arith.constant 0 : i32
    %c0_i32_1 = arith.constant 0 : i32
    return %c0_i32, %c0_i32_0 : i32, i32
  }
  func.func @transform_11(%arg0: i32) -> (i32, i32) {
    %c0_i32 = arith.constant 0 : i32
    %c0_i32_0 = arith.constant 0 : i32
    %c0_i32_1 = arith.constant 0 : i32
    return %c0_i32, %c0_i32_0 : i32, i32
  }
  func.func @transform_12(%arg0: i32) -> (i32, i32) {
    %c0_i32 = arith.constant 0 : i32
    %c0_i32_0 = arith.constant 0 : i32
    return %arg0, %c0_i32 : i32, i32
  }
}

</mosaic_0001>

<llo_original>
// kernel: transformer_block.4
$region0: #{transformer_block.4}
  #allocation0 [shape = 'u32[]', space=smem, size = 0x4, offset = 0x4, fixed_abs, tag = 'smem constant byte address 0x4 - core index']
  #allocation1 [shape = 'u32[144,128]{1,0:T(1,128)}', space=vmem, size = 0x12000, scoped, tag = 'internal scratch']
  #allocation2 [shape = 'f32[16,1]{1,0:T(8,128)}', space=vmem, size = 0x2000, scoped, tag = 'scratch operand']
  #allocation3 [shape = 'f32[16,1]{1,0:T(8,128)}', space=vmem, size = 0x2000, scoped, tag = 'scratch operand']
  #allocation4 [shape = 'f32[16,128]{1,0:T(8,128)}', space=vmem, size = 0x2000, scoped, tag = 'scratch operand']
  %s0 = inlined_call_operand.vmem [shape: bf16[32,768], index: 0, kind: input, shape index: {}, may-alias: {0,1,2}]
  %s1 = inlined_call_operand.vmem [shape: bf16[32,768], index: 1, kind: input, shape index: {}, may-alias: {0,1,2}]
  %s2 = inlined_call_operand.vmem [shape: bf16[32,768], index: 2, kind: input, shape index: {}, may-alias: {0,1,2}]
  %s3 = inlined_call_operand.vmem [shape: bf16[32,256], index: 3, kind: output, shape index: {}]
  %s4 = sld [smem:[#allocation0]]
  $region213: #{transformer_block.4} parent=0
    _
  %s6 = ssub.s32 1, %s4
  %s7 = scalar_select 0, %s6, %s4
  $region1: #{transformer_block.4} parent=0
    #allocation5 [shape = 'u8[8192]{0}', space=vmem, size = 0x2000, scoped, tag = 'input window, operand 0']
    #allocation6 [shape = 'u8[8192]{0}', space=vmem, size = 0x2000, scoped, tag = 'input window, operand 1']
    #allocation7 [shape = 'u8[8192]{0}', space=vmem, size = 0x2000, scoped, tag = 'input window, operand 2']
    #allocation8 [shape = 'u8[8192]{0}', space=vmem, size = 0x2000, scoped, tag = 'output window, operand 0']
    loop: start=0, step=1, limit=6
    $region2: #{transformer_block.4} parent=1 // loop_pre_header
      _
    $region3: #{transformer_block.4} parent=1 // loop_header
      %s9 = sphi 0, %s13
      %p10 = scmp.ge.s32.totalorder %s9, 6
      %s16 = sphi 0, %s42
      %s17 = sphi 0, %s38
      %s18 = sphi 0, %s34
      %s19 = sphi 0, %s30
      %s20 = sphi 0, %s16
      %s21 = sphi 0, %s17
      %s22 = sphi 0, %s18
      %s23 = sphi 0, %s19
      %s24 = sphi 0, %s20
      %s25 = sphi 0, %s21
      %s26 = sphi 0, %s22
      %s27 = sphi 0, %s23
      %s49 = sphi 0, %s51
      %s52 = sphi 0, %s49
      %s53 = sphi 0, %s52
      %s69 = sphi 0, %s53
      %s81 = sphi 0, %s83
      %s84 = sphi 0, %s81
      %s85 = sphi 0, %s84
      %s101 = sphi 0, %s85
      %s113 = sphi 0, %s115
      %s116 = sphi 0, %s113
      %s117 = sphi 0, %s116
      %s133 = sphi 0, %s117
      %s143 = sphi 0, %s145
      %s146 = sphi 0, %s143
      %s147 = sphi 0, %s146
      %s163 = sphi 0, %s147
    $region4: #{transformer_block.4} parent=1 // loop_header_branch
      %12 = sbr.rel (%p10) target = $region8
    $region5: #{transformer_block.4} parent=1 // loop_body
      %s14 = ssub.s32 %s9, 1
      %s15 = ssub.s32 %s9, 2
      %s28 = sadd.s32 1, %s19
      %p29 = scmp.ge.s32.totalorder %s28, 1
      %s30 = scalar_select %p29, 0, %s28
      %s31 = sadd.s32 1, %s18
      %s32 = scalar_select %p29, %s31, %s18
      %p33 = scmp.ge.s32.totalorder %s32, 1
      %s34 = scalar_select %p33, 0, %s32
      %s35 = sadd.s32 1, %s17
      %s36 = scalar_select %p33, %s35, %s17
      %p37 = scmp.ge.s32.totalorder %s36, 2
      %s38 = scalar_select %p37, 0, %s36
      %s39 = sadd.s32 1, %s16
      %s40 = scalar_select %p37, %s39, %s16
      %p41 = scmp.ge.s32.totalorder %s40, 2
      %s42 = scalar_select %p41, 0, %s40
      %s43 = sadd.s32 %s16, %s18
      %s44 = sadd.s32 %s42, %s34
      %s45 = ssub.s32 %s43, %s44
      %s46 = ssub.s32 %s17, %s38
      %s47 = sor.u32 %s45, %s46
      %p48 = scmp.eq.s32.totalorder %s47, 0
      %s50 = sadd.s32 %s49, 1
      %s51 = scalar_select %p48, %s49, %s50
      %p54 = pneg %p48
      %p55 = scmp.eq.s32.totalorder %s9, 3
      %p56 = por %p54, %p55
      %p57 = scmp.ne.s32.totalorder %s49, %s52
      %p58 = scmp.eq.s32.totalorder %s9, 0
      %p59 = por %p57, %p58
      %p60 = scmp.ne.s32.totalorder %s49, %s52
      %p61 = scmp.eq.s32.totalorder %s14, 3
      %p62 = por %p60, %p61
      %p63 = scmp.ne.s32.totalorder %s52, %s53
      %p64 = scmp.eq.s32.totalorder %s14, 0
      %p65 = por %p63, %p64
      %p66 = scmp.ne.s32.totalorder %s52, %s53
      %p67 = scmp.eq.s32.totalorder %s15, 3
      %p68 = por %p66, %p67
      %p70 = scmp.ne.s32.totalorder %s53, %s69
      %p71 = scmp.eq.s32.totalorder %s15, 0
      %p72 = por %p70, %p71
      %s73 = sadd.s32 %s16, %s19
      %s74 = sadd.s32 %s17, 2
      %s75 = sadd.s32 %s42, %s30
      %s76 = sadd.s32 %s38, 2
      %s77 = ssub.s32 %s73, %s75
      %s78 = ssub.s32 %s74, %s76
      %s79 = sor.u32 %s77, %s78
      %p80 = scmp.eq.s32.totalorder %s79, 0
      %s82 = sadd.s32 %s81, 1
      %s83 = scalar_select %p80, %s81, %s82
      %p86 = pneg %p80
      %p87 = scmp.eq.s32.totalorder %s9, 3
      %p88 = por %p86, %p87
      %p89 = scmp.ne.s32.totalorder %s81, %s84
      %p90 = scmp.eq.s32.totalorder %s9, 0
      %p91 = por %p89, %p90
      %p92 = scmp.ne.s32.totalorder %s81, %s84
      %p93 = scmp.eq.s32.totalorder %s14, 3
      %p94 = por %p92, %p93
      %p95 = scmp.ne.s32.totalorder %s84, %s85
      %p96 = scmp.eq.s32.totalorder %s14, 0
      %p97 = por %p95, %p96
      %p98 = scmp.ne.s32.totalorder %s84, %s85
      %p99 = scmp.eq.s32.totalorder %s15, 3
      %p100 = por %p98, %p99
      %p102 = scmp.ne.s32.totalorder %s85, %s101
      %p103 = scmp.eq.s32.totalorder %s15, 0
      %p104 = por %p102, %p103
      %s105 = sadd.s32 %s16, %s19
      %s106 = sadd.s32 %s17, 4
      %s107 = sadd.s32 %s42, %s30
      %s108 = sadd.s32 %s38, 4
      %s109 = ssub.s32 %s105, %s107
      %s110 = ssub.s32 %s106, %s108
      %s111 = sor.u32 %s109, %s110
      %p112 = scmp.eq.s32.totalorder %s111, 0
      %s114 = sadd.s32 %s113, 1
      %s115 = scalar_select %p112, %s113, %s114
      %p118 = pneg %p112
      %p119 = scmp.eq.s32.totalorder %s9, 3
      %p120 = por %p118, %p119
      %p121 = scmp.ne.s32.totalorder %s113, %s116
      %p122 = scmp.eq.s32.totalorder %s9, 0
      %p123 = por %p121, %p122
      %p124 = scmp.ne.s32.totalorder %s113, %s116
      %p125 = scmp.eq.s32.totalorder %s14, 3
      %p126 = por %p124, %p125
      %p127 = scmp.ne.s32.totalorder %s116, %s117
      %p128 = scmp.eq.s32.totalorder %s14, 0
      %p129 = por %p127, %p128
      %p130 = scmp.ne.s32.totalorder %s116, %s117
      %p131 = scmp.eq.s32.totalorder %s15, 3
      %p132 = por %p130, %p131
      %p134 = scmp.ne.s32.totalorder %s117, %s133
      %p135 = scmp.eq.s32.totalorder %s15, 0
      %p136 = por %p134, %p135
      %s137 = sadd.s32 %s16, %s18
      %s138 = sadd.s32 %s42, %s34
      %s139 = ssub.s32 %s137, %s138
      %s140 = ssub.s32 %s17, %s38
      %s141 = sor.u32 %s139, %s140
      %p142 = scmp.eq.s32.totalorder %s141, 0
      %s144 = sadd.s32 %s143, 1
      %s145 = scalar_select %p142, %s143, %s144
      %p148 = pneg %p142
      %p149 = scmp.eq.s32.totalorder %s9, 3
      %p150 = por %p148, %p149
      %p151 = scmp.ne.s32.totalorder %s143, %s146
      %p152 = scmp.eq.s32.totalorder %s9, 0
      %p153 = por %p151, %p152
      %p154 = scmp.ne.s32.totalorder %s143, %s146
      %p155 = scmp.eq.s32.totalorder %s14, 3
      %p156 = por %p154, %p155
      %p157 = scmp.ne.s32.totalorder %s146, %s147
      %p158 = scmp.eq.s32.totalorder %s14, 0
      %p159 = por %p157, %p158
      %p160 = scmp.ne.s32.totalorder %s146, %s147
      %p161 = scmp.eq.s32.totalorder %s15, 3
      %p162 = por %p160, %p161
      %p164 = scmp.ne.s32.totalorder %s147, %s163
      %p165 = scmp.eq.s32.totalorder %s15, 0
      %p166 = por %p164, %p165
      %p167 = scmp.le.s32.totalorder 1, %s9
      %p168 = scmp.lt.s32.totalorder %s9, 5
      %p169 = pnand %p167, %p168
      %p170 = pneg %p169
      // Predicated region
      $region9: #{transformer_block.4} parent=5 // pred_check
        _
      $region10: #{transformer_block.4} parent=5 // pred_check_branch
        %172 = sbr.rel (%p169) target = $region12
      $region11: #{transformer_block.4} parent=5 // pred_region
        %s173 = ssub.s32 %s9, 1
      $region12: #{transformer_block.4} parent=5 // pred_fallthru
        _
      %p174 = scmp.lt.s32.totalorder %s9, 4
      // Predicated region
      $region13: #{transformer_block.4} parent=5 // pred_check
        %p175 = pneg %p174
      $region14: #{transformer_block.4} parent=5 // pred_check_branch
        %177 = sbr.rel (%p175) target = $region16
      $region15: #{transformer_block.4} parent=5 // pred_region
        // Predicated region
        $region17: #{transformer_block.4} parent=15 // pred_check
          %p178 = pneg %p59
        $region18: #{transformer_block.4} parent=15 // pred_check_branch
          %180 = sbr.rel (%p178) target = $region20
        $region19: #{transformer_block.4} parent=15 // pred_region
          %s181 = sand.u32 %s49, 1
          %s182 = sand.u32 %s49, 1
          %s183 = smul.addr %s182, 8
          %s184 = scalar_lea.vmem [#allocation5], %s183
          %s185 = sadd.s32 %s16, %s18
          %s186 = smul.u32 2, %s185
          %s187 = smul.addr %s186, 6
          %s188 = sadd.s32 %s17, %s187
          %s189 = smul.addr %s188, 4
          %s190 = scalar_lea.vmem %s0, %s189
          // Predicated region
          $region21: #{transformer_block.4} parent=19 // pred_check
            _
          $region22: #{transformer_block.4} parent=19 // pred_check_branch
            %192 = sbr.rel (0) target = $region24
          $region23: #{transformer_block.4} parent=19 // pred_region
            // Predicated region
            $region25: #{transformer_block.4} parent=23 // pred_check
              _
            $region26: #{transformer_block.4} parent=23 // pred_check_branch
              %194 = sbr.rel target = $region28
            $region27: #{transformer_block.4} parent=23 // pred_region
              // Predicated region
              $region40: #{transformer_block.4} parent=27 // pred_check
                _
              $region41: #{transformer_block.4} parent=27 // pred_check_branch
                %211 = sbr.rel (0) target = $region43
              $region42: #{transformer_block.4} parent=27 // pred_region
                loop: start=0, step=1, limit=1
                $region44: #{transformer_block.4} parent=42 // loop_pre_header
                  _
                $region45: #{transformer_block.4} parent=42 // loop_header
                  %s213 = sphi 0, %s217
                  %p214 = scmp.ge.s32.totalorder %s213, 1
                  %s218 = sphi %s190, %s190
                  %s219 = sphi %s184, %s184
                $region46: #{transformer_block.4} parent=42 // loop_header_branch
                  %216 = sbr.rel (%p214) target = $region50
                $region47: #{transformer_block.4} parent=42 // loop_body
                  _
                $region48: #{transformer_block.4} parent=42 // loop_footer
                  %s217 = sadd.s32 1, %s213
                $region49: #{transformer_block.4} parent=42 // loop_footer_branch
                  %212 = sbr.rel target = $region45
                $region50: #{transformer_block.4} parent=42 // loop_exit
                  _
                loop: start=0, step=1, limit=1
                $region51: #{transformer_block.4} parent=42 // loop_pre_header
                  _
                $region52: #{transformer_block.4} parent=42 // loop_header
                  %s222 = sphi 0, %s226
                  %p223 = scmp.ge.s32.totalorder %s222, 1
                  %s227 = sphi %s190, %s190
                  %s228 = sphi %s184, %s184
                $region53: #{transformer_block.4} parent=42 // loop_header_branch
                  %225 = sbr.rel (%p223) target = $region57
                $region54: #{transformer_block.4} parent=42 // loop_body
                  %v229 = vld [vmem:[%s227] sm:$0xf]
                  %230 = vst [vmem:[%s228] sm:$0xf] %v229
                  %v231 = vld [vmem:[%s227 + $0x18] sm:$0xf]
                  %232 = vst [vmem:[%s228 + $0x4] sm:$0xf] %v231
                $region55: #{transformer_block.4} parent=42 // loop_footer
                  %s226 = sadd.s32 1, %s222
                $region56: #{transformer_block.4} parent=42 // loop_footer_branch
                  %221 = sbr.rel target = $region52
                $region57: #{transformer_block.4} parent=42 // loop_exit
                  _
              $region43: #{transformer_block.4} parent=27 // pred_fallthru
                _
            $region28: #{transformer_block.4} parent=23 // pred_fallthru
              _
            // Predicated region
            $region29: #{transformer_block.4} parent=23 // pred_check
              _
            $region30: #{transformer_block.4} parent=23 // pred_check_branch
              %196 = sbr.rel (0) target = $region32
            $region31: #{transformer_block.4} parent=23 // pred_region
              loop: start=0, step=1, limit=1
              $region33: #{transformer_block.4} parent=31 // loop_pre_header
                _
              $region34: #{transformer_block.4} parent=31 // loop_header
                %s199 = sphi 0, %s203
                %p200 = scmp.ge.s32.totalorder %s199, 1
                %s204 = sphi %s190, %s190
                %s205 = sphi %s184, %s184
              $region35: #{transformer_block.4} parent=31 // loop_header_branch
                %202 = sbr.rel (%p200) target = $region39
              $region36: #{transformer_block.4} parent=31 // loop_body
                %v206 = vld [vmem:[%s204] sm:$0xf]
                %207 = vst [vmem:[%s205] sm:$0xf] %v206
                %v208 = vld [vmem:[%s204 + $0x18] sm:$0xf]
                %209 = vst [vmem:[%s205 + $0x4] sm:$0xf] %v208
              $region37: #{transformer_block.4} parent=31 // loop_footer
                %s203 = sadd.s32 1, %s199
              $region38: #{transformer_block.4} parent=31 // loop_footer_branch
                %198 = sbr.rel target = $region34
              $region39: #{transformer_block.4} parent=31 // loop_exit
                _
            $region32: #{transformer_block.4} parent=23 // pred_fallthru
              _
          $region24: #{transformer_block.4} parent=19 // pred_fallthru
            _
          %233 = vnop
        $region20: #{transformer_block.4} parent=15 // pred_fallthru
          _
        // Predicated region
        $region58: #{transformer_block.4} parent=15 // pred_check
          %p234 = pneg %p91
        $region59: #{transformer_block.4} parent=15 // pred_check_branch
          %236 = sbr.rel (%p234) target = $region61
        $region60: #{transformer_block.4} parent=15 // pred_region
          %s237 = sand.u32 %s81, 1
          %s238 = sand.u32 %s81, 1
          %s239 = smul.addr %s238, 8
          %s240 = scalar_lea.vmem [#allocation6], %s239
          %s241 = sadd.s32 %s16, %s19
          %s242 = sadd.s32 %s17, 2
          %s243 = smul.u32 2, %s241
          %s244 = smul.addr %s243, 6
          %s245 = sadd.s32 %s242, %s244
          %s246 = smul.addr %s245, 4
          %s247 = scalar_lea.vmem %s1, %s246
          // Predicated region
          $region62: #{transformer_block.4} parent=60 // pred_check
            _
          $region63: #{transformer_block.4} parent=60 // pred_check_branch
            %249 = sbr.rel (0) target = $region65
          $region64: #{transformer_block.4} parent=60 // pred_region
            // Predicated region
            $region66: #{transformer_block.4} parent=64 // pred_check
              _
            $region67: #{transformer_block.4} parent=64 // pred_check_branch
              %251 = sbr.rel target = $region69
            $region68: #{transformer_block.4} parent=64 // pred_region
              // Predicated region
              $region81: #{transformer_block.4} parent=68 // pred_check
                _
              $region82: #{transformer_block.4} parent=68 // pred_check_branch
                %268 = sbr.rel (0) target = $region84
              $region83: #{transformer_block.4} parent=68 // pred_region
                loop: start=0, step=1, limit=1
                $region85: #{transformer_block.4} parent=83 // loop_pre_header
                  _
                $region86: #{transformer_block.4} parent=83 // loop_header
                  %s270 = sphi 0, %s274
                  %p271 = scmp.ge.s32.totalorder %s270, 1
                  %s275 = sphi %s247, %s247
                  %s276 = sphi %s240, %s240
                $region87: #{transformer_block.4} parent=83 // loop_header_branch
                  %273 = sbr.rel (%p271) target = $region91
                $region88: #{transformer_block.4} parent=83 // loop_body
                  _
                $region89: #{transformer_block.4} parent=83 // loop_footer
                  %s274 = sadd.s32 1, %s270
                $region90: #{transformer_block.4} parent=83 // loop_footer_branch
                  %269 = sbr.rel target = $region86
                $region91: #{transformer_block.4} parent=83 // loop_exit
                  _
                loop: start=0, step=1, limit=1
                $region92: #{transformer_block.4} parent=83 // loop_pre_header
                  _
                $region93: #{transformer_block.4} parent=83 // loop_header
                  %s279 = sphi 0, %s283
                  %p280 = scmp.ge.s32.totalorder %s279, 1
                  %s284 = sphi %s247, %s247
                  %s285 = sphi %s240, %s240
                $region94: #{transformer_block.4} parent=83 // loop_header_branch
                  %282 = sbr.rel (%p280) target = $region98
                $region95: #{transformer_block.4} parent=83 // loop_body
                  %v286 = vld [vmem:[%s284] sm:$0xf]
                  %287 = vst [vmem:[%s285] sm:$0xf] %v286
                  %v288 = vld [vmem:[%s284 + $0x18] sm:$0xf]
                  %289 = vst [vmem:[%s285 + $0x4] sm:$0xf] %v288
                $region96: #{transformer_block.4} parent=83 // loop_footer
                  %s283 = sadd.s32 1, %s279
                $region97: #{transformer_block.4} parent=83 // loop_footer_branch
                  %278 = sbr.rel target = $region93
                $region98: #{transformer_block.4} parent=83 // loop_exit
                  _
              $region84: #{transformer_block.4} parent=68 // pred_fallthru
                _
            $region69: #{transformer_block.4} parent=64 // pred_fallthru
              _
            // Predicated region
            $region70: #{transformer_block.4} parent=64 // pred_check
              _
            $region71: #{transformer_block.4} parent=64 // pred_check_branch
              %253 = sbr.rel (0) target = $region73
            $region72: #{transformer_block.4} parent=64 // pred_region
              loop: start=0, step=1, limit=1
              $region74: #{transformer_block.4} parent=72 // loop_pre_header
                _
              $region75: #{transformer_block.4} parent=72 // loop_header
                %s256 = sphi 0, %s260
                %p257 = scmp.ge.s32.totalorder %s256, 1
                %s261 = sphi %s247, %s247
                %s262 = sphi %s240, %s240
              $region76: #{transformer_block.4} parent=72 // loop_header_branch
                %259 = sbr.rel (%p257) target = $region80
              $region77: #{transformer_block.4} parent=72 // loop_body
                %v263 = vld [vmem:[%s261] sm:$0xf]
                %264 = vst [vmem:[%s262] sm:$0xf] %v263
                %v265 = vld [vmem:[%s261 + $0x18] sm:$0xf]
                %266 = vst [vmem:[%s262 + $0x4] sm:$0xf] %v265
              $region78: #{transformer_block.4} parent=72 // loop_footer
                %s260 = sadd.s32 1, %s256
              $region79: #{transformer_block.4} parent=72 // loop_footer_branch
                %255 = sbr.rel target = $region75
              $region80: #{transformer_block.4} parent=72 // loop_exit
                _
            $region73: #{transformer_block.4} parent=64 // pred_fallthru
              _
          $region65: #{transformer_block.4} parent=60 // pred_fallthru
            _
          %290 = vnop
        $region61: #{transformer_block.4} parent=15 // pred_fallthru
          _
        // Predicated region
        $region99: #{transformer_block.4} parent=15 // pred_check
          %p291 = pneg %p123
        $region100: #{transformer_block.4} parent=15 // pred_check_branch
          %293 = sbr.rel (%p291) target = $region102
        $region101: #{transformer_block.4} parent=15 // pred_region
          %s294 = sand.u32 %s113, 1
          %s295 = sand.u32 %s113, 1
          %s296 = smul.addr %s295, 8
          %s297 = scalar_lea.vmem [#allocation7], %s296
          %s298 = sadd.s32 %s16, %s19
          %s299 = sadd.s32 %s17, 4
          %s300 = smul.u32 2, %s298
          %s301 = smul.addr %s300, 6
          %s302 = sadd.s32 %s299, %s301
          %s303 = smul.addr %s302, 4
          %s304 = scalar_lea.vmem %s2, %s303
          // Predicated region
          $region103: #{transformer_block.4} parent=101 // pred_check
            _
          $region104: #{transformer_block.4} parent=101 // pred_check_branch
            %306 = sbr.rel (0) target = $region106
          $region105: #{transformer_block.4} parent=101 // pred_region
            // Predicated region
            $region107: #{transformer_block.4} parent=105 // pred_check
              _
            $region108: #{transformer_block.4} parent=105 // pred_check_branch
              %308 = sbr.rel target = $region110
            $region109: #{transformer_block.4} parent=105 // pred_region
              // Predicated region
              $region122: #{transformer_block.4} parent=109 // pred_check
                _
              $region123: #{transformer_block.4} parent=109 // pred_check_branch
                %325 = sbr.rel (0) target = $region125
              $region124: #{transformer_block.4} parent=109 // pred_region
                loop: start=0, step=1, limit=1
                $region126: #{transformer_block.4} parent=124 // loop_pre_header
                  _
                $region127: #{transformer_block.4} parent=124 // loop_header
                  %s327 = sphi 0, %s331
                  %p328 = scmp.ge.s32.totalorder %s327, 1
                  %s332 = sphi %s304, %s304
                  %s333 = sphi %s297, %s297
                $region128: #{transformer_block.4} parent=124 // loop_header_branch
                  %330 = sbr.rel (%p328) target = $region132
                $region129: #{transformer_block.4} parent=124 // loop_body
                  _
                $region130: #{transformer_block.4} parent=124 // loop_footer
                  %s331 = sadd.s32 1, %s327
                $region131: #{transformer_block.4} parent=124 // loop_footer_branch
                  %326 = sbr.rel target = $region127
                $region132: #{transformer_block.4} parent=124 // loop_exit
                  _
                loop: start=0, step=1, limit=1
                $region133: #{transformer_block.4} parent=124 // loop_pre_header
                  _
                $region134: #{transformer_block.4} parent=124 // loop_header
                  %s336 = sphi 0, %s340
                  %p337 = scmp.ge.s32.totalorder %s336, 1
                  %s341 = sphi %s304, %s304
                  %s342 = sphi %s297, %s297
                $region135: #{transformer_block.4} parent=124 // loop_header_branch
                  %339 = sbr.rel (%p337) target = $region139
                $region136: #{transformer_block.4} parent=124 // loop_body
                  %v343 = vld [vmem:[%s341] sm:$0xf]
                  %344 = vst [vmem:[%s342] sm:$0xf] %v343
                  %v345 = vld [vmem:[%s341 + $0x18] sm:$0xf]
                  %346 = vst [vmem:[%s342 + $0x4] sm:$0xf] %v345
                $region137: #{transformer_block.4} parent=124 // loop_footer
                  %s340 = sadd.s32 1, %s336
                $region138: #{transformer_block.4} parent=124 // loop_footer_branch
                  %335 = sbr.rel target = $region134
                $region139: #{transformer_block.4} parent=124 // loop_exit
                  _
              $region125: #{transformer_block.4} parent=109 // pred_fallthru
                _
            $region110: #{transformer_block.4} parent=105 // pred_fallthru
              _
            // Predicated region
            $region111: #{transformer_block.4} parent=105 // pred_check
              _
            $region112: #{transformer_block.4} parent=105 // pred_check_branch
              %310 = sbr.rel (0) target = $region114
            $region113: #{transformer_block.4} parent=105 // pred_region
              loop: start=0, step=1, limit=1
              $region115: #{transformer_block.4} parent=113 // loop_pre_header
                _
              $region116: #{transformer_block.4} parent=113 // loop_header
                %s313 = sphi 0, %s317
                %p314 = scmp.ge.s32.totalorder %s313, 1
                %s318 = sphi %s304, %s304
                %s319 = sphi %s297, %s297
              $region117: #{transformer_block.4} parent=113 // loop_header_branch
                %316 = sbr.rel (%p314) target = $region121
              $region118: #{transformer_block.4} parent=113 // loop_body
                %v320 = vld [vmem:[%s318] sm:$0xf]
                %321 = vst [vmem:[%s319] sm:$0xf] %v320
                %v322 = vld [vmem:[%s318 + $0x18] sm:$0xf]
                %323 = vst [vmem:[%s319 + $0x4] sm:$0xf] %v322
              $region119: #{transformer_block.4} parent=113 // loop_footer
                %s317 = sadd.s32 1, %s313
              $region120: #{transformer_block.4} parent=113 // loop_footer_branch
                %312 = sbr.rel target = $region116
              $region121: #{transformer_block.4} parent=113 // loop_exit
                _
            $region114: #{transformer_block.4} parent=105 // pred_fallthru
              _
          $region106: #{transformer_block.4} parent=101 // pred_fallthru
            _
          %347 = vnop
        $region102: #{transformer_block.4} parent=15 // pred_fallthru
          _
      $region16: #{transformer_block.4} parent=5 // pred_fallthru
        _
      %p348 = scmp.le.s32.totalorder 1, %s9
      %p349 = scmp.lt.s32.totalorder %s9, 5
      %p350 = pnand %p348, %p349
      %p351 = pneg %p350
      // Predicated region
      $region140: #{transformer_block.4} parent=5 // pred_check
        _
      $region141: #{transformer_block.4} parent=5 // pred_check_branch
        %353 = sbr.rel (%p350) target = $region143
      $region142: #{transformer_block.4} parent=5 // pred_region
        %s354 = ssub.s32 %s9, 1
        %s355 = sand.u32 %s52, 1
        %s356 = sand.u32 %s52, 1
        %s357 = smul.addr %s356, 8
        %s358 = scalar_lea.vmem [#allocation5], %s357
        // Predicated region
        $region144: #{transformer_block.4} parent=142 // pred_check
          %p359 = pneg %p65
        $region145: #{transformer_block.4} parent=142 // pred_check_branch
          %361 = sbr.rel (%p359) target = $region147
        $region146: #{transformer_block.4} parent=142 // pred_region
          _
        $region147: #{transformer_block.4} parent=142 // pred_fallthru
          _
        %s362 = sand.u32 %s84, 1
        %s363 = sand.u32 %s84, 1
        %s364 = smul.addr %s363, 8
        %s365 = scalar_lea.vmem [#allocation6], %s364
        // Predicated region
        $region148: #{transformer_block.4} parent=142 // pred_check
          %p366 = pneg %p97
        $region149: #{transformer_block.4} parent=142 // pred_check_branch
          %368 = sbr.rel (%p366) target = $region151
        $region150: #{transformer_block.4} parent=142 // pred_region
          _
        $region151: #{transformer_block.4} parent=142 // pred_fallthru
          _
        %s369 = sand.u32 %s116, 1
        %s370 = sand.u32 %s116, 1
        %s371 = smul.addr %s370, 8
        %s372 = scalar_lea.vmem [#allocation7], %s371
        // Predicated region
        $region152: #{transformer_block.4} parent=142 // pred_check
          %p373 = pneg %p129
        $region153: #{transformer_block.4} parent=142 // pred_check_branch
          %375 = sbr.rel (%p373) target = $region155
        $region154: #{transformer_block.4} parent=142 // pred_region
          _
        $region155: #{transformer_block.4} parent=142 // pred_fallthru
          _
        %s376 = sand.u32 %s52, 1
        %s377 = sand.u32 %s52, 1
        %s378 = smul.addr %s377, 8
        %s379 = scalar_lea.vmem [#allocation5], %s378
        %p380 = pneg %p65
        %p381 = pneg %p62
        %s382 = sand.u32 %s84, 1
        %s383 = sand.u32 %s84, 1
        %s384 = smul.addr %s383, 8
        %s385 = scalar_lea.vmem [#allocation6], %s384
        %p386 = pneg %p97
        %p387 = pneg %p94
        %s388 = sand.u32 %s116, 1
        %s389 = sand.u32 %s116, 1
        %s390 = smul.addr %s389, 8
        %s391 = scalar_lea.vmem [#allocation7], %s390
        %p392 = pneg %p129
        %p393 = pneg %p126
        %p394 = pneg %p159
        %p395 = pneg %p156
        %s396 = sand.u32 %s146, 1
        %s397 = sand.u32 %s146, 1
        %s398 = smul.addr %s397, 8
        %s399 = scalar_lea.vmem [#allocation8], %s398
        %s400 = sadd.s32 %s20, %s22
        %s401 = smul.u32 2, %s400
        %s402 = sadd.s32 %s20, %s23
        %s403 = sadd.s32 %s21, 2
        %s404 = smul.u32 2, %s402
        %s405 = sadd.s32 %s20, %s23
        %s406 = sadd.s32 %s21, 4
        %s407 = smul.u32 2, %s405
        %s408 = sadd.s32 %s20, %s22
        %s409 = smul.u32 2, %s408
        %p411 = scmp.eq.s32.totalorder %s23, 0
        // Predicated region
        $region156: #{transformer_block.4} parent=142 // pred_check
          %p412 = pneg %p411
        $region157: #{transformer_block.4} parent=142 // pred_check_branch
          %414 = sbr.rel (%p412) target = $region159
        $region158: #{transformer_block.4} parent=142 // pred_region
          %vm415 = vcmask 7168
          %416 = vst.msk [vmem:[#allocation2] sm:$0xff] %vm415, -inf
          %417 = vst.msk [vmem:[#allocation2 + $0x8] sm:$0xff] %vm415, -inf
          %418 = vst.msk [vmem:[#allocation3] sm:$0xff] %vm415, 0.0
          %419 = vst.msk [vmem:[#allocation3 + $0x8] sm:$0xff] %vm415, 0.0
          %420 = vst [vmem:[#allocation4] sm:$0xff] 0.0
          %421 = vst [vmem:[#allocation4 + $0x8] sm:$0xff] 0.0
        $region159: #{transformer_block.4} parent=142 // pred_fallthru
          _
        %v422 = vld [vmem:[%s358] sm:$0xf]
        %v423 = vld [vmem:[%s358 + $0x4] sm:$0xf]
        %v424 = vld [vmem:[%s365] sm:$0xf]
        %v425 = vld [vmem:[%s365 + $0x4] sm:$0xf]
        %v428 = vunpack.c.l.b16 %v422
        %v429 = vunpack.c.l.b16 %v423
        %v430 = vpack.c.b16 %v429, %v428
        %v434 = vunpack.c.l.b16 %v424
        %v435 = vunpack.c.l.b16 %v425
        %v436 = vpack.c.b16 %v435, %v434
        %438 = vmatprep.subr.bf16.mxu0 0
        %439 = vmatpush1.bf16.xpose.msra.mxu0 %v436
        %440 = vmatprep.subr.bf16.mxu0 0
        %441 = vmatpush1.bf16.xpose.msra.mxu0 0
        %442 = vmatprep.subr.bf16.mxu0 0
        %443 = vmatpush1.bf16.xpose.msra.mxu0 0
        %444 = vmatprep.subr.bf16.mxu0 0
        %445 = vmatpush1.bf16.xpose.msra.mxu0 0
        %446 = vmatprep.subr.bf16.mxu0 0
        %447 = vmatpush1.bf16.xpose.msra.mxu0 0
        %448 = vmatprep.subr.bf16.mxu0 0
        %449 = vmatpush1.bf16.xpose.msra.mxu0 0
        %450 = vmatprep.subr.bf16.mxu0 0
        %451 = vmatpush1.bf16.xpose.msra.mxu0 0
        %452 = vmatprep.subr.bf16.mxu0 0
        %453 = vmatpush1.bf16.xpose.msra.mxu0 0
        %454 = vmatprep.subr.bf16.mxu0 0
        %455 = vmatpush1.bf16.xpose.msra.mxu0 0
        %456 = vmatprep.subr.bf16.mxu0 0
        %457 = vmatpush1.bf16.xpose.msra.mxu0 0
        %458 = vmatprep.subr.bf16.mxu0 0
        %459 = vmatpush1.bf16.xpose.msra.mxu0 0
        %460 = vmatprep.subr.bf16.mxu0 0
        %461 = vmatpush1.bf16.xpose.msra.mxu0 0
        %462 = vmatprep.subr.bf16.mxu0 0
        %463 = vmatpush1.bf16.xpose.msra.mxu0 0
        %464 = vmatprep.subr.bf16.mxu0 0
        %465 = vmatpush1.bf16.xpose.msra.mxu0 0
        %466 = vmatprep.subr.bf16.mxu0 0
        %467 = vmatpush1.bf16.xpose.msra.mxu0 0
        %468 = vmatprep.subr.bf16.mxu0 0
        %469 = vmatpush1.bf16.xpose.msra.mxu0 0
        %470 = vmatprep.mubr.bf16.mxu0 0
        %471 = vmatmul.mubr.bf16.gmra.mrb[0].mxu0 %v430
        %v472 = vpop.f32.mrb[0].mxu0
        %v473 = vadd.f32 0.0, %v472
        %v474 = vpop.f32.mrb[0].mxu0
        %v475 = vpop.f32.mrb[0].mxu0
        %v476 = vadd.f32 0.0, %v475
        %v477 = vpop.f32.mrb[0].mxu0
        %478 = vdwg.mxu0
        %v479 = vld [vmem:[#allocation2] sm:$0xff]
        %v480 = vld [vmem:[#allocation2 + $0x8] sm:$0xff]
        %vm481 = vcmask 130048
        %v482 = vsel %vm481, %v473, -inf
        %483 = vmax.xlane.f32.xlu0 %v482
        %v484 = vpop.xlane.xlu0 %483
        %v485 = vsel %vm481, %v476, -inf
        %486 = vmax.xlane.f32.xlu0 %v485
        %v487 = vpop.xlane.xlu0 %486
        %v488 = vmax.f32 %v479, %v484
        %v489 = vmax.f32 %v480, %v487
        %v490 = vsub.f32 %v479, %v488
        %v491 = vsub.f32 %v480, %v489
        %v492 = vmul.f32 %v490, 1.442695
        %v493 = vpow.pop %v492
        %v494 = vmul.f32 %v491, 1.442695
        %v495 = vpow.pop %v494
        %497 = vset.pattern.permute.xlu0 0
        %498 = vperm.xlu0 %497, %v488
        %v499 = vpop.permute.xlu0 %498
        %502 = vset.pattern.permute.xlu0 0
        %503 = vperm.xlu0 %502, %v489
        %v504 = vpop.permute.xlu0 %503
        %v506 = vsub.f32 %v473, %v499
        %v507 = vsub.f32 %v476, %v504
        %v508 = vmul.f32 %v506, 1.442695
        %v509 = vpow.pop %v508
        %v510 = vmul.f32 %v507, 1.442695
        %v511 = vpow.pop %v510
        %v512 = vld [vmem:[#allocation3] sm:$0xff]
        %v513 = vld [vmem:[#allocation3 + $0x8] sm:$0xff]
        %v514 = vmul.f32 %v493, %v512
        %v515 = vmul.f32 %v495, %v513
        %v516 = vsel %vm481, %v509, 0.0
        %517 = vadd.xlane.f32.xlu0 %v516
        %v518 = vpop.xlane.xlu0 %517
        %v519 = vsel %vm481, %v511, 0.0
        %520 = vadd.xlane.f32.xlu0 %v519
        %v521 = vpop.xlane.xlu0 %520
        %v522 = vadd.f32 %v514, %v518
        %v523 = vadd.f32 %v515, %v521
        %vm524 = vcmask 7168
        %525 = vst.msk [vmem:[#allocation3] sm:$0xff] %vm524, %v522
        %526 = vst.msk [vmem:[#allocation3 + $0x8] sm:$0xff] %vm524, %v523
        %v527 = vld [vmem:[#allocation4] sm:$0xff]
        %v528 = vld [vmem:[#allocation4 + $0x8] sm:$0xff]
        %530 = vset.pattern.permute.xlu0 0
        %531 = vperm.xlu0 %530, %v493
        %v532 = vpop.permute.xlu0 %531
        %535 = vset.pattern.permute.xlu0 0
        %536 = vperm.xlu0 %535, %v495
        %v537 = vpop.permute.xlu0 %536
        %v539 = vmul.f32 %v532, %v527
        %v540 = vmul.f32 %v537, %v528
        %v541 = vpack.c.bf16 %v511, %v509
        %v542 = vld [vmem:[%s372] sm:$0xf]
        %v543 = vld [vmem:[%s372 + $0x4] sm:$0xf]
        %v546 = vunpack.c.l.b16 %v542
        %v547 = vunpack.c.l.b16 %v543
        %v548 = vpack.c.b16 %v547, %v546
        %v551 = vsel %vm481, %v541, 0
        %553 = vmatprep.subr.bf16.mxu0 0
        %554 = vmatpush1.bf16.msra.mxu0 %v548
        %555 = vmatprep.subr.bf16.mxu0 0
        %556 = vmatpush1.bf16.msra.mxu0 0
        %557 = vmatprep.subr.bf16.mxu0 0
        %558 = vmatpush1.bf16.msra.mxu0 0
        %559 = vmatprep.subr.bf16.mxu0 0
        %560 = vmatpush1.bf16.msra.mxu0 0
        %561 = vmatprep.subr.bf16.mxu0 0
        %562 = vmatpush1.bf16.msra.mxu0 0
        %563 = vmatprep.subr.bf16.mxu0 0
        %564 = vmatpush1.bf16.msra.mxu0 0
        %565 = vmatprep.subr.bf16.mxu0 0
        %566 = vmatpush1.bf16.msra.mxu0 0
        %567 = vmatprep.subr.bf16.mxu0 0
        %568 = vmatpush1.bf16.msra.mxu0 0
        %569 = vmatprep.subr.bf16.mxu0 0
        %570 = vmatpush1.bf16.msra.mxu0 0
        %571 = vmatprep.subr.bf16.mxu0 0
        %572 = vmatpush1.bf16.msra.mxu0 0
        %573 = vmatprep.subr.bf16.mxu0 0
        %574 = vmatpush1.bf16.msra.mxu0 0
        %575 = vmatprep.subr.bf16.mxu0 0
        %576 = vmatpush1.bf16.msra.mxu0 0
        %577 = vmatprep.subr.bf16.mxu0 0
        %578 = vmatpush1.bf16.msra.mxu0 0
        %579 = vmatprep.subr.bf16.mxu0 0
        %580 = vmatpush1.bf16.msra.mxu0 0
        %581 = vmatprep.subr.bf16.mxu0 0
        %582 = vmatpush1.bf16.msra.mxu0 0
        %583 = vmatprep.subr.bf16.mxu0 0
        %584 = vmatpush1.bf16.msra.mxu0 0
        %585 = vmatprep.mubr.bf16.mxu0 0
        %586 = vmatmul.mubr.bf16.gmra.mrb[0].mxu0 %v551
        %v587 = vpop.f32.mrb[0].mxu0
        %v588 = vadd.f32 0.0, %v587
        %v589 = vpop.f32.mrb[0].mxu0
        %v590 = vpop.f32.mrb[0].mxu0
        %v591 = vadd.f32 0.0, %v590
        %v592 = vpop.f32.mrb[0].mxu0
        %593 = vdwg.mxu0
        %v594 = vadd.f32 %v539, %v588
        %v595 = vadd.f32 %v540, %v591
        %596 = vst [vmem:[#allocation4] sm:$0xff] %v594
        %597 = vst [vmem:[#allocation4 + $0x8] sm:$0xff] %v595
        %598 = vst.msk [vmem:[#allocation2] sm:$0xff] %vm524, %v488
        %599 = vst.msk [vmem:[#allocation2 + $0x8] sm:$0xff] %vm524, %v489
        // Predicated region
        $region160: #{transformer_block.4} parent=142 // pred_check
          %p600 = pneg %p411
        $region161: #{transformer_block.4} parent=142 // pred_check_branch
          %602 = sbr.rel (%p600) target = $region163
        $region162: #{transformer_block.4} parent=142 // pred_region
          %v603 = vld [vmem:[#allocation4] sm:$0xff]
          %v604 = vld [vmem:[#allocation4 + $0x8] sm:$0xff]
          %v605 = vld [vmem:[#allocation3] sm:$0xff]
          %v606 = vld [vmem:[#allocation3 + $0x8] sm:$0xff]
          %608 = vset.pattern.permute.xlu0 0
          %609 = vperm.xlu0 %608, %v605
          %v610 = vpop.permute.xlu0 %609
          %613 = vset.pattern.permute.xlu0 0
          %614 = vperm.xlu0 %613, %v606
          %v615 = vpop.permute.xlu0 %614
          %v617 = vrcp.pop %v610
          %v618 = vmul.f32 %v603, %v617
          %v619 = vrcp.pop %v615
          %v620 = vmul.f32 %v604, %v619
          %v621 = vpack.c.bf16 %v620, %v618
          %v623 = vunpack.c.l.b16 %v621
          %v624 = vunpack.c.h.b16 %v621
          %v625 = vpack.c.b16 %v623, %v623
          %v626 = vpack.c.b16 %v624, %v624
          %629 = vst [vmem:[%s399] sm:$0xf] %v625
          %630 = vst [vmem:[%s399 + $0x4] sm:$0xf] %v626
        $region163: #{transformer_block.4} parent=142 // pred_fallthru
          _
        %s631 = sand.u32 %s146, 1
        %s632 = sand.u32 %s146, 1
        %s633 = smul.addr %s632, 8
        %s634 = scalar_lea.vmem [#allocation8], %s633
        // Predicated region
        $region164: #{transformer_block.4} parent=142 // pred_check
          %p635 = pneg %p156
        $region165: #{transformer_block.4} parent=142 // pred_check_branch
          %637 = sbr.rel (%p635) target = $region167
        $region166: #{transformer_block.4} parent=142 // pred_region
          %s638 = sadd.s32 %s20, %s22
          %s639 = smul.u32 2, %s638
          %s640 = smul.addr %s639, 2
          %s641 = sadd.s32 %s21, %s640
          %s642 = smul.addr %s641, 4
          %s643 = scalar_lea.vmem %s3, %s642
          // Predicated region
          $region168: #{transformer_block.4} parent=166 // pred_check
            _
          $region169: #{transformer_block.4} parent=166 // pred_check_branch
            %645 = sbr.rel (0) target = $region171
          $region170: #{transformer_block.4} parent=166 // pred_region
            // Predicated region
            $region172: #{transformer_block.4} parent=170 // pred_check
              _
            $region173: #{transformer_block.4} parent=170 // pred_check_branch
              %647 = sbr.rel target = $region175
            $region174: #{transformer_block.4} parent=170 // pred_region
              // Predicated region
              $region187: #{transformer_block.4} parent=174 // pred_check
                _
              $region188: #{transformer_block.4} parent=174 // pred_check_branch
                %664 = sbr.rel (0) target = $region190
              $region189: #{transformer_block.4} parent=174 // pred_region
                loop: start=0, step=1, limit=1
                $region191: #{transformer_block.4} parent=189 // loop_pre_header
                  _
                $region192: #{transformer_block.4} parent=189 // loop_header
                  %s666 = sphi 0, %s670
                  %p667 = scmp.ge.s32.totalorder %s666, 1
                  %s671 = sphi %s634, %s634
                  %s672 = sphi %s643, %s643
                $region193: #{transformer_block.4} parent=189 // loop_header_branch
                  %669 = sbr.rel (%p667) target = $region197
                $region194: #{transformer_block.4} parent=189 // loop_body
                  _
                $region195: #{transformer_block.4} parent=189 // loop_footer
                  %s670 = sadd.s32 1, %s666
                $region196: #{transformer_block.4} parent=189 // loop_footer_branch
                  %665 = sbr.rel target = $region192
                $region197: #{transformer_block.4} parent=189 // loop_exit
                  _
                loop: start=0, step=1, limit=1
                $region198: #{transformer_block.4} parent=189 // loop_pre_header
                  _
                $region199: #{transformer_block.4} parent=189 // loop_header
                  %s675 = sphi 0, %s679
                  %p676 = scmp.ge.s32.totalorder %s675, 1
                  %s680 = sphi %s634, %s634
                  %s681 = sphi %s643, %s643
                $region200: #{transformer_block.4} parent=189 // loop_header_branch
                  %678 = sbr.rel (%p676) target = $region204
                $region201: #{transformer_block.4} parent=189 // loop_body
                  %v682 = vld [vmem:[%s680] sm:$0xf]
                  %683 = vst [vmem:[%s681] sm:$0xf] %v682
                  %v684 = vld [vmem:[%s680 + $0x4] sm:$0xf]
                  %685 = vst [vmem:[%s681 + $0x8] sm:$0xf] %v684
                $region202: #{transformer_block.4} parent=189 // loop_footer
                  %s679 = sadd.s32 1, %s675
                $region203: #{transformer_block.4} parent=189 // loop_footer_branch
                  %674 = sbr.rel target = $region199
                $region204: #{transformer_block.4} parent=189 // loop_exit
                  _
              $region190: #{transformer_block.4} parent=174 // pred_fallthru
                _
            $region175: #{transformer_block.4} parent=170 // pred_fallthru
              _
            // Predicated region
            $region176: #{transformer_block.4} parent=170 // pred_check
              _
            $region177: #{transformer_block.4} parent=170 // pred_check_branch
              %649 = sbr.rel (0) target = $region179
            $region178: #{transformer_block.4} parent=170 // pred_region
              loop: start=0, step=1, limit=1
              $region180: #{transformer_block.4} parent=178 // loop_pre_header
                _
              $region181: #{transformer_block.4} parent=178 // loop_header
                %s652 = sphi 0, %s656
                %p653 = scmp.ge.s32.totalorder %s652, 1
                %s657 = sphi %s634, %s634
                %s658 = sphi %s643, %s643
              $region182: #{transformer_block.4} parent=178 // loop_header_branch
                %655 = sbr.rel (%p653) target = $region186
              $region183: #{transformer_block.4} parent=178 // loop_body
                %v659 = vld [vmem:[%s657] sm:$0xf]
                %660 = vst [vmem:[%s658] sm:$0xf] %v659
                %v661 = vld [vmem:[%s657 + $0x4] sm:$0xf]
                %662 = vst [vmem:[%s658 + $0x8] sm:$0xf] %v661
              $region184: #{transformer_block.4} parent=178 // loop_footer
                %s656 = sadd.s32 1, %s652
              $region185: #{transformer_block.4} parent=178 // loop_footer_branch
                %651 = sbr.rel target = $region181
              $region186: #{transformer_block.4} parent=178 // loop_exit
                _
            $region179: #{transformer_block.4} parent=170 // pred_fallthru
              _
          $region171: #{transformer_block.4} parent=166 // pred_fallthru
            _
          %686 = vnop
        $region167: #{transformer_block.4} parent=142 // pred_fallthru
          _
      $region143: #{transformer_block.4} parent=5 // pred_fallthru
        _
      %p687 = scmp.le.s32.totalorder 2, %s9
      // Predicated region
      $region205: #{transformer_block.4} parent=5 // pred_check
        %p688 = pneg %p687
      $region206: #{transformer_block.4} parent=5 // pred_check_branch
        %690 = sbr.rel (%p688) target = $region208
      $region207: #{transformer_block.4} parent=5 // pred_region
        %s691 = ssub.s32 %s9, 2
        // Predicated region
        $region209: #{transformer_block.4} parent=207 // pred_check
          %p692 = pneg %p162
        $region210: #{transformer_block.4} parent=207 // pred_check_branch
          %694 = sbr.rel (%p692) target = $region212
        $region211: #{transformer_block.4} parent=207 // pred_region
          %s695 = sand.u32 %s147, 1
          %s696 = sand.u32 %s147, 1
          %s697 = smul.addr %s696, 8
          %s698 = scalar_lea.vmem [#allocation8], %s697
        $region212: #{transformer_block.4} parent=207 // pred_fallthru
          _
      $region208: #{transformer_block.4} parent=5 // pred_fallthru
        _
    $region6: #{transformer_block.4} parent=1 // loop_footer
      %s13 = sadd.s32 1, %s9
    $region7: #{transformer_block.4} parent=1 // loop_footer_branch
      %8 = sbr.rel target = $region3
    $region8: #{transformer_block.4} parent=1 // loop_exit
      _

// kernel: transformer_block.3
$region0: #{transformer_block.3}
  #allocation0 [shape = 'u32[]', space=smem, size = 0x4, offset = 0x4, fixed_abs, tag = 'smem constant byte address 0x4 - core index']
  #allocation1 [shape = 'u32[144,128]{1,0:T(1,128)}', space=vmem, size = 0x12000, scoped, tag = 'internal scratch']
  %s0 = inlined_call_operand.vmem [shape: f32[32,256], index: 0, kind: input, shape index: {}]
  %s1 = inlined_call_operand.vmem [shape: bf16[256,768], index: 1, kind: input, shape index: {}]
  %s2 = inlined_call_operand.vmem [shape: f32[1,768], index: 2, kind: input, shape index: {}]
  %s3 = inlined_call_operand.vmem [shape: bf16[32,768], index: 3, kind: output, shape index: {}]
  %s4 = sld [smem:[#allocation0]]
  $region22: #{transformer_block.3} parent=0
    _
  %s6 = ssub.s32 1, %s4
  %s7 = scalar_select 0, %s6, %s4
  // Predicated region
  $region2: #{transformer_block.3} parent=0 // pred_check
    _
  $region3: #{transformer_block.3} parent=0 // pred_check_branch
    %9 = sbr.rel (0) target = $region5
  $region4: #{transformer_block.3} parent=0 // pred_region
    _
  $region5: #{transformer_block.3} parent=0 // pred_fallthru
    _
  // Predicated region
  $region6: #{transformer_block.3} parent=0 // pred_check
    _
  $region7: #{transformer_block.3} parent=0 // pred_check_branch
    %11 = sbr.rel (0) target = $region9
  $region8: #{transformer_block.3} parent=0 // pred_region
    _
  $region9: #{transformer_block.3} parent=0 // pred_fallthru
    _
  // Predicated region
  $region10: #{transformer_block.3} parent=0 // pred_check
    _
  $region11: #{transformer_block.3} parent=0 // pred_check_branch
    %13 = sbr.rel (0) target = $region13
  $region12: #{transformer_block.3} parent=0 // pred_region
    _
  $region13: #{transformer_block.3} parent=0 // pred_fallthru
    _
  %v14 = vld [vmem:[%s0] sm:$0xff]
  %v15 = vld [vmem:[%s0 + $0x8] sm:$0xff]
  %v16 = vld [vmem:[%s0 + $0x10] sm:$0xff]
  %v17 = vld [vmem:[%s0 + $0x18] sm:$0xff]
  %v18 = vld [vmem:[%s0 + $0x20] sm:$0xff]
  %v19 = vld [vmem:[%s0 + $0x28] sm:$0xff]
  %v20 = vld [vmem:[%s0 + $0x30] sm:$0xff]
  %v21 = vld [vmem:[%s0 + $0x38] sm:$0xff]
  %v22 = vpack.c.bf16 %v16, %v14
  %v23 = vpack.c.bf16 %v17, %v15
  %v24 = vpack.c.bf16 %v20, %v18
  %v25 = vpack.c.bf16 %v21, %v19
  %v26 = vld [vmem:[%s1] sm:$0xff]
  %v27 = vld [vmem:[%s1 + $0x8] sm:$0xff]
  %v28 = vld [vmem:[%s1 + $0x10] sm:$0xff]
  %v29 = vld [vmem:[%s1 + $0x18] sm:$0xff]
  %v30 = vld [vmem:[%s1 + $0x20] sm:$0xff]
  %v31 = vld [vmem:[%s1 + $0x28] sm:$0xff]
  %v32 = vld [vmem:[%s1 + $0x30] sm:$0xff]
  %v33 = vld [vmem:[%s1 + $0x38] sm:$0xff]
  %v34 = vld [vmem:[%s1 + $0x40] sm:$0xff]
  %v35 = vld [vmem:[%s1 + $0x48] sm:$0xff]
  %v36 = vld [vmem:[%s1 + $0x50] sm:$0xff]
  %v37 = vld [vmem:[%s1 + $0x58] sm:$0xff]
  %v38 = vld [vmem:[%s1 + $0x60] sm:$0xff]
  %v39 = vld [vmem:[%s1 + $0x68] sm:$0xff]
  %v40 = vld [vmem:[%s1 + $0x70] sm:$0xff]
  %v41 = vld [vmem:[%s1 + $0x78] sm:$0xff]
  %v42 = vld [vmem:[%s1 + $0x80] sm:$0xff]
  %v43 = vld [vmem:[%s1 + $0x88] sm:$0xff]
  %v44 = vld [vmem:[%s1 + $0x90] sm:$0xff]
  %v45 = vld [vmem:[%s1 + $0x98] sm:$0xff]
  %v46 = vld [vmem:[%s1 + $0xa0] sm:$0xff]
  %v47 = vld [vmem:[%s1 + $0xa8] sm:$0xff]
  %v48 = vld [vmem:[%s1 + $0xb0] sm:$0xff]
  %v49 = vld [vmem:[%s1 + $0xb8] sm:$0xff]
  %v50 = vld [vmem:[%s1 + $0xc0] sm:$0xff]
  %v51 = vld [vmem:[%s1 + $0xc8] sm:$0xff]
  %v52 = vld [vmem:[%s1 + $0xd0] sm:$0xff]
  %v53 = vld [vmem:[%s1 + $0xd8] sm:$0xff]
  %v54 = vld [vmem:[%s1 + $0xe0] sm:$0xff]
  %v55 = vld [vmem:[%s1 + $0xe8] sm:$0xff]
  %v56 = vld [vmem:[%s1 + $0xf0] sm:$0xff]
  %v57 = vld [vmem:[%s1 + $0xf8] sm:$0xff]
  %v58 = vld [vmem:[%s1 + $0x100] sm:$0xff]
  %v59 = vld [vmem:[%s1 + $0x108] sm:$0xff]
  %v60 = vld [vmem:[%s1 + $0x110] sm:$0xff]
  %v61 = vld [vmem:[%s1 + $0x118] sm:$0xff]
  %v62 = vld [vmem:[%s1 + $0x120] sm:$0xff]
  %v63 = vld [vmem:[%s1 + $0x128] sm:$0xff]
  %v64 = vld [vmem:[%s1 + $0x130] sm:$0xff]
  %v65 = vld [vmem:[%s1 + $0x138] sm:$0xff]
  %v66 = vld [vmem:[%s1 + $0x140] sm:$0xff]
  %v67 = vld [vmem:[%s1 + $0x148] sm:$0xff]
  %v68 = vld [vmem:[%s1 + $0x150] sm:$0xff]
  %v69 = vld [vmem:[%s1 + $0x158] sm:$0xff]
  %v70 = vld [vmem:[%s1 + $0x160] sm:$0xff]
  %v71 = vld [vmem:[%s1 + $0x168] sm:$0xff]
  %v72 = vld [vmem:[%s1 + $0x170] sm:$0xff]
  %v73 = vld [vmem:[%s1 + $0x178] sm:$0xff]
  %v74 = vld [vmem:[%s1 + $0x180] sm:$0xff]
  %v75 = vld [vmem:[%s1 + $0x188] sm:$0xff]
  %v76 = vld [vmem:[%s1 + $0x190] sm:$0xff]
  %v77 = vld [vmem:[%s1 + $0x198] sm:$0xff]
  %v78 = vld [vmem:[%s1 + $0x1a0] sm:$0xff]
  %v79 = vld [vmem:[%s1 + $0x1a8] sm:$0xff]
  %v80 = vld [vmem:[%s1 + $0x1b0] sm:$0xff]
  %v81 = vld [vmem:[%s1 + $0x1b8] sm:$0xff]
  %v82 = vld [vmem:[%s1 + $0x1c0] sm:$0xff]
  %v83 = vld [vmem:[%s1 + $0x1c8] sm:$0xff]
  %v84 = vld [vmem:[%s1 + $0x1d0] sm:$0xff]
  %v85 = vld [vmem:[%s1 + $0x1d8] sm:$0xff]
  %v86 = vld [vmem:[%s1 + $0x1e0] sm:$0xff]
  %v87 = vld [vmem:[%s1 + $0x1e8] sm:$0xff]
  %v88 = vld [vmem:[%s1 + $0x1f0] sm:$0xff]
  %v89 = vld [vmem:[%s1 + $0x1f8] sm:$0xff]
  %v90 = vld [vmem:[%s1 + $0x200] sm:$0xff]
  %v91 = vld [vmem:[%s1 + $0x208] sm:$0xff]
  %v92 = vld [vmem:[%s1 + $0x210] sm:$0xff]
  %v93 = vld [vmem:[%s1 + $0x218] sm:$0xff]
  %v94 = vld [vmem:[%s1 + $0x220] sm:$0xff]
  %v95 = vld [vmem:[%s1 + $0x228] sm:$0xff]
  %v96 = vld [vmem:[%s1 + $0x230] sm:$0xff]
  %v97 = vld [vmem:[%s1 + $0x238] sm:$0xff]
  %v98 = vld [vmem:[%s1 + $0x240] sm:$0xff]
  %v99 = vld [vmem:[%s1 + $0x248] sm:$0xff]
  %v100 = vld [vmem:[%s1 + $0x250] sm:$0xff]
  %v101 = vld [vmem:[%s1 + $0x258] sm:$0xff]
  %v102 = vld [vmem:[%s1 + $0x260] sm:$0xff]
  %v103 = vld [vmem:[%s1 + $0x268] sm:$0xff]
  %v104 = vld [vmem:[%s1 + $0x270] sm:$0xff]
  %v105 = vld [vmem:[%s1 + $0x278] sm:$0xff]
  %v106 = vld [vmem:[%s1 + $0x280] sm:$0xff]
  %v107 = vld [vmem:[%s1 + $0x288] sm:$0xff]
  %v108 = vld [vmem:[%s1 + $0x290] sm:$0xff]
  %v109 = vld [vmem:[%s1 + $0x298] sm:$0xff]
  %v110 = vld [vmem:[%s1 + $0x2a0] sm:$0xff]
  %v111 = vld [vmem:[%s1 + $0x2a8] sm:$0xff]
  %v112 = vld [vmem:[%s1 + $0x2b0] sm:$0xff]
  %v113 = vld [vmem:[%s1 + $0x2b8] sm:$0xff]
  %v114 = vld [vmem:[%s1 + $0x2c0] sm:$0xff]
  %v115 = vld [vmem:[%s1 + $0x2c8] sm:$0xff]
  %v116 = vld [vmem:[%s1 + $0x2d0] sm:$0xff]
  %v117 = vld [vmem:[%s1 + $0x2d8] sm:$0xff]
  %v118 = vld [vmem:[%s1 + $0x2e0] sm:$0xff]
  %v119 = vld [vmem:[%s1 + $0x2e8] sm:$0xff]
  %v120 = vld [vmem:[%s1 + $0x2f0] sm:$0xff]
  %v121 = vld [vmem:[%s1 + $0x2f8] sm:$0xff]
  %v122 = vld [vmem:[%s2] sm:$0x3f]
  %v124 = vlaneseq
  %v125 = vshrl.u32 %v124, 7
  %v126 = vsub.s32 0, %v125
  %v127 = vrot.slane %v122, %v126
  %v128 = vlaneseq
  %v129 = vshrl.u32 %v128, 7
  %v130 = vsub.s32 1, %v129
  %v131 = vrot.slane %v122, %v130
  %v132 = vlaneseq
  %v133 = vshrl.u32 %v132, 7
  %v134 = vsub.s32 2, %v133
  %v135 = vrot.slane %v122, %v134
  %v136 = vlaneseq
  %v137 = vshrl.u32 %v136, 7
  %v138 = vsub.s32 3, %v137
  %v139 = vrot.slane %v122, %v138
  %v140 = vlaneseq
  %v141 = vshrl.u32 %v140, 7
  %v142 = vsub.s32 4, %v141
  %v143 = vrot.slane %v122, %v142
  %v144 = vlaneseq
  %v145 = vshrl.u32 %v144, 7
  %v146 = vsub.s32 5, %v145
  %v147 = vrot.slane %v122, %v146
  %v250 = vunpack.c.l.b16 %v26
  %v251 = vunpack.c.h.b16 %v26
  %v252 = vunpack.c.l.b16 %v27
  %v253 = vunpack.c.h.b16 %v27
  %v254 = vunpack.c.l.b16 %v28
  %v255 = vunpack.c.h.b16 %v28
  %v256 = vunpack.c.l.b16 %v29
  %v257 = vunpack.c.h.b16 %v29
  %v258 = vunpack.c.l.b16 %v30
  %v259 = vunpack.c.h.b16 %v30
  %v260 = vunpack.c.l.b16 %v31
  %v261 = vunpack.c.h.b16 %v31
  %v262 = vunpack.c.l.b16 %v32
  %v263 = vunpack.c.h.b16 %v32
  %v264 = vunpack.c.l.b16 %v33
  %v265 = vunpack.c.h.b16 %v33
  %v266 = vunpack.c.l.b16 %v34
  %v267 = vunpack.c.h.b16 %v34
  %v268 = vunpack.c.l.b16 %v35
  %v269 = vunpack.c.h.b16 %v35
  %v270 = vunpack.c.l.b16 %v36
  %v271 = vunpack.c.h.b16 %v36
  %v272 = vunpack.c.l.b16 %v37
  %v273 = vunpack.c.h.b16 %v37
  %v274 = vunpack.c.l.b16 %v38
  %v275 = vunpack.c.h.b16 %v38
  %v276 = vunpack.c.l.b16 %v39
  %v277 = vunpack.c.h.b16 %v39
  %v278 = vunpack.c.l.b16 %v40
  %v279 = vunpack.c.h.b16 %v40
  %v280 = vunpack.c.l.b16 %v41
  %v281 = vunpack.c.h.b16 %v41
  %v282 = vunpack.c.l.b16 %v42
  %v283 = vunpack.c.h.b16 %v42
  %v284 = vunpack.c.l.b16 %v43
  %v285 = vunpack.c.h.b16 %v43
  %v286 = vunpack.c.l.b16 %v44
  %v287 = vunpack.c.h.b16 %v44
  %v288 = vunpack.c.l.b16 %v45
  %v289 = vunpack.c.h.b16 %v45
  %v290 = vunpack.c.l.b16 %v46
  %v291 = vunpack.c.h.b16 %v46
  %v292 = vunpack.c.l.b16 %v47
  %v293 = vunpack.c.h.b16 %v47
  %v294 = vunpack.c.l.b16 %v48
  %v295 = vunpack.c.h.b16 %v48
  %v296 = vunpack.c.l.b16 %v49
  %v297 = vunpack.c.h.b16 %v49
  %v298 = vunpack.c.l.b16 %v50
  %v299 = vunpack.c.h.b16 %v50
  %v300 = vunpack.c.l.b16 %v51
  %v301 = vunpack.c.h.b16 %v51
  %v302 = vunpack.c.l.b16 %v52
  %v303 = vunpack.c.h.b16 %v52
  %v304 = vunpack.c.l.b16 %v53
  %v305 = vunpack.c.h.b16 %v53
  %v306 = vunpack.c.l.b16 %v54
  %v307 = vunpack.c.h.b16 %v54
  %v308 = vunpack.c.l.b16 %v55
  %v309 = vunpack.c.h.b16 %v55
  %v310 = vunpack.c.l.b16 %v56
  %v311 = vunpack.c.h.b16 %v56
  %v312 = vunpack.c.l.b16 %v57
  %v313 = vunpack.c.h.b16 %v57
  %v314 = vunpack.c.l.b16 %v58
  %v315 = vunpack.c.h.b16 %v58
  %v316 = vunpack.c.l.b16 %v59
  %v317 = vunpack.c.h.b16 %v59
  %v318 = vunpack.c.l.b16 %v60
  %v319 = vunpack.c.h.b16 %v60
  %v320 = vunpack.c.l.b16 %v61
  %v321 = vunpack.c.h.b16 %v61
  %v322 = vunpack.c.l.b16 %v62
  %v323 = vunpack.c.h.b16 %v62
  %v324 = vunpack.c.l.b16 %v63
  %v325 = vunpack.c.h.b16 %v63
  %v326 = vunpack.c.l.b16 %v64
  %v327 = vunpack.c.h.b16 %v64
  %v328 = vunpack.c.l.b16 %v65
  %v329 = vunpack.c.h.b16 %v65
  %v330 = vunpack.c.l.b16 %v66
  %v331 = vunpack.c.h.b16 %v66
  %v332 = vunpack.c.l.b16 %v67
  %v333 = vunpack.c.h.b16 %v67
  %v334 = vunpack.c.l.b16 %v68
  %v335 = vunpack.c.h.b16 %v68
  %v336 = vunpack.c.l.b16 %v69
  %v337 = vunpack.c.h.b16 %v69
  %v338 = vunpack.c.l.b16 %v70
  %v339 = vunpack.c.h.b16 %v70
  %v340 = vunpack.c.l.b16 %v71
  %v341 = vunpack.c.h.b16 %v71
  %v342 = vunpack.c.l.b16 %v72
  %v343 = vunpack.c.h.b16 %v72
  %v344 = vunpack.c.l.b16 %v73
  %v345 = vunpack.c.h.b16 %v73
  %v346 = vunpack.c.l.b16 %v74
  %v347 = vunpack.c.h.b16 %v74
  %v348 = vunpack.c.l.b16 %v75
  %v349 = vunpack.c.h.b16 %v75
  %v350 = vunpack.c.l.b16 %v76
  %v351 = vunpack.c.h.b16 %v76
  %v352 = vunpack.c.l.b16 %v77
  %v353 = vunpack.c.h.b16 %v77
  %v354 = vunpack.c.l.b16 %v78
  %v355 = vunpack.c.h.b16 %v78
  %v356 = vunpack.c.l.b16 %v79
  %v357 = vunpack.c.h.b16 %v79
  %v358 = vunpack.c.l.b16 %v80
  %v359 = vunpack.c.h.b16 %v80
  %v360 = vunpack.c.l.b16 %v81
  %v361 = vunpack.c.h.b16 %v81
  %v362 = vunpack.c.l.b16 %v82
  %v363 = vunpack.c.h.b16 %v82
  %v364 = vunpack.c.l.b16 %v83
  %v365 = vunpack.c.h.b16 %v83
  %v366 = vunpack.c.l.b16 %v84
  %v367 = vunpack.c.h.b16 %v84
  %v368 = vunpack.c.l.b16 %v85
  %v369 = vunpack.c.h.b16 %v85
  %v370 = vunpack.c.l.b16 %v86
  %v371 = vunpack.c.h.b16 %v86
  %v372 = vunpack.c.l.b16 %v87
  %v373 = vunpack.c.h.b16 %v87
  %v374 = vunpack.c.l.b16 %v88
  %v375 = vunpack.c.h.b16 %v88
  %v376 = vunpack.c.l.b16 %v89
  %v377 = vunpack.c.h.b16 %v89
  %v378 = vunpack.c.l.b16 %v90
  %v379 = vunpack.c.h.b16 %v90
  %v380 = vunpack.c.l.b16 %v91
  %v381 = vunpack.c.h.b16 %v91
  %v382 = vunpack.c.l.b16 %v92
  %v383 = vunpack.c.h.b16 %v92
  %v384 = vunpack.c.l.b16 %v93
  %v385 = vunpack.c.h.b16 %v93
  %v386 = vunpack.c.l.b16 %v94
  %v387 = vunpack.c.h.b16 %v94
  %v388 = vunpack.c.l.b16 %v95
  %v389 = vunpack.c.h.b16 %v95
  %v390 = vunpack.c.l.b16 %v96
  %v391 = vunpack.c.h.b16 %v96
  %v392 = vunpack.c.l.b16 %v97
  %v393 = vunpack.c.h.b16 %v97
  %v394 = vunpack.c.l.b16 %v98
  %v395 = vunpack.c.h.b16 %v98
  %v396 = vunpack.c.l.b16 %v99
  %v397 = vunpack.c.h.b16 %v99
  %v398 = vunpack.c.l.b16 %v100
  %v399 = vunpack.c.h.b16 %v100
  %v400 = vunpack.c.l.b16 %v101
  %v401 = vunpack.c.h.b16 %v101
  %v402 = vunpack.c.l.b16 %v102
  %v403 = vunpack.c.h.b16 %v102
  %v404 = vunpack.c.l.b16 %v103
  %v405 = vunpack.c.h.b16 %v103
  %v406 = vunpack.c.l.b16 %v104
  %v407 = vunpack.c.h.b16 %v104
  %v408 = vunpack.c.l.b16 %v105
  %v409 = vunpack.c.h.b16 %v105
  %v410 = vunpack.c.l.b16 %v106
  %v411 = vunpack.c.h.b16 %v106
  %v412 = vunpack.c.l.b16 %v107
  %v413 = vunpack.c.h.b16 %v107
  %v414 = vunpack.c.l.b16 %v108
  %v415 = vunpack.c.h.b16 %v108
  %v416 = vunpack.c.l.b16 %v109
  %v417 = vunpack.c.h.b16 %v109
  %v418 = vunpack.c.l.b16 %v110
  %v419 = vunpack.c.h.b16 %v110
  %v420 = vunpack.c.l.b16 %v111
  %v421 = vunpack.c.h.b16 %v111
  %v422 = vunpack.c.l.b16 %v112
  %v423 = vunpack.c.h.b16 %v112
  %v424 = vunpack.c.l.b16 %v113
  %v425 = vunpack.c.h.b16 %v113
  %v426 = vunpack.c.l.b16 %v114
  %v427 = vunpack.c.h.b16 %v114
  %v428 = vunpack.c.l.b16 %v115
  %v429 = vunpack.c.h.b16 %v115
  %v430 = vunpack.c.l.b16 %v116
  %v431 = vunpack.c.h.b16 %v116
  %v432 = vunpack.c.l.b16 %v117
  %v433 = vunpack.c.h.b16 %v117
  %v434 = vunpack.c.l.b16 %v118
  %v435 = vunpack.c.h.b16 %v118
  %v436 = vunpack.c.l.b16 %v119
  %v437 = vunpack.c.h.b16 %v119
  %v438 = vunpack.c.l.b16 %v120
  %v439 = vunpack.c.h.b16 %v120
  %v440 = vunpack.c.l.b16 %v121
  %v441 = vunpack.c.h.b16 %v121
  %v442 = vpack.c.b16 %v256, %v250
  %v443 = vpack.c.b16 %v257, %v251
  %v444 = vpack.c.b16 %v258, %v252
  %v445 = vpack.c.b16 %v259, %v253
  %v446 = vpack.c.b16 %v260, %v254
  %v447 = vpack.c.b16 %v261, %v255
  %v448 = vpack.c.b16 %v268, %v262
  %v449 = vpack.c.b16 %v269, %v263
  %v450 = vpack.c.b16 %v270, %v264
  %v451 = vpack.c.b16 %v271, %v265
  %v452 = vpack.c.b16 %v272, %v266
  %v453 = vpack.c.b16 %v273, %v267
  %v454 = vpack.c.b16 %v280, %v274
  %v455 = vpack.c.b16 %v281, %v275
  %v456 = vpack.c.b16 %v282, %v276
  %v457 = vpack.c.b16 %v283, %v277
  %v458 = vpack.c.b16 %v284, %v278
  %v459 = vpack.c.b16 %v285, %v279
  %v460 = vpack.c.b16 %v292, %v286
  %v461 = vpack.c.b16 %v293, %v287
  %v462 = vpack.c.b16 %v294, %v288
  %v463 = vpack.c.b16 %v295, %v289
  %v464 = vpack.c.b16 %v296, %v290
  %v465 = vpack.c.b16 %v297, %v291
  %v466 = vpack.c.b16 %v304, %v298
  %v467 = vpack.c.b16 %v305, %v299
  %v468 = vpack.c.b16 %v306, %v300
  %v469 = vpack.c.b16 %v307, %v301
  %v470 = vpack.c.b16 %v308, %v302
  %v471 = vpack.c.b16 %v309, %v303
  %v472 = vpack.c.b16 %v316, %v310
  %v473 = vpack.c.b16 %v317, %v311
  %v474 = vpack.c.b16 %v318, %v312
  %v475 = vpack.c.b16 %v319, %v313
  %v476 = vpack.c.b16 %v320, %v314
  %v477 = vpack.c.b16 %v321, %v315
  %v478 = vpack.c.b16 %v328, %v322
  %v479 = vpack.c.b16 %v329, %v323
  %v480 = vpack.c.b16 %v330, %v324
  %v481 = vpack.c.b16 %v331, %v325
  %v482 = vpack.c.b16 %v332, %v326
  %v483 = vpack.c.b16 %v333, %v327
  %v484 = vpack.c.b16 %v340, %v334
  %v485 = vpack.c.b16 %v341, %v335
  %v486 = vpack.c.b16 %v342, %v336
  %v487 = vpack.c.b16 %v343, %v337
  %v488 = vpack.c.b16 %v344, %v338
  %v489 = vpack.c.b16 %v345, %v339
  %v490 = vpack.c.b16 %v352, %v346
  %v491 = vpack.c.b16 %v353, %v347
  %v492 = vpack.c.b16 %v354, %v348
  %v493 = vpack.c.b16 %v355, %v349
  %v494 = vpack.c.b16 %v356, %v350
  %v495 = vpack.c.b16 %v357, %v351
  %v496 = vpack.c.b16 %v364, %v358
  %v497 = vpack.c.b16 %v365, %v359
  %v498 = vpack.c.b16 %v366, %v360
  %v499 = vpack.c.b16 %v367, %v361
  %v500 = vpack.c.b16 %v368, %v362
  %v501 = vpack.c.b16 %v369, %v363
  %v502 = vpack.c.b16 %v376, %v370
  %v503 = vpack.c.b16 %v377, %v371
  %v504 = vpack.c.b16 %v378, %v372
  %v505 = vpack.c.b16 %v379, %v373
  %v506 = vpack.c.b16 %v380, %v374
  %v507 = vpack.c.b16 %v381, %v375
  %v508 = vpack.c.b16 %v388, %v382
  %v509 = vpack.c.b16 %v389, %v383
  %v510 = vpack.c.b16 %v390, %v384
  %v511 = vpack.c.b16 %v391, %v385
  %v512 = vpack.c.b16 %v392, %v386
  %v513 = vpack.c.b16 %v393, %v387
  %v514 = vpack.c.b16 %v400, %v394
  %v515 = vpack.c.b16 %v401, %v395
  %v516 = vpack.c.b16 %v402, %v396
  %v517 = vpack.c.b16 %v403, %v397
  %v518 = vpack.c.b16 %v404, %v398
  %v519 = vpack.c.b16 %v405, %v399
  %v520 = vpack.c.b16 %v412, %v406
  %v521 = vpack.c.b16 %v413, %v407
  %v522 = vpack.c.b16 %v414, %v408
  %v523 = vpack.c.b16 %v415, %v409
  %v524 = vpack.c.b16 %v416, %v410
  %v525 = vpack.c.b16 %v417, %v411
  %v526 = vpack.c.b16 %v424, %v418
  %v527 = vpack.c.b16 %v425, %v419
  %v528 = vpack.c.b16 %v426, %v420
  %v529 = vpack.c.b16 %v427, %v421
  %v530 = vpack.c.b16 %v428, %v422
  %v531 = vpack.c.b16 %v429, %v423
  %v532 = vpack.c.b16 %v436, %v430
  %v533 = vpack.c.b16 %v437, %v431
  %v534 = vpack.c.b16 %v438, %v432
  %v535 = vpack.c.b16 %v439, %v433
  %v536 = vpack.c.b16 %v440, %v434
  %v537 = vpack.c.b16 %v441, %v435
  %634 = vmatprep.subr.bf16.mxu0 %v443
  %635 = vmatpush1.bf16.msra.mxu0 %v442
  %636 = vmatprep.subr.bf16.mxu0 %v449
  %637 = vmatpush1.bf16.msra.mxu0 %v448
  %638 = vmatprep.subr.bf16.mxu0 %v455
  %639 = vmatpush1.bf16.msra.mxu0 %v454
  %640 = vmatprep.subr.bf16.mxu0 %v461
  %641 = vmatpush1.bf16.msra.mxu0 %v460
  %642 = vmatprep.subr.bf16.mxu0 %v467
  %643 = vmatpush1.bf16.msra.mxu0 %v466
  %644 = vmatprep.subr.bf16.mxu0 %v473
  %645 = vmatpush1.bf16.msra.mxu0 %v472
  %646 = vmatprep.subr.bf16.mxu0 %v479
  %647 = vmatpush1.bf16.msra.mxu0 %v478
  %648 = vmatprep.subr.bf16.mxu0 %v485
  %649 = vmatpush1.bf16.msra.mxu0 %v484
  %650 = vmatprep.subr.bf16.mxu0 %v491
  %651 = vmatpush1.bf16.msra.mxu0 %v490
  %652 = vmatprep.subr.bf16.mxu0 %v497
  %653 = vmatpush1.bf16.msra.mxu0 %v496
  %654 = vmatprep.subr.bf16.mxu0 %v503
  %655 = vmatpush1.bf16.msra.mxu0 %v502
  %656 = vmatprep.subr.bf16.mxu0 %v509
  %657 = vmatpush1.bf16.msra.mxu0 %v508
  %658 = vmatprep.subr.bf16.mxu0 %v515
  %659 = vmatpush1.bf16.msra.mxu0 %v514
  %660 = vmatprep.subr.bf16.mxu0 %v521
  %661 = vmatpush1.bf16.msra.mxu0 %v520
  %662 = vmatprep.subr.bf16.mxu0 %v527
  %663 = vmatpush1.bf16.msra.mxu0 %v526
  %664 = vmatprep.subr.bf16.mxu0 %v533
  %665 = vmatpush1.bf16.msra.mxu0 %v532
  %666 = vmatprep.mubr.bf16.mxu0 %v23
  %667 = vmatmul.mubr.bf16.gmra.mrb[0].mxu0 %v22
  %v668 = vpop.f32.mrb[0].mxu0
  %v669 = vadd.f32 %v127, %v668
  %v670 = vpop.f32.mrb[0].mxu0
  %v671 = vadd.f32 %v131, %v670
  %v672 = vpop.f32.mrb[0].mxu0
  %v673 = vadd.f32 %v127, %v672
  %v674 = vpop.f32.mrb[0].mxu0
  %v675 = vadd.f32 %v131, %v674
  %676 = vmatprep.mubr.bf16.mxu0 %v25
  %677 = vmatmul.mubr.bf16.gmra.mrb[0].mxu0 %v24
  %v678 = vpop.f32.mrb[0].mxu0
  %v679 = vadd.f32 %v127, %v678
  %v680 = vpop.f32.mrb[0].mxu0
  %v681 = vadd.f32 %v131, %v680
  %v682 = vpop.f32.mrb[0].mxu0
  %v683 = vadd.f32 %v127, %v682
  %v684 = vpop.f32.mrb[0].mxu0
  %v685 = vadd.f32 %v131, %v684
  %686 = vdwg.mxu0
  %687 = vmatprep.subr.bf16.mxu0 %v445
  %688 = vmatpush1.bf16.msra.mxu0 %v444
  %689 = vmatprep.subr.bf16.mxu0 %v451
  %690 = vmatpush1.bf16.msra.mxu0 %v450
  %691 = vmatprep.subr.bf16.mxu0 %v457
  %692 = vmatpush1.bf16.msra.mxu0 %v456
  %693 = vmatprep.subr.bf16.mxu0 %v463
  %694 = vmatpush1.bf16.msra.mxu0 %v462
  %695 = vmatprep.subr.bf16.mxu0 %v469
  %696 = vmatpush1.bf16.msra.mxu0 %v468
  %697 = vmatprep.subr.bf16.mxu0 %v475
  %698 = vmatpush1.bf16.msra.mxu0 %v474
  %699 = vmatprep.subr.bf16.mxu0 %v481
  %700 = vmatpush1.bf16.msra.mxu0 %v480
  %701 = vmatprep.subr.bf16.mxu0 %v487
  %702 = vmatpush1.bf16.msra.mxu0 %v486
  %703 = vmatprep.subr.bf16.mxu0 %v493
  %704 = vmatpush1.bf16.msra.mxu0 %v492
  %705 = vmatprep.subr.bf16.mxu0 %v499
  %706 = vmatpush1.bf16.msra.mxu0 %v498
  %707 = vmatprep.subr.bf16.mxu0 %v505
  %708 = vmatpush1.bf16.msra.mxu0 %v504
  %709 = vmatprep.subr.bf16.mxu0 %v511
  %710 = vmatpush1.bf16.msra.mxu0 %v510
  %711 = vmatprep.subr.bf16.mxu0 %v517
  %712 = vmatpush1.bf16.msra.mxu0 %v516
  %713 = vmatprep.subr.bf16.mxu0 %v523
  %714 = vmatpush1.bf16.msra.mxu0 %v522
  %715 = vmatprep.subr.bf16.mxu0 %v529
  %716 = vmatpush1.bf16.msra.mxu0 %v528
  %717 = vmatprep.subr.bf16.mxu0 %v535
  %718 = vmatpush1.bf16.msra.mxu0 %v534
  %719 = vmatprep.mubr.bf16.mxu0 %v23
  %720 = vmatmul.mubr.bf16.gmra.mrb[0].mxu0 %v22
  %v721 = vpop.f32.mrb[0].mxu0
  %v722 = vadd.f32 %v135, %v721
  %v723 = vpop.f32.mrb[0].mxu0
  %v724 = vadd.f32 %v139, %v723
  %v725 = vpop.f32.mrb[0].mxu0
  %v726 = vadd.f32 %v135, %v725
  %v727 = vpop.f32.mrb[0].mxu0
  %v728 = vadd.f32 %v139, %v727
  %729 = vmatprep.mubr.bf16.mxu0 %v25
  %730 = vmatmul.mubr.bf16.gmra.mrb[0].mxu0 %v24
  %v731 = vpop.f32.mrb[0].mxu0
  %v732 = vadd.f32 %v135, %v731
  %v733 = vpop.f32.mrb[0].mxu0
  %v734 = vadd.f32 %v139, %v733
  %v735 = vpop.f32.mrb[0].mxu0
  %v736 = vadd.f32 %v135, %v735
  %v737 = vpop.f32.mrb[0].mxu0
  %v738 = vadd.f32 %v139, %v737
  %739 = vdwg.mxu0
  %740 = vmatprep.subr.bf16.mxu0 %v447
  %741 = vmatpush1.bf16.msra.mxu0 %v446
  %742 = vmatprep.subr.bf16.mxu0 %v453
  %743 = vmatpush1.bf16.msra.mxu0 %v452
  %744 = vmatprep.subr.bf16.mxu0 %v459
  %745 = vmatpush1.bf16.msra.mxu0 %v458
  %746 = vmatprep.subr.bf16.mxu0 %v465
  %747 = vmatpush1.bf16.msra.mxu0 %v464
  %748 = vmatprep.subr.bf16.mxu0 %v471
  %749 = vmatpush1.bf16.msra.mxu0 %v470
  %750 = vmatprep.subr.bf16.mxu0 %v477
  %751 = vmatpush1.bf16.msra.mxu0 %v476
  %752 = vmatprep.subr.bf16.mxu0 %v483
  %753 = vmatpush1.bf16.msra.mxu0 %v482
  %754 = vmatprep.subr.bf16.mxu0 %v489
  %755 = vmatpush1.bf16.msra.mxu0 %v488
  %756 = vmatprep.subr.bf16.mxu0 %v495
  %757 = vmatpush1.bf16.msra.mxu0 %v494
  %758 = vmatprep.subr.bf16.mxu0 %v501
  %759 = vmatpush1.bf16.msra.mxu0 %v500
  %760 = vmatprep.subr.bf16.mxu0 %v507
  %761 = vmatpush1.bf16.msra.mxu0 %v506
  %762 = vmatprep.subr.bf16.mxu0 %v513
  %763 = vmatpush1.bf16.msra.mxu0 %v512
  %764 = vmatprep.subr.bf16.mxu0 %v519
  %765 = vmatpush1.bf16.msra.mxu0 %v518
  %766 = vmatprep.subr.bf16.mxu0 %v525
  %767 = vmatpush1.bf16.msra.mxu0 %v524
  %768 = vmatprep.subr.bf16.mxu0 %v531
  %769 = vmatpush1.bf16.msra.mxu0 %v530
  %770 = vmatprep.subr.bf16.mxu0 %v537
  %771 = vmatpush1.bf16.msra.mxu0 %v536
  %772 = vmatprep.mubr.bf16.mxu0 %v23
  %773 = vmatmul.mubr.bf16.gmra.mrb[0].mxu0 %v22
  %v774 = vpop.f32.mrb[0].mxu0
  %v775 = vadd.f32 %v143, %v774
  %v776 = vpop.f32.mrb[0].mxu0
  %v777 = vadd.f32 %v147, %v776
  %v778 = vpop.f32.mrb[0].mxu0
  %v779 = vadd.f32 %v143, %v778
  %v780 = vpop.f32.mrb[0].mxu0
  %v781 = vadd.f32 %v147, %v780
  %782 = vmatprep.mubr.bf16.mxu0 %v25
  %783 = vmatmul.mubr.bf16.gmra.mrb[0].mxu0 %v24
  %v784 = vpop.f32.mrb[0].mxu0
  %v785 = vadd.f32 %v143, %v784
  %v786 = vpop.f32.mrb[0].mxu0
  %v787 = vadd.f32 %v147, %v786
  %v788 = vpop.f32.mrb[0].mxu0
  %v789 = vadd.f32 %v143, %v788
  %v790 = vpop.f32.mrb[0].mxu0
  %v791 = vadd.f32 %v147, %v790
  %792 = vdwg.mxu0
  %v793 = vpack.c.bf16 %v673, %v669
  %v794 = vpack.c.bf16 %v675, %v671
  %v795 = vpack.c.bf16 %v726, %v722
  %v796 = vpack.c.bf16 %v728, %v724
  %v797 = vpack.c.bf16 %v779, %v775
  %v798 = vpack.c.bf16 %v781, %v777
  %v799 = vpack.c.bf16 %v683, %v679
  %v800 = vpack.c.bf16 %v685, %v681
  %v801 = vpack.c.bf16 %v736, %v732
  %v802 = vpack.c.bf16 %v738, %v734
  %v803 = vpack.c.bf16 %v789, %v785
  %v804 = vpack.c.bf16 %v791, %v787
  %v817 = vunpack.c.l.b16 %v793
  %v818 = vunpack.c.l.b16 %v794
  %v819 = vunpack.c.l.b16 %v795
  %v820 = vunpack.c.l.b16 %v796
  %v821 = vunpack.c.l.b16 %v797
  %v822 = vunpack.c.l.b16 %v798
  %v823 = vunpack.c.h.b16 %v793
  %v824 = vunpack.c.h.b16 %v794
  %v825 = vunpack.c.h.b16 %v795
  %v826 = vunpack.c.h.b16 %v796
  %v827 = vunpack.c.h.b16 %v797
  %v828 = vunpack.c.h.b16 %v798
  %v829 = vunpack.c.l.b16 %v799
  %v830 = vunpack.c.l.b16 %v800
  %v831 = vunpack.c.l.b16 %v801
  %v832 = vunpack.c.l.b16 %v802
  %v833 = vunpack.c.l.b16 %v803
  %v834 = vunpack.c.l.b16 %v804
  %v835 = vunpack.c.h.b16 %v799
  %v836 = vunpack.c.h.b16 %v800
  %v837 = vunpack.c.h.b16 %v801
  %v838 = vunpack.c.h.b16 %v802
  %v839 = vunpack.c.h.b16 %v803
  %v840 = vunpack.c.h.b16 %v804
  %v841 = vpack.c.b16 %v818, %v817
  %v842 = vpack.c.b16 %v820, %v819
  %v843 = vpack.c.b16 %v822, %v821
  %v844 = vpack.c.b16 %v824, %v823
  %v845 = vpack.c.b16 %v826, %v825
  %v846 = vpack.c.b16 %v828, %v827
  %v847 = vpack.c.b16 %v830, %v829
  %v848 = vpack.c.b16 %v832, %v831
  %v849 = vpack.c.b16 %v834, %v833
  %v850 = vpack.c.b16 %v836, %v835
  %v851 = vpack.c.b16 %v838, %v837
  %v852 = vpack.c.b16 %v840, %v839
  %865 = vst [vmem:[%s3] sm:$0xff] %v841
  %866 = vst [vmem:[%s3 + $0x8] sm:$0xff] %v842
  %867 = vst [vmem:[%s3 + $0x10] sm:$0xff] %v843
  %868 = vst [vmem:[%s3 + $0x18] sm:$0xff] %v844
  %869 = vst [vmem:[%s3 + $0x20] sm:$0xff] %v845
  %870 = vst [vmem:[%s3 + $0x28] sm:$0xff] %v846
  %871 = vst [vmem:[%s3 + $0x30] sm:$0xff] %v847
  %872 = vst [vmem:[%s3 + $0x38] sm:$0xff] %v848
  %873 = vst [vmem:[%s3 + $0x40] sm:$0xff] %v849
  %874 = vst [vmem:[%s3 + $0x48] sm:$0xff] %v850
  %875 = vst [vmem:[%s3 + $0x50] sm:$0xff] %v851
  %876 = vst [vmem:[%s3 + $0x58] sm:$0xff] %v852
  // Predicated region
  $region14: #{transformer_block.3} parent=0 // pred_check
    _
  $region15: #{transformer_block.3} parent=0 // pred_check_branch
    %878 = sbr.rel (0) target = $region17
  $region16: #{transformer_block.3} parent=0 // pred_region
    _
  $region17: #{transformer_block.3} parent=0 // pred_fallthru
    _
  // Predicated region
  $region18: #{transformer_block.3} parent=0 // pred_check
    _
  $region19: #{transformer_block.3} parent=0 // pred_check_branch
    %880 = sbr.rel (0) target = $region21
  $region20: #{transformer_block.3} parent=0 // pred_region
    _
  $region21: #{transformer_block.3} parent=0 // pred_fallthru
    _

// kernel: transformer_block.5
$region0: #{transformer_block.5}
  #allocation0 [shape = 'u32[]', space=smem, size = 0x4, offset = 0x4, fixed_abs, tag = 'smem constant byte address 0x4 - core index']
  #allocation1 [shape = 'u32[144,128]{1,0:T(1,128)}', space=vmem, size = 0x12000, scoped, tag = 'internal scratch']
  %s0 = inlined_call_operand.vmem [shape: f32[32,256], index: 0, kind: input, shape index: {}]
  %s1 = inlined_call_operand.vmem [shape: bf16[32,256], index: 1, kind: input, shape index: {}]
  %s2 = inlined_call_operand.vmem [shape: bf16[256,256], index: 2, kind: input, shape index: {}]
  %s3 = inlined_call_operand.vmem [shape: f32[1,256], index: 3, kind: input, shape index: {}]
  %s4 = inlined_call_operand.vmem [shape: f32[1,256], index: 4, kind: input, shape index: {}]
  %s5 = inlined_call_operand.vmem [shape: f32[1,256], index: 5, kind: input, shape index: {}]
  %s6 = inlined_call_operand.vmem [shape: bf16[256,512], index: 6, kind: input, shape index: {}]
  %s7 = inlined_call_operand.vmem [shape: f32[1,512], index: 7, kind: input, shape index: {}]
  %s8 = inlined_call_operand.vmem [shape: bf16[512,256], index: 8, kind: input, shape index: {}]
  %s9 = inlined_call_operand.vmem [shape: f32[1,256], index: 9, kind: input, shape index: {}]
  %s10 = inlined_call_operand.vmem [shape: f32[1,256], index: 10, kind: input, shape index: {}]
  %s11 = inlined_call_operand.vmem [shape: f32[1,256], index: 11, kind: input, shape index: {}]
  %s12 = inlined_call_operand.hbm [shape: f32[32,256], index: 12, kind: output, shape index: {}]
  %s13 = sld [smem:[#allocation0]]
  $region58: #{transformer_block.5} parent=0
    _
  %s15 = ssub.s32 1, %s13
  %s16 = scalar_select 0, %s15, %s13
  $region1: #{transformer_block.5} parent=0
    #allocation2 [shape = 'u8[32768]{0}', space=vmem, size = 0x8000, scoped, tag = 'output window, operand 0, single buffered']
    #allocation3 [shape = 's32[1]{0}', space=sflag, size = 0x4, scoped, tag = 'scoped memory for transformer_block.5']
    %17 = vsyncpa [#allocation3], 0
    // Predicated region
    $region2: #{transformer_block.5} parent=1 // pred_check
      _
    $region3: #{transformer_block.5} parent=1 // pred_check_branch
      %19 = sbr.rel (0) target = $region5
    $region4: #{transformer_block.5} parent=1 // pred_region
      _
    $region5: #{transformer_block.5} parent=1 // pred_fallthru
      _
    // Predicated region
    $region6: #{transformer_block.5} parent=1 // pred_check
      _
    $region7: #{transformer_block.5} parent=1 // pred_check_branch
      %21 = sbr.rel (0) target = $region9
    $region8: #{transformer_block.5} parent=1 // pred_region
      _
    $region9: #{transformer_block.5} parent=1 // pred_fallthru
      _
    // Predicated region
    $region10: #{transformer_block.5} parent=1 // pred_check
      _
    $region11: #{transformer_block.5} parent=1 // pred_check_branch
      %23 = sbr.rel (0) target = $region13
    $region12: #{transformer_block.5} parent=1 // pred_region
      _
    $region13: #{transformer_block.5} parent=1 // pred_fallthru
      _
    // Predicated region
    $region14: #{transformer_block.5} parent=1 // pred_check
      _
    $region15: #{transformer_block.5} parent=1 // pred_check_branch
      %25 = sbr.rel (0) target = $region17
    $region16: #{transformer_block.5} parent=1 // pred_region
      _
    $region17: #{transformer_block.5} parent=1 // pred_fallthru
      _
    // Predicated region
    $region18: #{transformer_block.5} parent=1 // pred_check
      _
    $region19: #{transformer_block.5} parent=1 // pred_check_branch
      %27 = sbr.rel (0) target = $region21
    $region20: #{transformer_block.5} parent=1 // pred_region
      _
    $region21: #{transformer_block.5} parent=1 // pred_fallthru
      _
    // Predicated region
    $region22: #{transformer_block.5} parent=1 // pred_check
      _
    $region23: #{transformer_block.5} parent=1 // pred_check_branch
      %29 = sbr.rel (0) target = $region25
    $region24: #{transformer_block.5} parent=1 // pred_region
      _
    $region25: #{transformer_block.5} parent=1 // pred_fallthru
      _
    // Predicated region
    $region26: #{transformer_block.5} parent=1 // pred_check
      _
    $region27: #{transformer_block.5} parent=1 // pred_check_branch
      %31 = sbr.rel (0) target = $region29
    $region28: #{transformer_block.5} parent=1 // pred_region
      _
    $region29: #{transformer_block.5} parent=1 // pred_fallthru
      _
    // Predicated region
    $region30: #{transformer_block.5} parent=1 // pred_check
      _
    $region31: #{transformer_block.5} parent=1 // pred_check_branch
      %33 = sbr.rel (0) target = $region33
    $region32: #{transformer_block.5} parent=1 // pred_region
      _
    $region33: #{transformer_block.5} parent=1 // pred_fallthru
      _
    // Predicated region
    $region34: #{transformer_block.5} parent=1 // pred_check
      _
    $region35: #{transformer_block.5} parent=1 // pred_check_branch
      %35 = sbr.rel (0) target = $region37
    $region36: #{transformer_block.5} parent=1 // pred_region
      _
    $region37: #{transformer_block.5} parent=1 // pred_fallthru
      _
    // Predicated region
    $region38: #{transformer_block.5} parent=1 // pred_check
      _
    $region39: #{transformer_block.5} parent=1 // pred_check_branch
      %37 = sbr.rel (0) target = $region41
    $region40: #{transformer_block.5} parent=1 // pred_region
      _
    $region41: #{transformer_block.5} parent=1 // pred_fallthru
      _
    // Predicated region
    $region42: #{transformer_block.5} parent=1 // pred_check
      _
    $region43: #{transformer_block.5} parent=1 // pred_check_branch
      %39 = sbr.rel (0) target = $region45
    $region44: #{transformer_block.5} parent=1 // pred_region
      _
    $region45: #{transformer_block.5} parent=1 // pred_fallthru
      _
    // Predicated region
    $region46: #{transformer_block.5} parent=1 // pred_check
      _
    $region47: #{transformer_block.5} parent=1 // pred_check_branch
      %41 = sbr.rel (0) target = $region49
    $region48: #{transformer_block.5} parent=1 // pred_region
      _
    $region49: #{transformer_block.5} parent=1 // pred_fallthru
      _
    %v42 = vld [vmem:[%s0] sm:$0xff]
    %v43 = vld [vmem:[%s0 + $0x8] sm:$0xff]
    %v44 = vld [vmem:[%s0 + $0x10] sm:$0xff]
    %v45 = vld [vmem:[%s0 + $0x18] sm:$0xff]
    %v46 = vld [vmem:[%s0 + $0x20] sm:$0xff]
    %v47 = vld [vmem:[%s0 + $0x28] sm:$0xff]
    %v48 = vld [vmem:[%s0 + $0x30] sm:$0xff]
    %v49 = vld [vmem:[%s0 + $0x38] sm:$0xff]
    %v50 = vld [vmem:[%s1] sm:$0xff]
    %v51 = vld [vmem:[%s1 + $0x8] sm:$0xff]
    %v52 = vld [vmem:[%s1 + $0x10] sm:$0xff]
    %v53 = vld [vmem:[%s1 + $0x18] sm:$0xff]
    %v54 = vld [vmem:[%s2] sm:$0xff]
    %v55 = vld [vmem:[%s2 + $0x8] sm:$0xff]
    %v56 = vld [vmem:[%s2 + $0x10] sm:$0xff]
    %v57 = vld [vmem:[%s2 + $0x18] sm:$0xff]
    %v58 = vld [vmem:[%s2 + $0x20] sm:$0xff]
    %v59 = vld [vmem:[%s2 + $0x28] sm:$0xff]
    %v60 = vld [vmem:[%s2 + $0x30] sm:$0xff]
    %v61 = vld [vmem:[%s2 + $0x38] sm:$0xff]
    %v62 = vld [vmem:[%s2 + $0x40] sm:$0xff]
    %v63 = vld [vmem:[%s2 + $0x48] sm:$0xff]
    %v64 = vld [vmem:[%s2 + $0x50] sm:$0xff]
    %v65 = vld [vmem:[%s2 + $0x58] sm:$0xff]
    %v66 = vld [vmem:[%s2 + $0x60] sm:$0xff]
    %v67 = vld [vmem:[%s2 + $0x68] sm:$0xff]
    %v68 = vld [vmem:[%s2 + $0x70] sm:$0xff]
    %v69 = vld [vmem:[%s2 + $0x78] sm:$0xff]
    %v70 = vld [vmem:[%s2 + $0x80] sm:$0xff]
    %v71 = vld [vmem:[%s2 + $0x88] sm:$0xff]
    %v72 = vld [vmem:[%s2 + $0x90] sm:$0xff]
    %v73 = vld [vmem:[%s2 + $0x98] sm:$0xff]
    %v74 = vld [vmem:[%s2 + $0xa0] sm:$0xff]
    %v75 = vld [vmem:[%s2 + $0xa8] sm:$0xff]
    %v76 = vld [vmem:[%s2 + $0xb0] sm:$0xff]
    %v77 = vld [vmem:[%s2 + $0xb8] sm:$0xff]
    %v78 = vld [vmem:[%s2 + $0xc0] sm:$0xff]
    %v79 = vld [vmem:[%s2 + $0xc8] sm:$0xff]
    %v80 = vld [vmem:[%s2 + $0xd0] sm:$0xff]
    %v81 = vld [vmem:[%s2 + $0xd8] sm:$0xff]
    %v82 = vld [vmem:[%s2 + $0xe0] sm:$0xff]
    %v83 = vld [vmem:[%s2 + $0xe8] sm:$0xff]
    %v84 = vld [vmem:[%s2 + $0xf0] sm:$0xff]
    %v85 = vld [vmem:[%s2 + $0xf8] sm:$0xff]
    %v86 = vld [vmem:[%s3] sm:$0x3]
    %v88 = vlaneseq
    %v89 = vshrl.u32 %v88, 7
    %v90 = vsub.s32 0, %v89
    %v91 = vrot.slane %v86, %v90
    %v92 = vlaneseq
    %v93 = vshrl.u32 %v92, 7
    %v94 = vsub.s32 1, %v93
    %v95 = vrot.slane %v86, %v94
    %v102 = vunpack.c.l.b16 %v50
    %v103 = vunpack.c.h.b16 %v50
    %v104 = vunpack.c.l.b16 %v51
    %v105 = vunpack.c.h.b16 %v51
    %v106 = vunpack.c.l.b16 %v52
    %v107 = vunpack.c.h.b16 %v52
    %v108 = vunpack.c.l.b16 %v53
    %v109 = vunpack.c.h.b16 %v53
    %v110 = vpack.c.b16 %v104, %v102
    %v111 = vpack.c.b16 %v105, %v103
    %v112 = vpack.c.b16 %v108, %v106
    %v113 = vpack.c.b16 %v109, %v107
    %v150 = vunpack.c.l.b16 %v54
    %v151 = vunpack.c.h.b16 %v54
    %v152 = vunpack.c.l.b16 %v55
    %v153 = vunpack.c.h.b16 %v55
    %v154 = vunpack.c.l.b16 %v56
    %v155 = vunpack.c.h.b16 %v56
    %v156 = vunpack.c.l.b16 %v57
    %v157 = vunpack.c.h.b16 %v57
    %v158 = vunpack.c.l.b16 %v58
    %v159 = vunpack.c.h.b16 %v58
    %v160 = vunpack.c.l.b16 %v59
    %v161 = vunpack.c.h.b16 %v59
    %v162 = vunpack.c.l.b16 %v60
    %v163 = vunpack.c.h.b16 %v60
    %v164 = vunpack.c.l.b16 %v61
    %v165 = vunpack.c.h.b16 %v61
    %v166 = vunpack.c.l.b16 %v62
    %v167 = vunpack.c.h.b16 %v62
    %v168 = vunpack.c.l.b16 %v63
    %v169 = vunpack.c.h.b16 %v63
    %v170 = vunpack.c.l.b16 %v64
    %v171 = vunpack.c.h.b16 %v64
    %v172 = vunpack.c.l.b16 %v65
    %v173 = vunpack.c.h.b16 %v65
    %v174 = vunpack.c.l.b16 %v66
    %v175 = vunpack.c.h.b16 %v66
    %v176 = vunpack.c.l.b16 %v67
    %v177 = vunpack.c.h.b16 %v67
    %v178 = vunpack.c.l.b16 %v68
    %v179 = vunpack.c.h.b16 %v68
    %v180 = vunpack.c.l.b16 %v69
    %v181 = vunpack.c.h.b16 %v69
    %v182 = vunpack.c.l.b16 %v70
    %v183 = vunpack.c.h.b16 %v70
    %v184 = vunpack.c.l.b16 %v71
    %v185 = vunpack.c.h.b16 %v71
    %v186 = vunpack.c.l.b16 %v72
    %v187 = vunpack.c.h.b16 %v72
    %v188 = vunpack.c.l.b16 %v73
    %v189 = vunpack.c.h.b16 %v73
    %v190 = vunpack.c.l.b16 %v74
    %v191 = vunpack.c.h.b16 %v74
    %v192 = vunpack.c.l.b16 %v75
    %v193 = vunpack.c.h.b16 %v75
    %v194 = vunpack.c.l.b16 %v76
    %v195 = vunpack.c.h.b16 %v76
    %v196 = vunpack.c.l.b16 %v77
    %v197 = vunpack.c.h.b16 %v77
    %v198 = vunpack.c.l.b16 %v78
    %v199 = vunpack.c.h.b16 %v78
    %v200 = vunpack.c.l.b16 %v79
    %v201 = vunpack.c.h.b16 %v79
    %v202 = vunpack.c.l.b16 %v80
    %v203 = vunpack.c.h.b16 %v80
    %v204 = vunpack.c.l.b16 %v81
    %v205 = vunpack.c.h.b16 %v81
    %v206 = vunpack.c.l.b16 %v82
    %v207 = vunpack.c.h.b16 %v82
    %v208 = vunpack.c.l.b16 %v83
    %v209 = vunpack.c.h.b16 %v83
    %v210 = vunpack.c.l.b16 %v84
    %v211 = vunpack.c.h.b16 %v84
    %v212 = vunpack.c.l.b16 %v85
    %v213 = vunpack.c.h.b16 %v85
    %v214 = vpack.c.b16 %v152, %v150
    %v215 = vpack.c.b16 %v153, %v151
    %v216 = vpack.c.b16 %v156, %v154
    %v217 = vpack.c.b16 %v157, %v155
    %v218 = vpack.c.b16 %v160, %v158
    %v219 = vpack.c.b16 %v161, %v159
    %v220 = vpack.c.b16 %v164, %v162
    %v221 = vpack.c.b16 %v165, %v163
    %v222 = vpack.c.b16 %v168, %v166
    %v223 = vpack.c.b16 %v169, %v167
    %v224 = vpack.c.b16 %v172, %v170
    %v225 = vpack.c.b16 %v173, %v171
    %v226 = vpack.c.b16 %v176, %v174
    %v227 = vpack.c.b16 %v177, %v175
    %v228 = vpack.c.b16 %v180, %v178
    %v229 = vpack.c.b16 %v181, %v179
    %v230 = vpack.c.b16 %v184, %v182
    %v231 = vpack.c.b16 %v185, %v183
    %v232 = vpack.c.b16 %v188, %v186
    %v233 = vpack.c.b16 %v189, %v187
    %v234 = vpack.c.b16 %v192, %v190
    %v235 = vpack.c.b16 %v193, %v191
    %v236 = vpack.c.b16 %v196, %v194
    %v237 = vpack.c.b16 %v197, %v195
    %v238 = vpack.c.b16 %v200, %v198
    %v239 = vpack.c.b16 %v201, %v199
    %v240 = vpack.c.b16 %v204, %v202
    %v241 = vpack.c.b16 %v205, %v203
    %v242 = vpack.c.b16 %v208, %v206
    %v243 = vpack.c.b16 %v209, %v207
    %v244 = vpack.c.b16 %v212, %v210
    %v245 = vpack.c.b16 %v213, %v211
    %278 = vmatprep.subr.bf16.mxu0 %v215
    %279 = vmatpush1.bf16.msra.mxu0 %v214
    %280 = vmatprep.subr.bf16.mxu0 %v217
    %281 = vmatpush1.bf16.msra.mxu0 %v216
    %282 = vmatprep.subr.bf16.mxu0 %v219
    %283 = vmatpush1.bf16.msra.mxu0 %v218
    %284 = vmatprep.subr.bf16.mxu0 %v221
    %285 = vmatpush1.bf16.msra.mxu0 %v220
    %286 = vmatprep.subr.bf16.mxu0 %v223
    %287 = vmatpush1.bf16.msra.mxu0 %v222
    %288 = vmatprep.subr.bf16.mxu0 %v225
    %289 = vmatpush1.bf16.msra.mxu0 %v224
    %290 = vmatprep.subr.bf16.mxu0 %v227
    %291 = vmatpush1.bf16.msra.mxu0 %v226
    %292 = vmatprep.subr.bf16.mxu0 %v229
    %293 = vmatpush1.bf16.msra.mxu0 %v228
    %294 = vmatprep.subr.bf16.mxu0 %v231
    %295 = vmatpush1.bf16.msra.mxu0 %v230
    %296 = vmatprep.subr.bf16.mxu0 %v233
    %297 = vmatpush1.bf16.msra.mxu0 %v232
    %298 = vmatprep.subr.bf16.mxu0 %v235
    %299 = vmatpush1.bf16.msra.mxu0 %v234
    %300 = vmatprep.subr.bf16.mxu0 %v237
    %301 = vmatpush1.bf16.msra.mxu0 %v236
    %302 = vmatprep.subr.bf16.mxu0 %v239
    %303 = vmatpush1.bf16.msra.mxu0 %v238
    %304 = vmatprep.subr.bf16.mxu0 %v241
    %305 = vmatpush1.bf16.msra.mxu0 %v240
    %306 = vmatprep.subr.bf16.mxu0 %v243
    %307 = vmatpush1.bf16.msra.mxu0 %v242
    %308 = vmatprep.subr.bf16.mxu0 %v245
    %309 = vmatpush1.bf16.msra.mxu0 %v244
    %310 = vmatprep.mubr.bf16.mxu0 %v111
    %311 = vmatmul.mubr.bf16.gmra.mrb[0].mxu0 %v110
    %v312 = vpop.f32.mrb[0].mxu0
    %v313 = vadd.f32 %v91, %v312
    %v314 = vpop.f32.mrb[0].mxu0
    %v315 = vadd.f32 %v95, %v314
    %v316 = vpop.f32.mrb[0].mxu0
    %v317 = vadd.f32 %v91, %v316
    %v318 = vpop.f32.mrb[0].mxu0
    %v319 = vadd.f32 %v95, %v318
    %320 = vmatprep.mubr.bf16.mxu0 %v113
    %321 = vmatmul.mubr.bf16.gmra.mrb[0].mxu0 %v112
    %v322 = vpop.f32.mrb[0].mxu0
    %v323 = vadd.f32 %v91, %v322
    %v324 = vpop.f32.mrb[0].mxu0
    %v325 = vadd.f32 %v95, %v324
    %v326 = vpop.f32.mrb[0].mxu0
    %v327 = vadd.f32 %v91, %v326
    %v328 = vpop.f32.mrb[0].mxu0
    %v329 = vadd.f32 %v95, %v328
    %330 = vdwg.mxu0
    %v331 = vadd.f32 %v42, %v313
    %v332 = vadd.f32 %v43, %v315
    %v333 = vadd.f32 %v44, %v317
    %v334 = vadd.f32 %v45, %v319
    %v335 = vadd.f32 %v46, %v323
    %v336 = vadd.f32 %v47, %v325
    %v337 = vadd.f32 %v48, %v327
    %v338 = vadd.f32 %v49, %v329
    %v339 = vld [vmem:[%s4] sm:$0x3]
    %v340 = vld [vmem:[%s5] sm:$0x3]
    %v341 = vadd.f32 %v331, %v332
    %342 = vadd.xlane.f32.xlu0 %v341
    %v343 = vpop.xlane.xlu0 %342
    %v344 = vadd.f32 %v333, %v334
    %345 = vadd.xlane.f32.xlu0 %v344
    %v346 = vpop.xlane.xlu0 %345
    %v347 = vadd.f32 %v335, %v336
    %348 = vadd.xlane.f32.xlu0 %v347
    %v349 = vpop.xlane.xlu0 %348
    %v350 = vadd.f32 %v337, %v338
    %351 = vadd.xlane.f32.xlu0 %v350
    %v352 = vpop.xlane.xlu0 %351
    %v353 = vrcp.pop 256.0
    %v354 = vmul.f32 %v343, %v353
    %v355 = vmul.f32 %v346, %v353
    %v356 = vmul.f32 %v349, %v353
    %v357 = vmul.f32 %v352, %v353
    %v358 = vsub.f32 %v331, %v354
    %v359 = vsub.f32 %v332, %v354
    %v360 = vsub.f32 %v333, %v355
    %v361 = vsub.f32 %v334, %v355
    %v362 = vsub.f32 %v335, %v356
    %v363 = vsub.f32 %v336, %v356
    %v364 = vsub.f32 %v337, %v357
    %v365 = vsub.f32 %v338, %v357
    %v366 = vmul.f32 %v358, %v358
    %v367 = vmul.f32 %v359, %v359
    %v368 = vmul.f32 %v360, %v360
    %v369 = vmul.f32 %v361, %v361
    %v370 = vmul.f32 %v362, %v362
    %v371 = vmul.f32 %v363, %v363
    %v372 = vmul.f32 %v364, %v364
    %v373 = vmul.f32 %v365, %v365
    %v374 = vadd.f32 %v366, %v367
    %375 = vadd.xlane.f32.xlu0 %v374
    %v376 = vpop.xlane.xlu0 %375
    %v377 = vadd.f32 %v368, %v369
    %378 = vadd.xlane.f32.xlu0 %v377
    %v379 = vpop.xlane.xlu0 %378
    %v380 = vadd.f32 %v370, %v371
    %381 = vadd.xlane.f32.xlu0 %v380
    %v382 = vpop.xlane.xlu0 %381
    %v383 = vadd.f32 %v372, %v373
    %384 = vadd.xlane.f32.xlu0 %v383
    %v385 = vpop.xlane.xlu0 %384
    %v386 = vmul.f32 %v376, %v353
    %v387 = vmul.f32 %v379, %v353
    %v388 = vmul.f32 %v382, %v353
    %v389 = vmul.f32 %v385, %v353
    %v390 = vadd.f32 %v386, 1e-05
    %v391 = vadd.f32 %v387, 1e-05
    %v392 = vadd.f32 %v388, 1e-05
    %v393 = vadd.f32 %v389, 1e-05
    %v394 = vrsqrt.pop %v390
    %v395 = vrsqrt.pop %v391
    %v396 = vrsqrt.pop %v392
    %v397 = vrsqrt.pop %v393
    %v398 = vmul.f32 %v358, %v394
    %v399 = vmul.f32 %v359, %v394
    %v400 = vmul.f32 %v360, %v395
    %v401 = vmul.f32 %v361, %v395
    %v402 = vmul.f32 %v362, %v396
    %v403 = vmul.f32 %v363, %v396
    %v404 = vmul.f32 %v364, %v397
    %v405 = vmul.f32 %v365, %v397
    %v407 = vlaneseq
    %v408 = vshrl.u32 %v407, 7
    %v409 = vsub.s32 0, %v408
    %v410 = vrot.slane %v339, %v409
    %v411 = vlaneseq
    %v412 = vshrl.u32 %v411, 7
    %v413 = vsub.s32 1, %v412
    %v414 = vrot.slane %v339, %v413
    %v417 = vmul.f32 %v398, %v410
    %v418 = vmul.f32 %v399, %v414
    %v419 = vmul.f32 %v400, %v410
    %v420 = vmul.f32 %v401, %v414
    %v421 = vmul.f32 %v402, %v410
    %v422 = vmul.f32 %v403, %v414
    %v423 = vmul.f32 %v404, %v410
    %v424 = vmul.f32 %v405, %v414
    %v426 = vlaneseq
    %v427 = vshrl.u32 %v426, 7
    %v428 = vsub.s32 0, %v427
    %v429 = vrot.slane %v340, %v428
    %v430 = vlaneseq
    %v431 = vshrl.u32 %v430, 7
    %v432 = vsub.s32 1, %v431
    %v433 = vrot.slane %v340, %v432
    %v436 = vadd.f32 %v417, %v429
    %v437 = vadd.f32 %v418, %v433
    %v438 = vadd.f32 %v419, %v429
    %v439 = vadd.f32 %v420, %v433
    %v440 = vadd.f32 %v421, %v429
    %v441 = vadd.f32 %v422, %v433
    %v442 = vadd.f32 %v423, %v429
    %v443 = vadd.f32 %v424, %v433
    %v444 = vpack.c.bf16 %v438, %v436
    %v445 = vpack.c.bf16 %v439, %v437
    %v446 = vpack.c.bf16 %v442, %v440
    %v447 = vpack.c.bf16 %v443, %v441
    %v448 = vld [vmem:[%s6] sm:$0xff]
    %v449 = vld [vmem:[%s6 + $0x8] sm:$0xff]
    %v450 = vld [vmem:[%s6 + $0x10] sm:$0xff]
    %v451 = vld [vmem:[%s6 + $0x18] sm:$0xff]
    %v452 = vld [vmem:[%s6 + $0x20] sm:$0xff]
    %v453 = vld [vmem:[%s6 + $0x28] sm:$0xff]
    %v454 = vld [vmem:[%s6 + $0x30] sm:$0xff]
    %v455 = vld [vmem:[%s6 + $0x38] sm:$0xff]
    %v456 = vld [vmem:[%s6 + $0x40] sm:$0xff]
    %v457 = vld [vmem:[%s6 + $0x48] sm:$0xff]
    %v458 = vld [vmem:[%s6 + $0x50] sm:$0xff]
    %v459 = vld [vmem:[%s6 + $0x58] sm:$0xff]
    %v460 = vld [vmem:[%s6 + $0x60] sm:$0xff]
    %v461 = vld [vmem:[%s6 + $0x68] sm:$0xff]
    %v462 = vld [vmem:[%s6 + $0x70] sm:$0xff]
    %v463 = vld [vmem:[%s6 + $0x78] sm:$0xff]
    %v464 = vld [vmem:[%s6 + $0x80] sm:$0xff]
    %v465 = vld [vmem:[%s6 + $0x88] sm:$0xff]
    %v466 = vld [vmem:[%s6 + $0x90] sm:$0xff]
    %v467 = vld [vmem:[%s6 + $0x98] sm:$0xff]
    %v468 = vld [vmem:[%s6 + $0xa0] sm:$0xff]
    %v469 = vld [vmem:[%s6 + $0xa8] sm:$0xff]
    %v470 = vld [vmem:[%s6 + $0xb0] sm:$0xff]
    %v471 = vld [vmem:[%s6 + $0xb8] sm:$0xff]
    %v472 = vld [vmem:[%s6 + $0xc0] sm:$0xff]
    %v473 = vld [vmem:[%s6 + $0xc8] sm:$0xff]
    %v474 = vld [vmem:[%s6 + $0xd0] sm:$0xff]
    %v475 = vld [vmem:[%s6 + $0xd8] sm:$0xff]
    %v476 = vld [vmem:[%s6 + $0xe0] sm:$0xff]
    %v477 = vld [vmem:[%s6 + $0xe8] sm:$0xff]
    %v478 = vld [vmem:[%s6 + $0xf0] sm:$0xff]
    %v479 = vld [vmem:[%s6 + $0xf8] sm:$0xff]
    %v480 = vld [vmem:[%s6 + $0x100] sm:$0xff]
    %v481 = vld [vmem:[%s6 + $0x108] sm:$0xff]
    %v482 = vld [vmem:[%s6 + $0x110] sm:$0xff]
    %v483 = vld [vmem:[%s6 + $0x118] sm:$0xff]
    %v484 = vld [vmem:[%s6 + $0x120] sm:$0xff]
    %v485 = vld [vmem:[%s6 + $0x128] sm:$0xff]
    %v486 = vld [vmem:[%s6 + $0x130] sm:$0xff]
    %v487 = vld [vmem:[%s6 + $0x138] sm:$0xff]
    %v488 = vld [vmem:[%s6 + $0x140] sm:$0xff]
    %v489 = vld [vmem:[%s6 + $0x148] sm:$0xff]
    %v490 = vld [vmem:[%s6 + $0x150] sm:$0xff]
    %v491 = vld [vmem:[%s6 + $0x158] sm:$0xff]
    %v492 = vld [vmem:[%s6 + $0x160] sm:$0xff]
    %v493 = vld [vmem:[%s6 + $0x168] sm:$0xff]
    %v494 = vld [vmem:[%s6 + $0x170] sm:$0xff]
    %v495 = vld [vmem:[%s6 + $0x178] sm:$0xff]
    %v496 = vld [vmem:[%s6 + $0x180] sm:$0xff]
    %v497 = vld [vmem:[%s6 + $0x188] sm:$0xff]
    %v498 = vld [vmem:[%s6 + $0x190] sm:$0xff]
    %v499 = vld [vmem:[%s6 + $0x198] sm:$0xff]
    %v500 = vld [vmem:[%s6 + $0x1a0] sm:$0xff]
    %v501 = vld [vmem:[%s6 + $0x1a8] sm:$0xff]
    %v502 = vld [vmem:[%s6 + $0x1b0] sm:$0xff]
    %v503 = vld [vmem:[%s6 + $0x1b8] sm:$0xff]
    %v504 = vld [vmem:[%s6 + $0x1c0] sm:$0xff]
    %v505 = vld [vmem:[%s6 + $0x1c8] sm:$0xff]
    %v506 = vld [vmem:[%s6 + $0x1d0] sm:$0xff]
    %v507 = vld [vmem:[%s6 + $0x1d8] sm:$0xff]
    %v508 = vld [vmem:[%s6 + $0x1e0] sm:$0xff]
    %v509 = vld [vmem:[%s6 + $0x1e8] sm:$0xff]
    %v510 = vld [vmem:[%s6 + $0x1f0] sm:$0xff]
    %v511 = vld [vmem:[%s6 + $0x1f8] sm:$0xff]
    %v512 = vld [vmem:[%s7] sm:$0xf]
    %v514 = vlaneseq
    %v515 = vshrl.u32 %v514, 7
    %v516 = vsub.s32 0, %v515
    %v517 = vrot.slane %v512, %v516
    %v518 = vlaneseq
    %v519 = vshrl.u32 %v518, 7
    %v520 = vsub.s32 1, %v519
    %v521 = vrot.slane %v512, %v520
    %v522 = vlaneseq
    %v523 = vshrl.u32 %v522, 7
    %v524 = vsub.s32 2, %v523
    %v525 = vrot.slane %v512, %v524
    %v526 = vlaneseq
    %v527 = vshrl.u32 %v526, 7
    %v528 = vsub.s32 3, %v527
    %v529 = vrot.slane %v512, %v528
    %v598 = vunpack.c.l.b16 %v448
    %v599 = vunpack.c.h.b16 %v448
    %v600 = vunpack.c.l.b16 %v449
    %v601 = vunpack.c.h.b16 %v449
    %v602 = vunpack.c.l.b16 %v450
    %v603 = vunpack.c.h.b16 %v450
    %v604 = vunpack.c.l.b16 %v451
    %v605 = vunpack.c.h.b16 %v451
    %v606 = vunpack.c.l.b16 %v452
    %v607 = vunpack.c.h.b16 %v452
    %v608 = vunpack.c.l.b16 %v453
    %v609 = vunpack.c.h.b16 %v453
    %v610 = vunpack.c.l.b16 %v454
    %v611 = vunpack.c.h.b16 %v454
    %v612 = vunpack.c.l.b16 %v455
    %v613 = vunpack.c.h.b16 %v455
    %v614 = vunpack.c.l.b16 %v456
    %v615 = vunpack.c.h.b16 %v456
    %v616 = vunpack.c.l.b16 %v457
    %v617 = vunpack.c.h.b16 %v457
    %v618 = vunpack.c.l.b16 %v458
    %v619 = vunpack.c.h.b16 %v458
    %v620 = vunpack.c.l.b16 %v459
    %v621 = vunpack.c.h.b16 %v459
    %v622 = vunpack.c.l.b16 %v460
    %v623 = vunpack.c.h.b16 %v460
    %v624 = vunpack.c.l.b16 %v461
    %v625 = vunpack.c.h.b16 %v461
    %v626 = vunpack.c.l.b16 %v462
    %v627 = vunpack.c.h.b16 %v462
    %v628 = vunpack.c.l.b16 %v463
    %v629 = vunpack.c.h.b16 %v463
    %v630 = vunpack.c.l.b16 %v464
    %v631 = vunpack.c.h.b16 %v464
    %v632 = vunpack.c.l.b16 %v465
    %v633 = vunpack.c.h.b16 %v465
    %v634 = vunpack.c.l.b16 %v466
    %v635 = vunpack.c.h.b16 %v466
    %v636 = vunpack.c.l.b16 %v467
    %v637 = vunpack.c.h.b16 %v467
    %v638 = vunpack.c.l.b16 %v468
    %v639 = vunpack.c.h.b16 %v468
    %v640 = vunpack.c.l.b16 %v469
    %v641 = vunpack.c.h.b16 %v469
    %v642 = vunpack.c.l.b16 %v470
    %v643 = vunpack.c.h.b16 %v470
    %v644 = vunpack.c.l.b16 %v471
    %v645 = vunpack.c.h.b16 %v471
    %v646 = vunpack.c.l.b16 %v472
    %v647 = vunpack.c.h.b16 %v472
    %v648 = vunpack.c.l.b16 %v473
    %v649 = vunpack.c.h.b16 %v473
    %v650 = vunpack.c.l.b16 %v474
    %v651 = vunpack.c.h.b16 %v474
    %v652 = vunpack.c.l.b16 %v475
    %v653 = vunpack.c.h.b16 %v475
    %v654 = vunpack.c.l.b16 %v476
    %v655 = vunpack.c.h.b16 %v476
    %v656 = vunpack.c.l.b16 %v477
    %v657 = vunpack.c.h.b16 %v477
    %v658 = vunpack.c.l.b16 %v478
    %v659 = vunpack.c.h.b16 %v478
    %v660 = vunpack.c.l.b16 %v479
    %v661 = vunpack.c.h.b16 %v479
    %v662 = vunpack.c.l.b16 %v480
    %v663 = vunpack.c.h.b16 %v480
    %v664 = vunpack.c.l.b16 %v481
    %v665 = vunpack.c.h.b16 %v481
    %v666 = vunpack.c.l.b16 %v482
    %v667 = vunpack.c.h.b16 %v482
    %v668 = vunpack.c.l.b16 %v483
    %v669 = vunpack.c.h.b16 %v483
    %v670 = vunpack.c.l.b16 %v484
    %v671 = vunpack.c.h.b16 %v484
    %v672 = vunpack.c.l.b16 %v485
    %v673 = vunpack.c.h.b16 %v485
    %v674 = vunpack.c.l.b16 %v486
    %v675 = vunpack.c.h.b16 %v486
    %v676 = vunpack.c.l.b16 %v487
    %v677 = vunpack.c.h.b16 %v487
    %v678 = vunpack.c.l.b16 %v488
    %v679 = vunpack.c.h.b16 %v488
    %v680 = vunpack.c.l.b16 %v489
    %v681 = vunpack.c.h.b16 %v489
    %v682 = vunpack.c.l.b16 %v490
    %v683 = vunpack.c.h.b16 %v490
    %v684 = vunpack.c.l.b16 %v491
    %v685 = vunpack.c.h.b16 %v491
    %v686 = vunpack.c.l.b16 %v492
    %v687 = vunpack.c.h.b16 %v492
    %v688 = vunpack.c.l.b16 %v493
    %v689 = vunpack.c.h.b16 %v493
    %v690 = vunpack.c.l.b16 %v494
    %v691 = vunpack.c.h.b16 %v494
    %v692 = vunpack.c.l.b16 %v495
    %v693 = vunpack.c.h.b16 %v495
    %v694 = vunpack.c.l.b16 %v496
    %v695 = vunpack.c.h.b16 %v496
    %v696 = vunpack.c.l.b16 %v497
    %v697 = vunpack.c.h.b16 %v497
    %v698 = vunpack.c.l.b16 %v498
    %v699 = vunpack.c.h.b16 %v498
    %v700 = vunpack.c.l.b16 %v499
    %v701 = vunpack.c.h.b16 %v499
    %v702 = vunpack.c.l.b16 %v500
    %v703 = vunpack.c.h.b16 %v500
    %v704 = vunpack.c.l.b16 %v501
    %v705 = vunpack.c.h.b16 %v501
    %v706 = vunpack.c.l.b16 %v502
    %v707 = vunpack.c.h.b16 %v502
    %v708 = vunpack.c.l.b16 %v503
    %v709 = vunpack.c.h.b16 %v503
    %v710 = vunpack.c.l.b16 %v504
    %v711 = vunpack.c.h.b16 %v504
    %v712 = vunpack.c.l.b16 %v505
    %v713 = vunpack.c.h.b16 %v505
    %v714 = vunpack.c.l.b16 %v506
    %v715 = vunpack.c.h.b16 %v506
    %v716 = vunpack.c.l.b16 %v507
    %v717 = vunpack.c.h.b16 %v507
    %v718 = vunpack.c.l.b16 %v508
    %v719 = vunpack.c.h.b16 %v508
    %v720 = vunpack.c.l.b16 %v509
    %v721 = vunpack.c.h.b16 %v509
    %v722 = vunpack.c.l.b16 %v510
    %v723 = vunpack.c.h.b16 %v510
    %v724 = vunpack.c.l.b16 %v511
    %v725 = vunpack.c.h.b16 %v511
    %v726 = vpack.c.b16 %v602, %v598
    %v727 = vpack.c.b16 %v603, %v599
    %v728 = vpack.c.b16 %v604, %v600
    %v729 = vpack.c.b16 %v605, %v601
    %v730 = vpack.c.b16 %v610, %v606
    %v731 = vpack.c.b16 %v611, %v607
    %v732 = vpack.c.b16 %v612, %v608
    %v733 = vpack.c.b16 %v613, %v609
    %v734 = vpack.c.b16 %v618, %v614
    %v735 = vpack.c.b16 %v619, %v615
    %v736 = vpack.c.b16 %v620, %v616
    %v737 = vpack.c.b16 %v621, %v617
    %v738 = vpack.c.b16 %v626, %v622
    %v739 = vpack.c.b16 %v627, %v623
    %v740 = vpack.c.b16 %v628, %v624
    %v741 = vpack.c.b16 %v629, %v625
    %v742 = vpack.c.b16 %v634, %v630
    %v743 = vpack.c.b16 %v635, %v631
    %v744 = vpack.c.b16 %v636, %v632
    %v745 = vpack.c.b16 %v637, %v633
    %v746 = vpack.c.b16 %v642, %v638
    %v747 = vpack.c.b16 %v643, %v639
    %v748 = vpack.c.b16 %v644, %v640
    %v749 = vpack.c.b16 %v645, %v641
    %v750 = vpack.c.b16 %v650, %v646
    %v751 = vpack.c.b16 %v651, %v647
    %v752 = vpack.c.b16 %v652, %v648
    %v753 = vpack.c.b16 %v653, %v649
    %v754 = vpack.c.b16 %v658, %v654
    %v755 = vpack.c.b16 %v659, %v655
    %v756 = vpack.c.b16 %v660, %v656
    %v757 = vpack.c.b16 %v661, %v657
    %v758 = vpack.c.b16 %v666, %v662
    %v759 = vpack.c.b16 %v667, %v663
    %v760 = vpack.c.b16 %v668, %v664
    %v761 = vpack.c.b16 %v669, %v665
    %v762 = vpack.c.b16 %v674, %v670
    %v763 = vpack.c.b16 %v675, %v671
    %v764 = vpack.c.b16 %v676, %v672
    %v765 = vpack.c.b16 %v677, %v673
    %v766 = vpack.c.b16 %v682, %v678
    %v767 = vpack.c.b16 %v683, %v679
    %v768 = vpack.c.b16 %v684, %v680
    %v769 = vpack.c.b16 %v685, %v681
    %v770 = vpack.c.b16 %v690, %v686
    %v771 = vpack.c.b16 %v691, %v687
    %v772 = vpack.c.b16 %v692, %v688
    %v773 = vpack.c.b16 %v693, %v689
    %v774 = vpack.c.b16 %v698, %v694
    %v775 = vpack.c.b16 %v699, %v695
    %v776 = vpack.c.b16 %v700, %v696
    %v777 = vpack.c.b16 %v701, %v697
    %v778 = vpack.c.b16 %v706, %v702
    %v779 = vpack.c.b16 %v707, %v703
    %v780 = vpack.c.b16 %v708, %v704
    %v781 = vpack.c.b16 %v709, %v705
    %v782 = vpack.c.b16 %v714, %v710
    %v783 = vpack.c.b16 %v715, %v711
    %v784 = vpack.c.b16 %v716, %v712
    %v785 = vpack.c.b16 %v717, %v713
    %v786 = vpack.c.b16 %v722, %v718
    %v787 = vpack.c.b16 %v723, %v719
    %v788 = vpack.c.b16 %v724, %v720
    %v789 = vpack.c.b16 %v725, %v721
    %854 = vmatprep.subr.bf16.mxu0 %v727
    %855 = vmatpush1.bf16.msra.mxu0 %v726
    %856 = vmatprep.subr.bf16.mxu0 %v731
    %857 = vmatpush1.bf16.msra.mxu0 %v730
    %858 = vmatprep.subr.bf16.mxu0 %v735
    %859 = vmatpush1.bf16.msra.mxu0 %v734
    %860 = vmatprep.subr.bf16.mxu0 %v739
    %861 = vmatpush1.bf16.msra.mxu0 %v738
    %862 = vmatprep.subr.bf16.mxu0 %v743
    %863 = vmatpush1.bf16.msra.mxu0 %v742
    %864 = vmatprep.subr.bf16.mxu0 %v747
    %865 = vmatpush1.bf16.msra.mxu0 %v746
    %866 = vmatprep.subr.bf16.mxu0 %v751
    %867 = vmatpush1.bf16.msra.mxu0 %v750
    %868 = vmatprep.subr.bf16.mxu0 %v755
    %869 = vmatpush1.bf16.msra.mxu0 %v754
    %870 = vmatprep.subr.bf16.mxu0 %v759
    %871 = vmatpush1.bf16.msra.mxu0 %v758
    %872 = vmatprep.subr.bf16.mxu0 %v763
    %873 = vmatpush1.bf16.msra.mxu0 %v762
    %874 = vmatprep.subr.bf16.mxu0 %v767
    %875 = vmatpush1.bf16.msra.mxu0 %v766
    %876 = vmatprep.subr.bf16.mxu0 %v771
    %877 = vmatpush1.bf16.msra.mxu0 %v770
    %878 = vmatprep.subr.bf16.mxu0 %v775
    %879 = vmatpush1.bf16.msra.mxu0 %v774
    %880 = vmatprep.subr.bf16.mxu0 %v779
    %881 = vmatpush1.bf16.msra.mxu0 %v778
    %882 = vmatprep.subr.bf16.mxu0 %v783
    %883 = vmatpush1.bf16.msra.mxu0 %v782
    %884 = vmatprep.subr.bf16.mxu0 %v787
    %885 = vmatpush1.bf16.msra.mxu0 %v786
    %886 = vmatprep.mubr.bf16.mxu0 %v445
    %887 = vmatmul.mubr.bf16.gmra.mrb[0].mxu0 %v444
    %v888 = vpop.f32.mrb[0].mxu0
    %v889 = vadd.f32 %v517, %v888
    %v890 = vpop.f32.mrb[0].mxu0
    %v891 = vadd.f32 %v521, %v890
    %v892 = vpop.f32.mrb[0].mxu0
    %v893 = vadd.f32 %v517, %v892
    %v894 = vpop.f32.mrb[0].mxu0
    %v895 = vadd.f32 %v521, %v894
    %896 = vmatprep.mubr.bf16.mxu0 %v447
    %897 = vmatmul.mubr.bf16.gmra.mrb[0].mxu0 %v446
    %v898 = vpop.f32.mrb[0].mxu0
    %v899 = vadd.f32 %v517, %v898
    %v900 = vpop.f32.mrb[0].mxu0
    %v901 = vadd.f32 %v521, %v900
    %v902 = vpop.f32.mrb[0].mxu0
    %v903 = vadd.f32 %v517, %v902
    %v904 = vpop.f32.mrb[0].mxu0
    %v905 = vadd.f32 %v521, %v904
    %906 = vdwg.mxu0
    %907 = vmatprep.subr.bf16.mxu0 %v729
    %908 = vmatpush1.bf16.msra.mxu0 %v728
    %909 = vmatprep.subr.bf16.mxu0 %v733
    %910 = vmatpush1.bf16.msra.mxu0 %v732
    %911 = vmatprep.subr.bf16.mxu0 %v737
    %912 = vmatpush1.bf16.msra.mxu0 %v736
    %913 = vmatprep.subr.bf16.mxu0 %v741
    %914 = vmatpush1.bf16.msra.mxu0 %v740
    %915 = vmatprep.subr.bf16.mxu0 %v745
    %916 = vmatpush1.bf16.msra.mxu0 %v744
    %917 = vmatprep.subr.bf16.mxu0 %v749
    %918 = vmatpush1.bf16.msra.mxu0 %v748
    %919 = vmatprep.subr.bf16.mxu0 %v753
    %920 = vmatpush1.bf16.msra.mxu0 %v752
    %921 = vmatprep.subr.bf16.mxu0 %v757
    %922 = vmatpush1.bf16.msra.mxu0 %v756
    %923 = vmatprep.subr.bf16.mxu0 %v761
    %924 = vmatpush1.bf16.msra.mxu0 %v760
    %925 = vmatprep.subr.bf16.mxu0 %v765
    %926 = vmatpush1.bf16.msra.mxu0 %v764
    %927 = vmatprep.subr.bf16.mxu0 %v769
    %928 = vmatpush1.bf16.msra.mxu0 %v768
    %929 = vmatprep.subr.bf16.mxu0 %v773
    %930 = vmatpush1.bf16.msra.mxu0 %v772
    %931 = vmatprep.subr.bf16.mxu0 %v777
    %932 = vmatpush1.bf16.msra.mxu0 %v776
    %933 = vmatprep.subr.bf16.mxu0 %v781
    %934 = vmatpush1.bf16.msra.mxu0 %v780
    %935 = vmatprep.subr.bf16.mxu0 %v785
    %936 = vmatpush1.bf16.msra.mxu0 %v784
    %937 = vmatprep.subr.bf16.mxu0 %v789
    %938 = vmatpush1.bf16.msra.mxu0 %v788
    %939 = vmatprep.mubr.bf16.mxu0 %v445
    %940 = vmatmul.mubr.bf16.gmra.mrb[0].mxu0 %v444
    %v941 = vpop.f32.mrb[0].mxu0
    %v942 = vadd.f32 %v525, %v941
    %v943 = vpop.f32.mrb[0].mxu0
    %v944 = vadd.f32 %v529, %v943
    %v945 = vpop.f32.mrb[0].mxu0
    %v946 = vadd.f32 %v525, %v945
    %v947 = vpop.f32.mrb[0].mxu0
    %v948 = vadd.f32 %v529, %v947
    %949 = vmatprep.mubr.bf16.mxu0 %v447
    %950 = vmatmul.mubr.bf16.gmra.mrb[0].mxu0 %v446
    %v951 = vpop.f32.mrb[0].mxu0
    %v952 = vadd.f32 %v525, %v951
    %v953 = vpop.f32.mrb[0].mxu0
    %v954 = vadd.f32 %v529, %v953
    %v955 = vpop.f32.mrb[0].mxu0
    %v956 = vadd.f32 %v525, %v955
    %v957 = vpop.f32.mrb[0].mxu0
    %v958 = vadd.f32 %v529, %v957
    %959 = vdwg.mxu0
    %v960 = vmul.f32 %v889, 0.5
    %v961 = vmul.f32 %v891, 0.5
    %v962 = vmul.f32 %v942, 0.5
    %v963 = vmul.f32 %v944, 0.5
    %v964 = vmul.f32 %v893, 0.5
    %v965 = vmul.f32 %v895, 0.5
    %v966 = vmul.f32 %v946, 0.5
    %v967 = vmul.f32 %v948, 0.5
    %v968 = vmul.f32 %v899, 0.5
    %v969 = vmul.f32 %v901, 0.5
    %v970 = vmul.f32 %v952, 0.5
    %v971 = vmul.f32 %v954, 0.5
    %v972 = vmul.f32 %v903, 0.5
    %v973 = vmul.f32 %v905, 0.5
    %v974 = vmul.f32 %v956, 0.5
    %v975 = vmul.f32 %v958, 0.5
    %v976 = vmul.f32 %v889, 0.044715
    %v977 = vmul.f32 %v891, 0.044715
    %v978 = vmul.f32 %v942, 0.044715
    %v979 = vmul.f32 %v944, 0.044715
    %v980 = vmul.f32 %v893, 0.044715
    %v981 = vmul.f32 %v895, 0.044715
    %v982 = vmul.f32 %v946, 0.044715
    %v983 = vmul.f32 %v948, 0.044715
    %v984 = vmul.f32 %v899, 0.044715
    %v985 = vmul.f32 %v901, 0.044715
    %v986 = vmul.f32 %v952, 0.044715
    %v987 = vmul.f32 %v954, 0.044715
    %v988 = vmul.f32 %v903, 0.044715
    %v989 = vmul.f32 %v905, 0.044715
    %v990 = vmul.f32 %v956, 0.044715
    %v991 = vmul.f32 %v958, 0.044715
    %v992 = vmul.f32 %v976, %v889
    %v993 = vmul.f32 %v977, %v891
    %v994 = vmul.f32 %v978, %v942
    %v995 = vmul.f32 %v979, %v944
    %v996 = vmul.f32 %v980, %v893
    %v997 = vmul.f32 %v981, %v895
    %v998 = vmul.f32 %v982, %v946
    %v999 = vmul.f32 %v983, %v948
    %v1000 = vmul.f32 %v984, %v899
    %v1001 = vmul.f32 %v985, %v901
    %v1002 = vmul.f32 %v986, %v952
    %v1003 = vmul.f32 %v987, %v954
    %v1004 = vmul.f32 %v988, %v903
    %v1005 = vmul.f32 %v989, %v905
    %v1006 = vmul.f32 %v990, %v956
    %v1007 = vmul.f32 %v991, %v958
    %v1008 = vmul.f32 %v992, %v889
    %v1009 = vmul.f32 %v993, %v891
    %v1010 = vmul.f32 %v994, %v942
    %v1011 = vmul.f32 %v995, %v944
    %v1012 = vmul.f32 %v996, %v893
    %v1013 = vmul.f32 %v997, %v895
    %v1014 = vmul.f32 %v998, %v946
    %v1015 = vmul.f32 %v999, %v948
    %v1016 = vmul.f32 %v1000, %v899
    %v1017 = vmul.f32 %v1001, %v901
    %v1018 = vmul.f32 %v1002, %v952
    %v1019 = vmul.f32 %v1003, %v954
    %v1020 = vmul.f32 %v1004, %v903
    %v1021 = vmul.f32 %v1005, %v905
    %v1022 = vmul.f32 %v1006, %v956
    %v1023 = vmul.f32 %v1007, %v958
    %v1024 = vadd.f32 %v889, %v1008
    %v1025 = vadd.f32 %v891, %v1009
    %v1026 = vadd.f32 %v942, %v1010
    %v1027 = vadd.f32 %v944, %v1011
    %v1028 = vadd.f32 %v893, %v1012
    %v1029 = vadd.f32 %v895, %v1013
    %v1030 = vadd.f32 %v946, %v1014
    %v1031 = vadd.f32 %v948, %v1015
    %v1032 = vadd.f32 %v899, %v1016
    %v1033 = vadd.f32 %v901, %v1017
    %v1034 = vadd.f32 %v952, %v1018
    %v1035 = vadd.f32 %v954, %v1019
    %v1036 = vadd.f32 %v903, %v1020
    %v1037 = vadd.f32 %v905, %v1021
    %v1038 = vadd.f32 %v956, %v1022
    %v1039 = vadd.f32 %v958, %v1023
    %v1040 = vmul.f32 %v1024, 0.7978846
    %v1041 = vmul.f32 %v1025, 0.7978846
    %v1042 = vmul.f32 %v1026, 0.7978846
    %v1043 = vmul.f32 %v1027, 0.7978846
    %v1044 = vmul.f32 %v1028, 0.7978846
    %v1045 = vmul.f32 %v1029, 0.7978846
    %v1046 = vmul.f32 %v1030, 0.7978846
    %v1047 = vmul.f32 %v1031, 0.7978846
    %v1048 = vmul.f32 %v1032, 0.7978846
    %v1049 = vmul.f32 %v1033, 0.7978846
    %v1050 = vmul.f32 %v1034, 0.7978846
    %v1051 = vmul.f32 %v1035, 0.7978846
    %v1052 = vmul.f32 %v1036, 0.7978846
    %v1053 = vmul.f32 %v1037, 0.7978846
    %v1054 = vmul.f32 %v1038, 0.7978846
    %v1055 = vmul.f32 %v1039, 0.7978846
    %v1056 = vtanh.pop %v1040
    %v1057 = vtanh.pop %v1041
    %v1058 = vtanh.pop %v1042
    %v1059 = vtanh.pop %v1043
    %v1060 = vtanh.pop %v1044
    %v1061 = vtanh.pop %v1045
    %v1062 = vtanh.pop %v1046
    %v1063 = vtanh.pop %v1047
    %v1064 = vtanh.pop %v1048
    %v1065 = vtanh.pop %v1049
    %v1066 = vtanh.pop %v1050
    %v1067 = vtanh.pop %v1051
    %v1068 = vtanh.pop %v1052
    %v1069 = vtanh.pop %v1053
    %v1070 = vtanh.pop %v1054
    %v1071 = vtanh.pop %v1055
    %v1072 = vadd.f32 %v1056, 1.0
    %v1073 = vadd.f32 %v1057, 1.0
    %v1074 = vadd.f32 %v1058, 1.0
    %v1075 = vadd.f32 %v1059, 1.0
    %v1076 = vadd.f32 %v1060, 1.0
    %v1077 = vadd.f32 %v1061, 1.0
    %v1078 = vadd.f32 %v1062, 1.0
    %v1079 = vadd.f32 %v1063, 1.0
    %v1080 = vadd.f32 %v1064, 1.0
    %v1081 = vadd.f32 %v1065, 1.0
    %v1082 = vadd.f32 %v1066, 1.0
    %v1083 = vadd.f32 %v1067, 1.0
    %v1084 = vadd.f32 %v1068, 1.0
    %v1085 = vadd.f32 %v1069, 1.0
    %v1086 = vadd.f32 %v1070, 1.0
    %v1087 = vadd.f32 %v1071, 1.0
    %v1088 = vmul.f32 %v960, %v1072
    %v1089 = vmul.f32 %v961, %v1073
    %v1090 = vmul.f32 %v962, %v1074
    %v1091 = vmul.f32 %v963, %v1075
    %v1092 = vmul.f32 %v964, %v1076
    %v1093 = vmul.f32 %v965, %v1077
    %v1094 = vmul.f32 %v966, %v1078
    %v1095 = vmul.f32 %v967, %v1079
    %v1096 = vmul.f32 %v968, %v1080
    %v1097 = vmul.f32 %v969, %v1081
    %v1098 = vmul.f32 %v970, %v1082
    %v1099 = vmul.f32 %v971, %v1083
    %v1100 = vmul.f32 %v972, %v1084
    %v1101 = vmul.f32 %v973, %v1085
    %v1102 = vmul.f32 %v974, %v1086
    %v1103 = vmul.f32 %v975, %v1087
    %v1104 = vpack.c.bf16 %v1092, %v1088
    %v1105 = vpack.c.bf16 %v1093, %v1089
    %v1106 = vpack.c.bf16 %v1094, %v1090
    %v1107 = vpack.c.bf16 %v1095, %v1091
    %v1108 = vpack.c.bf16 %v1100, %v1096
    %v1109 = vpack.c.bf16 %v1101, %v1097
    %v1110 = vpack.c.bf16 %v1102, %v1098
    %v1111 = vpack.c.bf16 %v1103, %v1099
    %v1112 = vld [vmem:[%s8] sm:$0xff]
    %v1113 = vld [vmem:[%s8 + $0x8] sm:$0xff]
    %v1114 = vld [vmem:[%s8 + $0x10] sm:$0xff]
    %v1115 = vld [vmem:[%s8 + $0x18] sm:$0xff]
    %v1116 = vld [vmem:[%s8 + $0x20] sm:$0xff]
    %v1117 = vld [vmem:[%s8 + $0x28] sm:$0xff]
    %v1118 = vld [vmem:[%s8 + $0x30] sm:$0xff]
    %v1119 = vld [vmem:[%s8 + $0x38] sm:$0xff]
    %v1120 = vld [vmem:[%s8 + $0x40] sm:$0xff]
    %v1121 = vld [vmem:[%s8 + $0x48] sm:$0xff]
    %v1122 = vld [vmem:[%s8 + $0x50] sm:$0xff]
    %v1123 = vld [vmem:[%s8 + $0x58] sm:$0xff]
    %v1124 = vld [vmem:[%s8 + $0x60] sm:$0xff]
    %v1125 = vld [vmem:[%s8 + $0x68] sm:$0xff]
    %v1126 = vld [vmem:[%s8 + $0x70] sm:$0xff]
    %v1127 = vld [vmem:[%s8 + $0x78] sm:$0xff]
    %v1128 = vld [vmem:[%s8 + $0x80] sm:$0xff]
    %v1129 = vld [vmem:[%s8 + $0x88] sm:$0xff]
    %v1130 = vld [vmem:[%s8 + $0x90] sm:$0xff]
    %v1131 = vld [vmem:[%s8 + $0x98] sm:$0xff]
    %v1132 = vld [vmem:[%s8 + $0xa0] sm:$0xff]
    %v1133 = vld [vmem:[%s8 + $0xa8] sm:$0xff]
    %v1134 = vld [vmem:[%s8 + $0xb0] sm:$0xff]
    %v1135 = vld [vmem:[%s8 + $0xb8] sm:$0xff]
    %v1136 = vld [vmem:[%s8 + $0xc0] sm:$0xff]
    %v1137 = vld [vmem:[%s8 + $0xc8] sm:$0xff]
    %v1138 = vld [vmem:[%s8 + $0xd0] sm:$0xff]
    %v1139 = vld [vmem:[%s8 + $0xd8] sm:$0xff]
    %v1140 = vld [vmem:[%s8 + $0xe0] sm:$0xff]
    %v1141 = vld [vmem:[%s8 + $0xe8] sm:$0xff]
    %v1142 = vld [vmem:[%s8 + $0xf0] sm:$0xff]
    %v1143 = vld [vmem:[%s8 + $0xf8] sm:$0xff]
    %v1144 = vld [vmem:[%s8 + $0x100] sm:$0xff]
    %v1145 = vld [vmem:[%s8 + $0x108] sm:$0xff]
    %v1146 = vld [vmem:[%s8 + $0x110] sm:$0xff]
    %v1147 = vld [vmem:[%s8 + $0x118] sm:$0xff]
    %v1148 = vld [vmem:[%s8 + $0x120] sm:$0xff]
    %v1149 = vld [vmem:[%s8 + $0x128] sm:$0xff]
    %v1150 = vld [vmem:[%s8 + $0x130] sm:$0xff]
    %v1151 = vld [vmem:[%s8 + $0x138] sm:$0xff]
    %v1152 = vld [vmem:[%s8 + $0x140] sm:$0xff]
    %v1153 = vld [vmem:[%s8 + $0x148] sm:$0xff]
    %v1154 = vld [vmem:[%s8 + $0x150] sm:$0xff]
    %v1155 = vld [vmem:[%s8 + $0x158] sm:$0xff]
    %v1156 = vld [vmem:[%s8 + $0x160] sm:$0xff]
    %v1157 = vld [vmem:[%s8 + $0x168] sm:$0xff]
    %v1158 = vld [vmem:[%s8 + $0x170] sm:$0xff]
    %v1159 = vld [vmem:[%s8 + $0x178] sm:$0xff]
    %v1160 = vld [vmem:[%s8 + $0x180] sm:$0xff]
    %v1161 = vld [vmem:[%s8 + $0x188] sm:$0xff]
    %v1162 = vld [vmem:[%s8 + $0x190] sm:$0xff]
    %v1163 = vld [vmem:[%s8 + $0x198] sm:$0xff]
    %v1164 = vld [vmem:[%s8 + $0x1a0] sm:$0xff]
    %v1165 = vld [vmem:[%s8 + $0x1a8] sm:$0xff]
    %v1166 = vld [vmem:[%s8 + $0x1b0] sm:$0xff]
    %v1167 = vld [vmem:[%s8 + $0x1b8] sm:$0xff]
    %v1168 = vld [vmem:[%s8 + $0x1c0] sm:$0xff]
    %v1169 = vld [vmem:[%s8 + $0x1c8] sm:$0xff]
    %v1170 = vld [vmem:[%s8 + $0x1d0] sm:$0xff]
    %v1171 = vld [vmem:[%s8 + $0x1d8] sm:$0xff]
    %v1172 = vld [vmem:[%s8 + $0x1e0] sm:$0xff]
    %v1173 = vld [vmem:[%s8 + $0x1e8] sm:$0xff]
    %v1174 = vld [vmem:[%s8 + $0x1f0] sm:$0xff]
    %v1175 = vld [vmem:[%s8 + $0x1f8] sm:$0xff]
    %v1176 = vld [vmem:[%s9] sm:$0x3]
    %v1178 = vlaneseq
    %v1179 = vshrl.u32 %v1178, 7
    %v1180 = vsub.s32 0, %v1179
    %v1181 = vrot.slane %v1176, %v1180
    %v1182 = vlaneseq
    %v1183 = vshrl.u32 %v1182, 7
    %v1184 = vsub.s32 1, %v1183
    %v1185 = vrot.slane %v1176, %v1184
    %v1252 = vunpack.c.l.b16 %v1112
    %v1253 = vunpack.c.h.b16 %v1112
    %v1254 = vunpack.c.l.b16 %v1113
    %v1255 = vunpack.c.h.b16 %v1113
    %v1256 = vunpack.c.l.b16 %v1114
    %v1257 = vunpack.c.h.b16 %v1114
    %v1258 = vunpack.c.l.b16 %v1115
    %v1259 = vunpack.c.h.b16 %v1115
    %v1260 = vunpack.c.l.b16 %v1116
    %v1261 = vunpack.c.h.b16 %v1116
    %v1262 = vunpack.c.l.b16 %v1117
    %v1263 = vunpack.c.h.b16 %v1117
    %v1264 = vunpack.c.l.b16 %v1118
    %v1265 = vunpack.c.h.b16 %v1118
    %v1266 = vunpack.c.l.b16 %v1119
    %v1267 = vunpack.c.h.b16 %v1119
    %v1268 = vunpack.c.l.b16 %v1120
    %v1269 = vunpack.c.h.b16 %v1120
    %v1270 = vunpack.c.l.b16 %v1121
    %v1271 = vunpack.c.h.b16 %v1121
    %v1272 = vunpack.c.l.b16 %v1122
    %v1273 = vunpack.c.h.b16 %v1122
    %v1274 = vunpack.c.l.b16 %v1123
    %v1275 = vunpack.c.h.b16 %v1123
    %v1276 = vunpack.c.l.b16 %v1124
    %v1277 = vunpack.c.h.b16 %v1124
    %v1278 = vunpack.c.l.b16 %v1125
    %v1279 = vunpack.c.h.b16 %v1125
    %v1280 = vunpack.c.l.b16 %v1126
    %v1281 = vunpack.c.h.b16 %v1126
    %v1282 = vunpack.c.l.b16 %v1127
    %v1283 = vunpack.c.h.b16 %v1127
    %v1284 = vunpack.c.l.b16 %v1128
    %v1285 = vunpack.c.h.b16 %v1128
    %v1286 = vunpack.c.l.b16 %v1129
    %v1287 = vunpack.c.h.b16 %v1129
    %v1288 = vunpack.c.l.b16 %v1130
    %v1289 = vunpack.c.h.b16 %v1130
    %v1290 = vunpack.c.l.b16 %v1131
    %v1291 = vunpack.c.h.b16 %v1131
    %v1292 = vunpack.c.l.b16 %v1132
    %v1293 = vunpack.c.h.b16 %v1132
    %v1294 = vunpack.c.l.b16 %v1133
    %v1295 = vunpack.c.h.b16 %v1133
    %v1296 = vunpack.c.l.b16 %v1134
    %v1297 = vunpack.c.h.b16 %v1134
    %v1298 = vunpack.c.l.b16 %v1135
    %v1299 = vunpack.c.h.b16 %v1135
    %v1300 = vunpack.c.l.b16 %v1136
    %v1301 = vunpack.c.h.b16 %v1136
    %v1302 = vunpack.c.l.b16 %v1137
    %v1303 = vunpack.c.h.b16 %v1137
    %v1304 = vunpack.c.l.b16 %v1138
    %v1305 = vunpack.c.h.b16 %v1138
    %v1306 = vunpack.c.l.b16 %v1139
    %v1307 = vunpack.c.h.b16 %v1139
    %v1308 = vunpack.c.l.b16 %v1140
    %v1309 = vunpack.c.h.b16 %v1140
    %v1310 = vunpack.c.l.b16 %v1141
    %v1311 = vunpack.c.h.b16 %v1141
    %v1312 = vunpack.c.l.b16 %v1142
    %v1313 = vunpack.c.h.b16 %v1142
    %v1314 = vunpack.c.l.b16 %v1143
    %v1315 = vunpack.c.h.b16 %v1143
    %v1316 = vunpack.c.l.b16 %v1144
    %v1317 = vunpack.c.h.b16 %v1144
    %v1318 = vunpack.c.l.b16 %v1145
    %v1319 = vunpack.c.h.b16 %v1145
    %v1320 = vunpack.c.l.b16 %v1146
    %v1321 = vunpack.c.h.b16 %v1146
    %v1322 = vunpack.c.l.b16 %v1147
    %v1323 = vunpack.c.h.b16 %v1147
    %v1324 = vunpack.c.l.b16 %v1148
    %v1325 = vunpack.c.h.b16 %v1148
    %v1326 = vunpack.c.l.b16 %v1149
    %v1327 = vunpack.c.h.b16 %v1149
    %v1328 = vunpack.c.l.b16 %v1150
    %v1329 = vunpack.c.h.b16 %v1150
    %v1330 = vunpack.c.l.b16 %v1151
    %v1331 = vunpack.c.h.b16 %v1151
    %v1332 = vunpack.c.l.b16 %v1152
    %v1333 = vunpack.c.h.b16 %v1152
    %v1334 = vunpack.c.l.b16 %v1153
    %v1335 = vunpack.c.h.b16 %v1153
    %v1336 = vunpack.c.l.b16 %v1154
    %v1337 = vunpack.c.h.b16 %v1154
    %v1338 = vunpack.c.l.b16 %v1155
    %v1339 = vunpack.c.h.b16 %v1155
    %v1340 = vunpack.c.l.b16 %v1156
    %v1341 = vunpack.c.h.b16 %v1156
    %v1342 = vunpack.c.l.b16 %v1157
    %v1343 = vunpack.c.h.b16 %v1157
    %v1344 = vunpack.c.l.b16 %v1158
    %v1345 = vunpack.c.h.b16 %v1158
    %v1346 = vunpack.c.l.b16 %v1159
    %v1347 = vunpack.c.h.b16 %v1159
    %v1348 = vunpack.c.l.b16 %v1160
    %v1349 = vunpack.c.h.b16 %v1160
    %v1350 = vunpack.c.l.b16 %v1161
    %v1351 = vunpack.c.h.b16 %v1161
    %v1352 = vunpack.c.l.b16 %v1162
    %v1353 = vunpack.c.h.b16 %v1162
    %v1354 = vunpack.c.l.b16 %v1163
    %v1355 = vunpack.c.h.b16 %v1163
    %v1356 = vunpack.c.l.b16 %v1164
    %v1357 = vunpack.c.h.b16 %v1164
    %v1358 = vunpack.c.l.b16 %v1165
    %v1359 = vunpack.c.h.b16 %v1165
    %v1360 = vunpack.c.l.b16 %v1166
    %v1361 = vunpack.c.h.b16 %v1166
    %v1362 = vunpack.c.l.b16 %v1167
    %v1363 = vunpack.c.h.b16 %v1167
    %v1364 = vunpack.c.l.b16 %v1168
    %v1365 = vunpack.c.h.b16 %v1168
    %v1366 = vunpack.c.l.b16 %v1169
    %v1367 = vunpack.c.h.b16 %v1169
    %v1368 = vunpack.c.l.b16 %v1170
    %v1369 = vunpack.c.h.b16 %v1170
    %v1370 = vunpack.c.l.b16 %v1171
    %v1371 = vunpack.c.h.b16 %v1171
    %v1372 = vunpack.c.l.b16 %v1172
    %v1373 = vunpack.c.h.b16 %v1172
    %v1374 = vunpack.c.l.b16 %v1173
    %v1375 = vunpack.c.h.b16 %v1173
    %v1376 = vunpack.c.l.b16 %v1174
    %v1377 = vunpack.c.h.b16 %v1174
    %v1378 = vunpack.c.l.b16 %v1175
    %v1379 = vunpack.c.h.b16 %v1175
    %v1380 = vpack.c.b16 %v1254, %v1252
    %v1381 = vpack.c.b16 %v1255, %v1253
    %v1382 = vpack.c.b16 %v1258, %v1256
    %v1383 = vpack.c.b16 %v1259, %v1257
    %v1384 = vpack.c.b16 %v1262, %v1260
    %v1385 = vpack.c.b16 %v1263, %v1261
    %v1386 = vpack.c.b16 %v1266, %v1264
    %v1387 = vpack.c.b16 %v1267, %v1265
    %v1388 = vpack.c.b16 %v1270, %v1268
    %v1389 = vpack.c.b16 %v1271, %v1269
    %v1390 = vpack.c.b16 %v1274, %v1272
    %v1391 = vpack.c.b16 %v1275, %v1273
    %v1392 = vpack.c.b16 %v1278, %v1276
    %v1393 = vpack.c.b16 %v1279, %v1277
    %v1394 = vpack.c.b16 %v1282, %v1280
    %v1395 = vpack.c.b16 %v1283, %v1281
    %v1396 = vpack.c.b16 %v1286, %v1284
    %v1397 = vpack.c.b16 %v1287, %v1285
    %v1398 = vpack.c.b16 %v1290, %v1288
    %v1399 = vpack.c.b16 %v1291, %v1289
    %v1400 = vpack.c.b16 %v1294, %v1292
    %v1401 = vpack.c.b16 %v1295, %v1293
    %v1402 = vpack.c.b16 %v1298, %v1296
    %v1403 = vpack.c.b16 %v1299, %v1297
    %v1404 = vpack.c.b16 %v1302, %v1300
    %v1405 = vpack.c.b16 %v1303, %v1301
    %v1406 = vpack.c.b16 %v1306, %v1304
    %v1407 = vpack.c.b16 %v1307, %v1305
    %v1408 = vpack.c.b16 %v1310, %v1308
    %v1409 = vpack.c.b16 %v1311, %v1309
    %v1410 = vpack.c.b16 %v1314, %v1312
    %v1411 = vpack.c.b16 %v1315, %v1313
    %v1412 = vpack.c.b16 %v1318, %v1316
    %v1413 = vpack.c.b16 %v1319, %v1317
    %v1414 = vpack.c.b16 %v1322, %v1320
    %v1415 = vpack.c.b16 %v1323, %v1321
    %v1416 = vpack.c.b16 %v1326, %v1324
    %v1417 = vpack.c.b16 %v1327, %v1325
    %v1418 = vpack.c.b16 %v1330, %v1328
    %v1419 = vpack.c.b16 %v1331, %v1329
    %v1420 = vpack.c.b16 %v1334, %v1332
    %v1421 = vpack.c.b16 %v1335, %v1333
    %v1422 = vpack.c.b16 %v1338, %v1336
    %v1423 = vpack.c.b16 %v1339, %v1337
    %v1424 = vpack.c.b16 %v1342, %v1340
    %v1425 = vpack.c.b16 %v1343, %v1341
    %v1426 = vpack.c.b16 %v1346, %v1344
    %v1427 = vpack.c.b16 %v1347, %v1345
    %v1428 = vpack.c.b16 %v1350, %v1348
    %v1429 = vpack.c.b16 %v1351, %v1349
    %v1430 = vpack.c.b16 %v1354, %v1352
    %v1431 = vpack.c.b16 %v1355, %v1353
    %v1432 = vpack.c.b16 %v1358, %v1356
    %v1433 = vpack.c.b16 %v1359, %v1357
    %v1434 = vpack.c.b16 %v1362, %v1360
    %v1435 = vpack.c.b16 %v1363, %v1361
    %v1436 = vpack.c.b16 %v1366, %v1364
    %v1437 = vpack.c.b16 %v1367, %v1365
    %v1438 = vpack.c.b16 %v1370, %v1368
    %v1439 = vpack.c.b16 %v1371, %v1369
    %v1440 = vpack.c.b16 %v1374, %v1372
    %v1441 = vpack.c.b16 %v1375, %v1373
    %v1442 = vpack.c.b16 %v1378, %v1376
    %v1443 = vpack.c.b16 %v1379, %v1377
    %1508 = vmatprep.subr.bf16.mxu0 %v1381
    %1509 = vmatpush1.bf16.msra.mxu0 %v1380
    %1510 = vmatprep.subr.bf16.mxu0 %v1383
    %1511 = vmatpush1.bf16.msra.mxu0 %v1382
    %1512 = vmatprep.subr.bf16.mxu0 %v1385
    %1513 = vmatpush1.bf16.msra.mxu0 %v1384
    %1514 = vmatprep.subr.bf16.mxu0 %v1387
    %1515 = vmatpush1.bf16.msra.mxu0 %v1386
    %1516 = vmatprep.subr.bf16.mxu0 %v1389
    %1517 = vmatpush1.bf16.msra.mxu0 %v1388
    %1518 = vmatprep.subr.bf16.mxu0 %v1391
    %1519 = vmatpush1.bf16.msra.mxu0 %v1390
    %1520 = vmatprep.subr.bf16.mxu0 %v1393
    %1521 = vmatpush1.bf16.msra.mxu0 %v1392
    %1522 = vmatprep.subr.bf16.mxu0 %v1395
    %1523 = vmatpush1.bf16.msra.mxu0 %v1394
    %1524 = vmatprep.subr.bf16.mxu0 %v1397
    %1525 = vmatpush1.bf16.msra.mxu0 %v1396
    %1526 = vmatprep.subr.bf16.mxu0 %v1399
    %1527 = vmatpush1.bf16.msra.mxu0 %v1398
    %1528 = vmatprep.subr.bf16.mxu0 %v1401
    %1529 = vmatpush1.bf16.msra.mxu0 %v1400
    %1530 = vmatprep.subr.bf16.mxu0 %v1403
    %1531 = vmatpush1.bf16.msra.mxu0 %v1402
    %1532 = vmatprep.subr.bf16.mxu0 %v1405
    %1533 = vmatpush1.bf16.msra.mxu0 %v1404
    %1534 = vmatprep.subr.bf16.mxu0 %v1407
    %1535 = vmatpush1.bf16.msra.mxu0 %v1406
    %1536 = vmatprep.subr.bf16.mxu0 %v1409
    %1537 = vmatpush1.bf16.msra.mxu0 %v1408
    %1538 = vmatprep.subr.bf16.mxu0 %v1411
    %1539 = vmatpush1.bf16.msra.mxu0 %v1410
    %1540 = vmatprep.mubr.bf16.mxu0 %v1105
    %1541 = vmatmul.mubr.bf16.gmra.mrb[0].mxu0 %v1104
    %v1542 = vpop.f32.mrb[0].mxu0
    %v1543 = vadd.f32 %v1181, %v1542
    %v1544 = vpop.f32.mrb[0].mxu0
    %v1545 = vadd.f32 %v1185, %v1544
    %v1546 = vpop.f32.mrb[0].mxu0
    %v1547 = vadd.f32 %v1181, %v1546
    %v1548 = vpop.f32.mrb[0].mxu0
    %v1549 = vadd.f32 %v1185, %v1548
    %1550 = vmatprep.mubr.bf16.mxu0 %v1109
    %1551 = vmatmul.mubr.bf16.gmra.mrb[0].mxu0 %v1108
    %v1552 = vpop.f32.mrb[0].mxu0
    %v1553 = vadd.f32 %v1181, %v1552
    %v1554 = vpop.f32.mrb[0].mxu0
    %v1555 = vadd.f32 %v1185, %v1554
    %v1556 = vpop.f32.mrb[0].mxu0
    %v1557 = vadd.f32 %v1181, %v1556
    %v1558 = vpop.f32.mrb[0].mxu0
    %v1559 = vadd.f32 %v1185, %v1558
    %1560 = vdwg.mxu0
    %1561 = vmatprep.subr.bf16.mxu0 %v1413
    %1562 = vmatpush1.bf16.msra.mxu0 %v1412
    %1563 = vmatprep.subr.bf16.mxu0 %v1415
    %1564 = vmatpush1.bf16.msra.mxu0 %v1414
    %1565 = vmatprep.subr.bf16.mxu0 %v1417
    %1566 = vmatpush1.bf16.msra.mxu0 %v1416
    %1567 = vmatprep.subr.bf16.mxu0 %v1419
    %1568 = vmatpush1.bf16.msra.mxu0 %v1418
    %1569 = vmatprep.subr.bf16.mxu0 %v1421
    %1570 = vmatpush1.bf16.msra.mxu0 %v1420
    %1571 = vmatprep.subr.bf16.mxu0 %v1423
    %1572 = vmatpush1.bf16.msra.mxu0 %v1422
    %1573 = vmatprep.subr.bf16.mxu0 %v1425
    %1574 = vmatpush1.bf16.msra.mxu0 %v1424
    %1575 = vmatprep.subr.bf16.mxu0 %v1427
    %1576 = vmatpush1.bf16.msra.mxu0 %v1426
    %1577 = vmatprep.subr.bf16.mxu0 %v1429
    %1578 = vmatpush1.bf16.msra.mxu0 %v1428
    %1579 = vmatprep.subr.bf16.mxu0 %v1431
    %1580 = vmatpush1.bf16.msra.mxu0 %v1430
    %1581 = vmatprep.subr.bf16.mxu0 %v1433
    %1582 = vmatpush1.bf16.msra.mxu0 %v1432
    %1583 = vmatprep.subr.bf16.mxu0 %v1435
    %1584 = vmatpush1.bf16.msra.mxu0 %v1434
    %1585 = vmatprep.subr.bf16.mxu0 %v1437
    %1586 = vmatpush1.bf16.msra.mxu0 %v1436
    %1587 = vmatprep.subr.bf16.mxu0 %v1439
    %1588 = vmatpush1.bf16.msra.mxu0 %v1438
    %1589 = vmatprep.subr.bf16.mxu0 %v1441
    %1590 = vmatpush1.bf16.msra.mxu0 %v1440
    %1591 = vmatprep.subr.bf16.mxu0 %v1443
    %1592 = vmatpush1.bf16.msra.mxu0 %v1442
    %1593 = vmatprep.mubr.bf16.mxu0 %v1107
    %1594 = vmatmul.mubr.bf16.gmra.mrb[0].mxu0 %v1106
    %v1595 = vpop.f32.mrb[0].mxu0
    %v1596 = vadd.f32 %v1543, %v1595
    %v1597 = vpop.f32.mrb[0].mxu0
    %v1598 = vadd.f32 %v1545, %v1597
    %v1599 = vpop.f32.mrb[0].mxu0
    %v1600 = vadd.f32 %v1547, %v1599
    %v1601 = vpop.f32.mrb[0].mxu0
    %v1602 = vadd.f32 %v1549, %v1601
    %1603 = vmatprep.mubr.bf16.mxu0 %v1111
    %1604 = vmatmul.mubr.bf16.gmra.mrb[0].mxu0 %v1110
    %v1605 = vpop.f32.mrb[0].mxu0
    %v1606 = vadd.f32 %v1553, %v1605
    %v1607 = vpop.f32.mrb[0].mxu0
    %v1608 = vadd.f32 %v1555, %v1607
    %v1609 = vpop.f32.mrb[0].mxu0
    %v1610 = vadd.f32 %v1557, %v1609
    %v1611 = vpop.f32.mrb[0].mxu0
    %v1612 = vadd.f32 %v1559, %v1611
    %1613 = vdwg.mxu0
    %v1614 = vadd.f32 %v436, %v1596
    %v1615 = vadd.f32 %v437, %v1598
    %v1616 = vadd.f32 %v438, %v1600
    %v1617 = vadd.f32 %v439, %v1602
    %v1618 = vadd.f32 %v440, %v1606
    %v1619 = vadd.f32 %v441, %v1608
    %v1620 = vadd.f32 %v442, %v1610
    %v1621 = vadd.f32 %v443, %v1612
    %v1622 = vld [vmem:[%s10] sm:$0x3]
    %v1623 = vld [vmem:[%s11] sm:$0x3]
    %v1624 = vadd.f32 %v1614, %v1615
    %1625 = vadd.xlane.f32.xlu0 %v1624
    %v1626 = vpop.xlane.xlu0 %1625
    %v1627 = vadd.f32 %v1616, %v1617
    %1628 = vadd.xlane.f32.xlu0 %v1627
    %v1629 = vpop.xlane.xlu0 %1628
    %v1630 = vadd.f32 %v1618, %v1619
    %1631 = vadd.xlane.f32.xlu0 %v1630
    %v1632 = vpop.xlane.xlu0 %1631
    %v1633 = vadd.f32 %v1620, %v1621
    %1634 = vadd.xlane.f32.xlu0 %v1633
    %v1635 = vpop.xlane.xlu0 %1634
    %v1636 = vmul.f32 %v1626, %v353
    %v1637 = vmul.f32 %v1629, %v353
    %v1638 = vmul.f32 %v1632, %v353
    %v1639 = vmul.f32 %v1635, %v353
    %v1640 = vsub.f32 %v1614, %v1636
    %v1641 = vsub.f32 %v1615, %v1636
    %v1642 = vsub.f32 %v1616, %v1637
    %v1643 = vsub.f32 %v1617, %v1637
    %v1644 = vsub.f32 %v1618, %v1638
    %v1645 = vsub.f32 %v1619, %v1638
    %v1646 = vsub.f32 %v1620, %v1639
    %v1647 = vsub.f32 %v1621, %v1639
    %v1648 = vmul.f32 %v1640, %v1640
    %v1649 = vmul.f32 %v1641, %v1641
    %v1650 = vmul.f32 %v1642, %v1642
    %v1651 = vmul.f32 %v1643, %v1643
    %v1652 = vmul.f32 %v1644, %v1644
    %v1653 = vmul.f32 %v1645, %v1645
    %v1654 = vmul.f32 %v1646, %v1646
    %v1655 = vmul.f32 %v1647, %v1647
    %v1656 = vadd.f32 %v1648, %v1649
    %1657 = vadd.xlane.f32.xlu0 %v1656
    %v1658 = vpop.xlane.xlu0 %1657
    %v1659 = vadd.f32 %v1650, %v1651
    %1660 = vadd.xlane.f32.xlu0 %v1659
    %v1661 = vpop.xlane.xlu0 %1660
    %v1662 = vadd.f32 %v1652, %v1653
    %1663 = vadd.xlane.f32.xlu0 %v1662
    %v1664 = vpop.xlane.xlu0 %1663
    %v1665 = vadd.f32 %v1654, %v1655
    %1666 = vadd.xlane.f32.xlu0 %v1665
    %v1667 = vpop.xlane.xlu0 %1666
    %v1668 = vmul.f32 %v1658, %v353
    %v1669 = vmul.f32 %v1661, %v353
    %v1670 = vmul.f32 %v1664, %v353
    %v1671 = vmul.f32 %v1667, %v353
    %v1672 = vadd.f32 %v1668, 1e-05
    %v1673 = vadd.f32 %v1669, 1e-05
    %v1674 = vadd.f32 %v1670, 1e-05
    %v1675 = vadd.f32 %v1671, 1e-05
    %v1676 = vrsqrt.pop %v1672
    %v1677 = vrsqrt.pop %v1673
    %v1678 = vrsqrt.pop %v1674
    %v1679 = vrsqrt.pop %v1675
    %v1680 = vmul.f32 %v1640, %v1676
    %v1681 = vmul.f32 %v1641, %v1676
    %v1682 = vmul.f32 %v1642, %v1677
    %v1683 = vmul.f32 %v1643, %v1677
    %v1684 = vmul.f32 %v1644, %v1678
    %v1685 = vmul.f32 %v1645, %v1678
    %v1686 = vmul.f32 %v1646, %v1679
    %v1687 = vmul.f32 %v1647, %v1679
    %v1689 = vlaneseq
    %v1690 = vshrl.u32 %v1689, 7
    %v1691 = vsub.s32 0, %v1690
    %v1692 = vrot.slane %v1622, %v1691
    %v1693 = vlaneseq
    %v1694 = vshrl.u32 %v1693, 7
    %v1695 = vsub.s32 1, %v1694
    %v1696 = vrot.slane %v1622, %v1695
    %v1699 = vmul.f32 %v1680, %v1692
    %v1700 = vmul.f32 %v1681, %v1696
    %v1701 = vmul.f32 %v1682, %v1692
    %v1702 = vmul.f32 %v1683, %v1696
    %v1703 = vmul.f32 %v1684, %v1692
    %v1704 = vmul.f32 %v1685, %v1696
    %v1705 = vmul.f32 %v1686, %v1692
    %v1706 = vmul.f32 %v1687, %v1696
    %v1708 = vlaneseq
    %v1709 = vshrl.u32 %v1708, 7
    %v1710 = vsub.s32 0, %v1709
    %v1711 = vrot.slane %v1623, %v1710
    %v1712 = vlaneseq
    %v1713 = vshrl.u32 %v1712, 7
    %v1714 = vsub.s32 1, %v1713
    %v1715 = vrot.slane %v1623, %v1714
    %v1718 = vadd.f32 %v1699, %v1711
    %v1719 = vadd.f32 %v1700, %v1715
    %v1720 = vadd.f32 %v1701, %v1711
    %v1721 = vadd.f32 %v1702, %v1715
    %v1722 = vadd.f32 %v1703, %v1711
    %v1723 = vadd.f32 %v1704, %v1715
    %v1724 = vadd.f32 %v1705, %v1711
    %v1725 = vadd.f32 %v1706, %v1715
    %1726 = vst [vmem:[#allocation2] sm:$0xff] %v1718
    %1727 = vst [vmem:[#allocation2 + $0x8] sm:$0xff] %v1719
    %1728 = vst [vmem:[#allocation2 + $0x10] sm:$0xff] %v1720
    %1729 = vst [vmem:[#allocation2 + $0x18] sm:$0xff] %v1721
    %1730 = vst [vmem:[#allocation2 + $0x20] sm:$0xff] %v1722
    %1731 = vst [vmem:[#allocation2 + $0x28] sm:$0xff] %v1723
    %1732 = vst [vmem:[#allocation2 + $0x30] sm:$0xff] %v1724
    %1733 = vst [vmem:[#allocation2 + $0x38] sm:$0xff] %v1725
    // Predicated region
    $region50: #{transformer_block.5} parent=1 // pred_check
      _
    $region51: #{transformer_block.5} parent=1 // pred_check_branch
      %1735 = sbr.rel (0) target = $region53
    $region52: #{transformer_block.5} parent=1 // pred_region
      %s1737 = ssub.s32 1024, 1024
      %1738 = vsyncadd [#allocation3], %s1737
      %s1739 = sshll.u32 [#allocation2], 4
      %s1740 = int_to_ptr.vmem [resolvable:$true] %s1739
      %1745 = dma.vmem_to_hbm [thread:$0]  %s1740, 1024, %s12, [#allocation3], 256, 256, 16
    $region53: #{transformer_block.5} parent=1 // pred_fallthru
      _
    // Predicated region
    $region54: #{transformer_block.5} parent=1 // pred_check
      _
    $region55: #{transformer_block.5} parent=1 // pred_check_branch
      %1747 = sbr.rel (0) target = $region57
    $region56: #{transformer_block.5} parent=1 // pred_region
      %1748 = dma.done [#allocation3], 1024
    $region57: #{transformer_block.5} parent=1 // pred_fallthru
      _
    %1749 = vsyncpa [#allocation3], 1

</llo_original>
